<compile_context>
chip_gen: v7x
topology: tpu7x:2x2x1
jax: 0.10.0
libtpu: 0.0.40
codegen_flags: <defaults>
</compile_context>

<pallas_src>
import functools
import math

import jax
import jax.numpy as jnp
from jax.experimental import pallas as pl
from jax.experimental.pallas import tpu as pltpu

_LANE = 128


def _gelu(x, approximate):
    if approximate:
        # tanh-approx GELU -> EUP slot (otherwise idle here).
        return jax.nn.gelu(x, approximate=True)
    # exact GELU (PyTorch nn.GELU default): 0.5 * x * (1 + erf(x / sqrt(2)))
    return 0.5 * x * (1.0 + jax.lax.erf(x * (1.0 / math.sqrt(2.0))))


def fouriernet_kernel(tx_ref, vec_ref, sqw_ref, iew_ref, out_ref, *,
                      approximate_gelu):
    f32 = jnp.float32
    act = lambda v: _gelu(v, approximate_gelu)

    tx = tx_ref[...].astype(f32)          # (bb, 1 + dim)
    t = tx[:, 0:1]                        # (bb, 1)
    x = tx[:, 1:]                         # (bb, dim)

    # Packed replicated vectors: rows are
    #   0: coeff_p   1: phase_p   2: tn_h0_b   3: tn_out_b
    #   4: ie_b      5: h0_b      6: h1_b      7: out_b
    coeff = vec_ref[0:1, :]
    phase = vec_ref[1:2, :]
    tnb0 = vec_ref[2:3, :]
    tnb1 = vec_ref[3:4, :]
    ieb = vec_ref[4:5, :]
    h0b = vec_ref[5:6, :]
    h1b = vec_ref[6:7, :]
    ob = vec_ref[7:8, :]

    # ---- TimeNet (num_layers=2) ----
    # Fused sin/cos: concat([sin(z), cos(z)]) == sin([z, z + pi/2]), so a single
    # lane-dense trig pass feeds a single (W, W) matmul.
    trig = jnp.sin(coeff * t + phase)                              # (bb, W)
    h = jnp.dot(trig, sqw_ref[0], preferred_element_type=f32) + tnb0
    h = act(h)
    embed_t = jnp.dot(h, sqw_ref[1], preferred_element_type=f32) + tnb1

    # ---- FourierNet trunk ----
    embed_x = jnp.dot(x, iew_ref[...], preferred_element_type=f32) + ieb
    e = embed_x + embed_t
    e = jnp.dot(act(e), sqw_ref[2], preferred_element_type=f32) + h0b
    e = jnp.dot(act(e), sqw_ref[3], preferred_element_type=f32) + h1b
    out = jnp.dot(act(e), sqw_ref[4], preferred_element_type=f32) + ob
    out_ref[...] = out.astype(out_ref.dtype)


def init_params(key, dim, dim_out, channels):
    """Deterministic parameter init (PyTorch-like uniform +/- 1/sqrt(fan_in))."""
    C = channels
    ks = jax.random.split(key, 16)

    def lin(kw, kb, fan_in, fan_out):
        bound = 1.0 / math.sqrt(fan_in)
        w = jax.random.uniform(kw, (fan_out, fan_in), jnp.float32, -bound, bound)
        b = jax.random.uniform(kb, (fan_out,), jnp.float32, -bound, bound)
        return w, b

    p = {}
    # TimeNet (num_layers=2, channels=C, dim_out=C)
    p["timestep_coeff"] = jnp.linspace(0.1, 100.0, C, dtype=jnp.float32)[None, :]
    p["timestep_phase"] = jax.random.normal(ks[0], (1, C), jnp.float32)
    p["tn_h0_w"], p["tn_h0_b"] = lin(ks[1], ks[2], 2 * C, C)   # Linear(2C, C)
    p["tn_out_w"], p["tn_out_b"] = lin(ks[3], ks[4], C, C)     # Linear(C, C)
    # FourierNet
    p["ie_w"], p["ie_b"] = lin(ks[5], ks[6], dim, C)           # input_embed
    p["h0_w"], p["h0_b"] = lin(ks[7], ks[8], C, C)             # hidden 0
    p["h1_w"], p["h1_b"] = lin(ks[9], ks[10], C, C)            # hidden 1
    p["out_w"], p["out_b"] = lin(ks[11], ks[12], C, dim_out)   # out_layer
    return p


def _round_up(n, m):
    return ((n + m - 1) // m) * m


def _pad2(a, rows, cols):
    r, c = a.shape
    return jnp.pad(a, ((0, rows - r), (0, cols - c)))


def _choose_block_b(B, block_b):
    if block_b is None:
        # 256-512 fills the v6e MXU and amortizes per-step overhead; the B/2 cap
        # keeps >= 2 "parallel" grid steps so both v7x TensorCores get work.
        block_b = 512
    block_b = min(block_b, max(8, (B // 2) // 8 * 8) if B >= 16 else B)
    block_b = max(8, (block_b // 8) * 8)
    return min(block_b, _round_up(B, 8))


def fouriernet_forward(t, x, params, *, block_b=None, approximate_gelu=False):
    B, dim = x.shape
    C = params["timestep_coeff"].shape[1]
    dim_out = params["out_w"].shape[0]
    # Common lane-dense width for all padded channels (2C = 128 for C = 64).
    W = _round_up(max(2 * C, dim_out), _LANE)

    block_b = _choose_block_b(B, block_b)
    grid = (pl.cdiv(B, block_b),)

    f32 = jnp.float32
    # ---- Fused trig parameters: cos(z) == sin(z + pi/2) (exact in math,
    # ~1 ulp f32 rounding).  Padded lanes have coeff = phase = 0 and matching
    # zero weight rows, so the valid outputs equal the unpadded computation.
    coeff = params["timestep_coeff"].astype(f32)            # (1, C)
    phase = params["timestep_phase"].astype(f32)            # (1, C)
    coeff_p = _pad2(jnp.concatenate([coeff, coeff], axis=1), 1, W)
    phase_p = _pad2(jnp.concatenate([phase, phase + (math.pi / 2.0)], axis=1), 1, W)

    # ---- Square (W, W) weights, stacked into one replicated DMA stream.
    tnw0 = _pad2(jnp.transpose(params["tn_h0_w"].astype(f32)), W, W)   # (2C,C)->(W,W)
    tnw1 = _pad2(jnp.transpose(params["tn_out_w"].astype(f32)), W, W)
    h0w = _pad2(jnp.transpose(params["h0_w"].astype(f32)), W, W)
    h1w = _pad2(jnp.transpose(params["h1_w"].astype(f32)), W, W)
    ow = _pad2(jnp.transpose(params["out_w"].astype(f32)), W, W)
    sqw = jnp.stack([tnw0, tnw1, h0w, h1w, ow], axis=0)                 # (5, W, W)

    # ---- Input-embed weight keeps its tiny K = dim contraction.
    iew = _pad2(jnp.transpose(params["ie_w"].astype(f32)), dim, W)      # (dim, W)

    # ---- coeff/phase + all biases packed into a single (8, W) tile.
    vecs = jnp.concatenate([
        coeff_p, phase_p,
        _pad2(params["tn_h0_b"].astype(f32)[None, :], 1, W),
        _pad2(params["tn_out_b"].astype(f32)[None, :], 1, W),
        _pad2(params["ie_b"].astype(f32)[None, :], 1, W),
        _pad2(params["h0_b"].astype(f32)[None, :], 1, W),
        _pad2(params["h1_b"].astype(f32)[None, :], 1, W),
        _pad2(params["out_b"].astype(f32)[None, :], 1, W),
    ], axis=0)                                                           # (8, W)

    # ---- t and x merged into one lane-contiguous input stream.
    tx = jnp.concatenate([t.reshape(-1, 1).astype(f32), x.astype(f32)], axis=1)

    in_specs = [
        pl.BlockSpec((block_b, 1 + dim), lambda i: (i, 0)),   # [t | x]
        pl.BlockSpec((8, W), lambda i: (0, 0)),               # coeff/phase/biases
        pl.BlockSpec((5, W, W), lambda i: (0, 0, 0)),         # square weights
        pl.BlockSpec((dim, W), lambda i: (0, 0)),             # input-embed weight
    ]
    out_spec = pl.BlockSpec((block_b, W), lambda i: (i, 0))

    param_bytes = 4 * (sqw.size + vecs.size + iew.size)
    cost = pl.CostEstimate(
        flops=2 * B * (5 * W * W + dim * W),        # 5 square matmuls + input embed
        transcendentals=5 * B * W,                  # 1 sin + 4 GELU per row
        bytes_accessed=param_bytes + 4 * B * (1 + dim + W),
    )

    out_padded = pl.pallas_call(
        functools.partial(fouriernet_kernel, approximate_gelu=approximate_gelu),
        out_shape=jax.ShapeDtypeStruct((B, W), jnp.float32),
        grid_spec=pltpu.PrefetchScalarGridSpec(
            num_scalar_prefetch=0,
            grid=grid,
            in_specs=in_specs,
            out_specs=out_spec,
        ),
        compiler_params=pltpu.CompilerParams(
            dimension_semantics=("parallel",),
        ),
        cost_estimate=cost,
    )(tx, vecs, sqw, iew)

    return out_padded[:, :dim_out]


def fouriernet_reference(t, x, params, *, approximate_gelu=False):
    """Pure-JAX reference mirroring the PyTorch forward exactly."""
    act = lambda v: _gelu(v, approximate_gelu)
    t = t.reshape(-1, 1).astype(jnp.float32)
    arg = params["timestep_coeff"] * t + params["timestep_phase"]
    embed_t = jnp.concatenate([jnp.sin(arg), jnp.cos(arg)], axis=1)   # (B, 2C)
    embed_t = act(embed_t @ params["tn_h0_w"].T + params["tn_h0_b"])
    embed_t = embed_t @ params["tn_out_w"].T + params["tn_out_b"]
    embed_x = x @ params["ie_w"].T + params["ie_b"]
    e = embed_x + embed_t
    e = act(e) @ params["h0_w"].T + params["h0_b"]
    e = act(e) @ params["h1_w"].T + params["h1_b"]
    return act(e) @ params["out_w"].T + params["out_b"]


if __name__ == "__main__":
    # Small but tiled: B=256 with block_b capped at B/2=128 -> 2 grid steps.
    B, dim, dim_out, channels = 256, 4, 3, 64
    key = jax.random.PRNGKey(0)
    kp, kt, kx = jax.random.split(key, 3)

    params = init_params(kp, dim, dim_out, channels)
    t = jax.random.uniform(kt, (B, 1), jnp.float32)        # time in [0, 1)
    x = jax.random.normal(kx, (B, dim), jnp.float32)       # state

    # Exact-erf GELU path: matches PyTorch nn.GELU() default semantics.
    out = jax.block_until_ready(fouriernet_forward(t, x, params))
    ref = fouriernet_reference(t, x, params)
    assert out.shape == (B, dim_out)
    err = float(jnp.max(jnp.abs(out - ref)))
    # Slightly relaxed vs 1e-4 to absorb the ~ulp-level sin(z + pi/2) fusion
    # rounding; still far below any real-bug error scale.
    assert jnp.allclose(out, ref, rtol=2e-4, atol=2e-4), \
        f"exact-GELU mismatch: max abs err {err}"

    # Tanh-approx GELU path (EUP slot; biggest compute lever), validated against
    # a matching tanh-approx reference since it intentionally deviates from the
    # exact-erf semantics.
    out_a = jax.block_until_ready(
        fouriernet_forward(t, x, params, approximate_gelu=True))
    ref_a = fouriernet_reference(t, x, params, approximate_gelu=True)
    err_a = float(jnp.max(jnp.abs(out_a - ref_a)))
    assert jnp.allclose(out_a, ref_a, rtol=2e-4, atol=2e-4), \
        f"tanh-GELU mismatch: max abs err {err_a}"

    print("KERNEL_OK")
</pallas_src>

<mosaic_0001>
module attributes {stable_mosaic.version = 11 : i64} {
  func.func @fouriernet_kernel(%arg0: i32, %arg1: memref<128x5xf32, #tpu.memory_space<vmem>>, %arg2: memref<8x128xf32, #tpu.memory_space<vmem>>, %arg3: memref<5x128x128xf32, #tpu.memory_space<vmem>>, %arg4: memref<4x128xf32, #tpu.memory_space<vmem>>, %arg5: memref<128x128xf32, #tpu.memory_space<vmem>>) attributes {dimension_semantics = [#tpu.dimension_semantics<parallel>], iteration_bounds = array<i64: 2>, scalar_prefetch = 0 : i64, scratch_operands = 0 : i64, tpu.core_type = #tpu.core_type<tc>, window_params = [{transform_indices = @transform_0, window_bounds = array<i64: 128, 5>}, {pipeline_mode = #tpu.pipeline_mode<synchronous>, transform_indices = @transform_1, window_bounds = array<i64: 8, 128>}, {pipeline_mode = #tpu.pipeline_mode<synchronous>, transform_indices = @transform_2, window_bounds = array<i64: 5, 128, 128>}, {pipeline_mode = #tpu.pipeline_mode<synchronous>, transform_indices = @transform_3, window_bounds = array<i64: 4, 128>}, {transform_indices = @transform_4, window_bounds = array<i64: 128, 128>}]} {
    %c0 = arith.constant 0 : index
    %c0_0 = arith.constant 0 : index
    %0 = vector.load %arg1[%c0, %c0_0] : memref<128x5xf32, #tpu.memory_space<vmem>>, vector<128x5xf32>
    %1 = vector.extract_strided_slice %0 {offsets = [0, 0], sizes = [128, 1], strides = [1, 1]} : vector<128x5xf32> to vector<128x1xf32>
    %2 = vector.extract_strided_slice %0 {offsets = [0, 1], sizes = [128, 4], strides = [1, 1]} : vector<128x5xf32> to vector<128x4xf32>
    %c0_1 = arith.constant 0 : index
    %c0_2 = arith.constant 0 : index
    %3 = vector.load %arg2[%c0_1, %c0_2] : memref<8x128xf32, #tpu.memory_space<vmem>>, vector<1x128xf32>
    %c1 = arith.constant 1 : index
    %c0_3 = arith.constant 0 : index
    %4 = vector.load %arg2[%c1, %c0_3] : memref<8x128xf32, #tpu.memory_space<vmem>>, vector<1x128xf32>
    %c2 = arith.constant 2 : index
    %c0_4 = arith.constant 0 : index
    %5 = vector.load %arg2[%c2, %c0_4] : memref<8x128xf32, #tpu.memory_space<vmem>>, vector<1x128xf32>
    %c3 = arith.constant 3 : index
    %c0_5 = arith.constant 0 : index
    %6 = vector.load %arg2[%c3, %c0_5] : memref<8x128xf32, #tpu.memory_space<vmem>>, vector<1x128xf32>
    %c4 = arith.constant 4 : index
    %c0_6 = arith.constant 0 : index
    %7 = vector.load %arg2[%c4, %c0_6] : memref<8x128xf32, #tpu.memory_space<vmem>>, vector<1x128xf32>
    %c5 = arith.constant 5 : index
    %c0_7 = arith.constant 0 : index
    %8 = vector.load %arg2[%c5, %c0_7] : memref<8x128xf32, #tpu.memory_space<vmem>>, vector<1x128xf32>
    %c6 = arith.constant 6 : index
    %c0_8 = arith.constant 0 : index
    %9 = vector.load %arg2[%c6, %c0_8] : memref<8x128xf32, #tpu.memory_space<vmem>>, vector<1x128xf32>
    %c7 = arith.constant 7 : index
    %c0_9 = arith.constant 0 : index
    %10 = vector.load %arg2[%c7, %c0_9] : memref<8x128xf32, #tpu.memory_space<vmem>>, vector<1x128xf32>
    %11 = vector.broadcast %3 : vector<1x128xf32> to vector<128x128xf32>
    %12 = vector.broadcast %1 : vector<128x1xf32> to vector<128x128xf32>
    %13 = arith.mulf %11, %12 : vector<128x128xf32>
    %14 = vector.broadcast %4 : vector<1x128xf32> to vector<128x128xf32>
    %15 = arith.addf %13, %14 : vector<128x128xf32>
    %16 = math.sin %15 : vector<128x128xf32>
    %c0_10 = arith.constant 0 : index
    %c0_11 = arith.constant 0 : index
    %c0_12 = arith.constant 0 : index
    %17 = vector.load %arg3[%c0_10, %c0_11, %c0_12] : memref<5x128x128xf32, #tpu.memory_space<vmem>>, vector<1x128x128xf32>
    %18 = vector.shape_cast %17 : vector<1x128x128xf32> to vector<128x128xf32>
    %cst = arith.constant dense<0.000000e+00> : vector<128x128xf32>
    %19 = tpu.matmul %16, %18, %cst {dimension_numbers = #tpu.dot_dimension_numbers<[1], [0], [0], [1], [0, 0, 1, 1], [], []>} : vector<128x128xf32>, vector<128x128xf32>, vector<128x128xf32> -> vector<128x128xf32>
    %20 = vector.broadcast %5 : vector<1x128xf32> to vector<128x128xf32>
    %21 = arith.addf %19, %20 : vector<128x128xf32>
    %cst_13 = arith.constant 5.000000e-01 : f32
    %22 = vector.broadcast %cst_13 : f32 to vector<128x128xf32>
    %23 = arith.mulf %22, %21 : vector<128x128xf32>
    %cst_14 = arith.constant 0.707106769 : f32
    %24 = vector.broadcast %cst_14 : f32 to vector<128x128xf32>
    %25 = arith.mulf %21, %24 : vector<128x128xf32>
    %26 = math.erf %25 : vector<128x128xf32>
    %cst_15 = arith.constant 1.000000e+00 : f32
    %27 = vector.broadcast %cst_15 : f32 to vector<128x128xf32>
    %28 = arith.addf %27, %26 : vector<128x128xf32>
    %29 = arith.mulf %23, %28 : vector<128x128xf32>
    %c1_16 = arith.constant 1 : index
    %c0_17 = arith.constant 0 : index
    %c0_18 = arith.constant 0 : index
    %30 = vector.load %arg3[%c1_16, %c0_17, %c0_18] : memref<5x128x128xf32, #tpu.memory_space<vmem>>, vector<1x128x128xf32>
    %31 = vector.shape_cast %30 : vector<1x128x128xf32> to vector<128x128xf32>
    %cst_19 = arith.constant dense<0.000000e+00> : vector<128x128xf32>
    %32 = tpu.matmul %29, %31, %cst_19 {dimension_numbers = #tpu.dot_dimension_numbers<[1], [0], [0], [1], [0, 0, 1, 1], [], []>} : vector<128x128xf32>, vector<128x128xf32>, vector<128x128xf32> -> vector<128x128xf32>
    %33 = vector.broadcast %6 : vector<1x128xf32> to vector<128x128xf32>
    %34 = arith.addf %32, %33 : vector<128x128xf32>
    %c0_20 = arith.constant 0 : index
    %c0_21 = arith.constant 0 : index
    %35 = vector.load %arg4[%c0_20, %c0_21] : memref<4x128xf32, #tpu.memory_space<vmem>>, vector<4x128xf32>
    %cst_22 = arith.constant dense<0.000000e+00> : vector<128x128xf32>
    %36 = tpu.matmul %2, %35, %cst_22 {dimension_numbers = #tpu.dot_dimension_numbers<[1], [0], [0], [1], [0, 0, 1, 1], [], []>} : vector<128x4xf32>, vector<4x128xf32>, vector<128x128xf32> -> vector<128x128xf32>
    %37 = vector.broadcast %7 : vector<1x128xf32> to vector<128x128xf32>
    %38 = arith.addf %36, %37 : vector<128x128xf32>
    %39 = arith.addf %38, %34 : vector<128x128xf32>
    %cst_23 = arith.constant 5.000000e-01 : f32
    %40 = vector.broadcast %cst_23 : f32 to vector<128x128xf32>
    %41 = arith.mulf %40, %39 : vector<128x128xf32>
    %cst_24 = arith.constant 0.707106769 : f32
    %42 = vector.broadcast %cst_24 : f32 to vector<128x128xf32>
    %43 = arith.mulf %39, %42 : vector<128x128xf32>
    %44 = math.erf %43 : vector<128x128xf32>
    %cst_25 = arith.constant 1.000000e+00 : f32
    %45 = vector.broadcast %cst_25 : f32 to vector<128x128xf32>
    %46 = arith.addf %45, %44 : vector<128x128xf32>
    %47 = arith.mulf %41, %46 : vector<128x128xf32>
    %c2_26 = arith.constant 2 : index
    %c0_27 = arith.constant 0 : index
    %c0_28 = arith.constant 0 : index
    %48 = vector.load %arg3[%c2_26, %c0_27, %c0_28] : memref<5x128x128xf32, #tpu.memory_space<vmem>>, vector<1x128x128xf32>
    %49 = vector.shape_cast %48 : vector<1x128x128xf32> to vector<128x128xf32>
    %cst_29 = arith.constant dense<0.000000e+00> : vector<128x128xf32>
    %50 = tpu.matmul %47, %49, %cst_29 {dimension_numbers = #tpu.dot_dimension_numbers<[1], [0], [0], [1], [0, 0, 1, 1], [], []>} : vector<128x128xf32>, vector<128x128xf32>, vector<128x128xf32> -> vector<128x128xf32>
    %51 = vector.broadcast %8 : vector<1x128xf32> to vector<128x128xf32>
    %52 = arith.addf %50, %51 : vector<128x128xf32>
    %cst_30 = arith.constant 5.000000e-01 : f32
    %53 = vector.broadcast %cst_30 : f32 to vector<128x128xf32>
    %54 = arith.mulf %53, %52 : vector<128x128xf32>
    %cst_31 = arith.constant 0.707106769 : f32
    %55 = vector.broadcast %cst_31 : f32 to vector<128x128xf32>
    %56 = arith.mulf %52, %55 : vector<128x128xf32>
    %57 = math.erf %56 : vector<128x128xf32>
    %cst_32 = arith.constant 1.000000e+00 : f32
    %58 = vector.broadcast %cst_32 : f32 to vector<128x128xf32>
    %59 = arith.addf %58, %57 : vector<128x128xf32>
    %60 = arith.mulf %54, %59 : vector<128x128xf32>
    %c3_33 = arith.constant 3 : index
    %c0_34 = arith.constant 0 : index
    %c0_35 = arith.constant 0 : index
    %61 = vector.load %arg3[%c3_33, %c0_34, %c0_35] : memref<5x128x128xf32, #tpu.memory_space<vmem>>, vector<1x128x128xf32>
    %62 = vector.shape_cast %61 : vector<1x128x128xf32> to vector<128x128xf32>
    %cst_36 = arith.constant dense<0.000000e+00> : vector<128x128xf32>
    %63 = tpu.matmul %60, %62, %cst_36 {dimension_numbers = #tpu.dot_dimension_numbers<[1], [0], [0], [1], [0, 0, 1, 1], [], []>} : vector<128x128xf32>, vector<128x128xf32>, vector<128x128xf32> -> vector<128x128xf32>
    %64 = vector.broadcast %9 : vector<1x128xf32> to vector<128x128xf32>
    %65 = arith.addf %63, %64 : vector<128x128xf32>
    %cst_37 = arith.constant 5.000000e-01 : f32
    %66 = vector.broadcast %cst_37 : f32 to vector<128x128xf32>
    %67 = arith.mulf %66, %65 : vector<128x128xf32>
    %cst_38 = arith.constant 0.707106769 : f32
    %68 = vector.broadcast %cst_38 : f32 to vector<128x128xf32>
    %69 = arith.mulf %65, %68 : vector<128x128xf32>
    %70 = math.erf %69 : vector<128x128xf32>
    %cst_39 = arith.constant 1.000000e+00 : f32
    %71 = vector.broadcast %cst_39 : f32 to vector<128x128xf32>
    %72 = arith.addf %71, %70 : vector<128x128xf32>
    %73 = arith.mulf %67, %72 : vector<128x128xf32>
    %c4_40 = arith.constant 4 : index
    %c0_41 = arith.constant 0 : index
    %c0_42 = arith.constant 0 : index
    %74 = vector.load %arg3[%c4_40, %c0_41, %c0_42] : memref<5x128x128xf32, #tpu.memory_space<vmem>>, vector<1x128x128xf32>
    %75 = vector.shape_cast %74 : vector<1x128x128xf32> to vector<128x128xf32>
    %cst_43 = arith.constant dense<0.000000e+00> : vector<128x128xf32>
    %76 = tpu.matmul %73, %75, %cst_43 {dimension_numbers = #tpu.dot_dimension_numbers<[1], [0], [0], [1], [0, 0, 1, 1], [], []>} : vector<128x128xf32>, vector<128x128xf32>, vector<128x128xf32> -> vector<128x128xf32>
    %77 = vector.broadcast %10 : vector<1x128xf32> to vector<128x128xf32>
    %78 = arith.addf %76, %77 : vector<128x128xf32>
    %c0_44 = arith.constant 0 : index
    %c0_45 = arith.constant 0 : index
    %79 = vector.load %arg5[%c0_44, %c0_45] : memref<128x128xf32, #tpu.memory_space<vmem>>, vector<128x128xf32>
    tpu.vector_store %arg5[%c0_44, %c0_45], %78 {strides = array<i32>} : memref<128x128xf32, #tpu.memory_space<vmem>>, vector<128x128xf32>,
    return
  }
  func.func @transform_0(%arg0: i32) -> (i32, i32) {
    %c0_i32 = arith.constant 0 : i32
    %c0_i32_0 = arith.constant 0 : i32
    return %arg0, %c0_i32 : i32, i32
  }
  func.func @transform_1(%arg0: i32) -> (i32, i32) {
    %c0_i32 = arith.constant 0 : i32
    %c0_i32_0 = arith.constant 0 : i32
    %c0_i32_1 = arith.constant 0 : i32
    return %c0_i32, %c0_i32_0 : i32, i32
  }
  func.func @transform_2(%arg0: i32) -> (i32, i32, i32) {
    %c0_i32 = arith.constant 0 : i32
    %c0_i32_0 = arith.constant 0 : i32
    %c0_i32_1 = arith.constant 0 : i32
    %c0_i32_2 = arith.constant 0 : i32
    return %c0_i32, %c0_i32_0, %c0_i32_1 : i32, i32, i32
  }
  func.func @transform_3(%arg0: i32) -> (i32, i32) {
    %c0_i32 = arith.constant 0 : i32
    %c0_i32_0 = arith.constant 0 : i32
    %c0_i32_1 = arith.constant 0 : i32
    return %c0_i32, %c0_i32_0 : i32, i32
  }
  func.func @transform_4(%arg0: i32) -> (i32, i32) {
    %c0_i32 = arith.constant 0 : i32
    %c0_i32_0 = arith.constant 0 : i32
    return %arg0, %c0_i32 : i32, i32
  }
}

</mosaic_0001>

<llo_original>
// kernel: tpu_custom_call.1
$region0: #{tpu_custom_call.1}
  #allocation0 [shape = 'u32[]', space=smem, size = 0x4, offset = 0x4, fixed_abs, tag = 'smem constant byte address 0x4 - core index']
  #allocation1 [shape = 'u32[144,128]{1,0:T(1,128)}', space=vmem, size = 0x12000, scoped, tag = 'internal scratch']
  %s0 = inlined_call_operand.vmem [shape: f32[256,5], index: 0, kind: input, shape index: {}]
  %s1 = inlined_call_operand.vmem [shape: f32[8,128], index: 1, kind: input, shape index: {}]
  %s2 = inlined_call_operand.hbm [shape: f32[5,128,128], index: 2, kind: input, shape index: {}]
  %s3 = inlined_call_operand.vmem [shape: f32[4,128], index: 3, kind: input, shape index: {}]
  %s4 = inlined_call_operand.hbm [shape: f32[256,128], index: 4, kind: output, shape index: {}]
  %s5 = sld [smem:[#allocation0]]
  $region53: #{tpu_custom_call.1} parent=0
    _
  %s7 = ssub.s32 1, %s5
  %s8 = scalar_select 0, %s7, %s5
  $region1: #{tpu_custom_call.1} parent=0
    #allocation2 [shape = 'u8[327680]{0}', space=vmem, size = 0x50000, scoped, tag = 'input window, operand 2, single buffered']
    #allocation3 [shape = 's32[2]{0}', space=sflag, size = 0x8, scoped, tag = 'scoped memory for tpu_custom_call.1']
    #allocation4 [shape = 's32[2]{0}', space=sflag, size = 0x8, scoped, tag = 'scoped memory for tpu_custom_call.1']
    #allocation5 [shape = 'u8[131072]{0}', space=vmem, size = 0x20000, scoped, tag = 'output window, operand 0']
    %9 = vsyncpa [#allocation3], 0
    %10 = vsyncpa [#allocation4], 0
    %s11 = scalar_lea.sflag [#allocation4], 1
    %12 = vsyncpa %s11, 0
    loop: start=0, step=1, limit=4
    $region2: #{tpu_custom_call.1} parent=1 // loop_pre_header
      _
    $region3: #{tpu_custom_call.1} parent=1 // loop_header
      %s14 = sphi 0, %s18
      %p15 = scmp.ge.s32.totalorder %s14, 4
      %s24 = sphi 0, %s26
      %s27 = sphi 0, %s24
      %s28 = sphi 0, %s27
      %s44 = sphi 0, %s28
      %s48 = sphi 0, %s48
      %s50 = sphi 0, %s48
      %s51 = sphi 0, %s50
      %s65 = sphi 0, %s51
      %s69 = sphi 0, %s69
      %s71 = sphi 0, %s69
      %s72 = sphi 0, %s71
      %s86 = sphi 0, %s72
      %s90 = sphi 0, %s90
      %s92 = sphi 0, %s90
      %s93 = sphi 0, %s92
      %s107 = sphi 0, %s93
      %s113 = sphi 0, %s115
      %s116 = sphi 0, %s113
      %s117 = sphi 0, %s116
      %s133 = sphi 0, %s117
    $region4: #{tpu_custom_call.1} parent=1 // loop_header_branch
      %17 = sbr.rel (%p15) target = $region8
    $region5: #{tpu_custom_call.1} parent=1 // loop_body
      %s19 = ssub.s32 %s14, 1
      %s20 = ssub.s32 %s14, 2
      %s21 = sadd.s32 %s14, 1
      %s22 = ssub.s32 %s14, %s21
      %p23 = scmp.eq.s32.totalorder %s22, 0
      %s25 = sadd.s32 %s24, 1
      %s26 = scalar_select %p23, %s24, %s25
      %p29 = pneg %p23
      %p30 = scmp.eq.s32.totalorder %s14, 1
      %p31 = por %p29, %p30
      %p32 = scmp.ne.s32.totalorder %s24, %s27
      %p33 = scmp.eq.s32.totalorder %s14, 0
      %p34 = por %p32, %p33
      %p35 = scmp.ne.s32.totalorder %s24, %s27
      %p36 = scmp.eq.s32.totalorder %s19, 1
      %p37 = por %p35, %p36
      %p38 = scmp.ne.s32.totalorder %s27, %s28
      %p39 = scmp.eq.s32.totalorder %s19, 0
      %p40 = por %p38, %p39
      %p41 = scmp.ne.s32.totalorder %s27, %s28
      %p42 = scmp.eq.s32.totalorder %s20, 1
      %p43 = por %p41, %p42
      %p45 = scmp.ne.s32.totalorder %s28, %s44
      %p46 = scmp.eq.s32.totalorder %s20, 0
      %p47 = por %p45, %p46
      %s49 = sadd.s32 %s48, 1
      %p52 = scmp.eq.s32.totalorder %s14, 1
      %p53 = scmp.ne.s32.totalorder %s48, %s50
      %p54 = scmp.eq.s32.totalorder %s14, 0
      %p55 = por %p53, %p54
      %p56 = scmp.ne.s32.totalorder %s48, %s50
      %p57 = scmp.eq.s32.totalorder %s19, 1
      %p58 = por %p56, %p57
      %p59 = scmp.ne.s32.totalorder %s50, %s51
      %p60 = scmp.eq.s32.totalorder %s19, 0
      %p61 = por %p59, %p60
      %p62 = scmp.ne.s32.totalorder %s50, %s51
      %p63 = scmp.eq.s32.totalorder %s20, 1
      %p64 = por %p62, %p63
      %p66 = scmp.ne.s32.totalorder %s51, %s65
      %p67 = scmp.eq.s32.totalorder %s20, 0
      %p68 = por %p66, %p67
      %s70 = sadd.s32 %s69, 1
      %p73 = scmp.eq.s32.totalorder %s14, 1
      %p74 = scmp.ne.s32.totalorder %s69, %s71
      %p75 = scmp.eq.s32.totalorder %s14, 0
      %p76 = por %p74, %p75
      %p77 = scmp.ne.s32.totalorder %s69, %s71
      %p78 = scmp.eq.s32.totalorder %s19, 1
      %p79 = por %p77, %p78
      %p80 = scmp.ne.s32.totalorder %s71, %s72
      %p81 = scmp.eq.s32.totalorder %s19, 0
      %p82 = por %p80, %p81
      %p83 = scmp.ne.s32.totalorder %s71, %s72
      %p84 = scmp.eq.s32.totalorder %s20, 1
      %p85 = por %p83, %p84
      %p87 = scmp.ne.s32.totalorder %s72, %s86
      %p88 = scmp.eq.s32.totalorder %s20, 0
      %p89 = por %p87, %p88
      %s91 = sadd.s32 %s90, 1
      %p94 = scmp.eq.s32.totalorder %s14, 1
      %p95 = scmp.ne.s32.totalorder %s90, %s92
      %p96 = scmp.eq.s32.totalorder %s14, 0
      %p97 = por %p95, %p96
      %p98 = scmp.ne.s32.totalorder %s90, %s92
      %p99 = scmp.eq.s32.totalorder %s19, 1
      %p100 = por %p98, %p99
      %p101 = scmp.ne.s32.totalorder %s92, %s93
      %p102 = scmp.eq.s32.totalorder %s19, 0
      %p103 = por %p101, %p102
      %p104 = scmp.ne.s32.totalorder %s92, %s93
      %p105 = scmp.eq.s32.totalorder %s20, 1
      %p106 = por %p104, %p105
      %p108 = scmp.ne.s32.totalorder %s93, %s107
      %p109 = scmp.eq.s32.totalorder %s20, 0
      %p110 = por %p108, %p109
      %s111 = ssub.s32 %s14, %s21
      %p112 = scmp.eq.s32.totalorder %s111, 0
      %s114 = sadd.s32 %s113, 1
      %s115 = scalar_select %p112, %s113, %s114
      %p118 = pneg %p112
      %p119 = scmp.eq.s32.totalorder %s14, 1
      %p120 = por %p118, %p119
      %p121 = scmp.ne.s32.totalorder %s113, %s116
      %p122 = scmp.eq.s32.totalorder %s14, 0
      %p123 = por %p121, %p122
      %p124 = scmp.ne.s32.totalorder %s113, %s116
      %p125 = scmp.eq.s32.totalorder %s19, 1
      %p126 = por %p124, %p125
      %p127 = scmp.ne.s32.totalorder %s116, %s117
      %p128 = scmp.eq.s32.totalorder %s19, 0
      %p129 = por %p127, %p128
      %p130 = scmp.ne.s32.totalorder %s116, %s117
      %p131 = scmp.eq.s32.totalorder %s20, 1
      %p132 = por %p130, %p131
      %p134 = scmp.ne.s32.totalorder %s117, %s133
      %p135 = scmp.eq.s32.totalorder %s20, 0
      %p136 = por %p134, %p135
      %p137 = scmp.le.s32.totalorder 1, %s14
      %p138 = scmp.lt.s32.totalorder %s14, 3
      %p139 = pnand %p137, %p138
      %p140 = pneg %p139
      // Predicated region
      $region9: #{tpu_custom_call.1} parent=5 // pred_check
        _
      $region10: #{tpu_custom_call.1} parent=5 // pred_check_branch
        %142 = sbr.rel (%p139) target = $region12
      $region11: #{tpu_custom_call.1} parent=5 // pred_region
        %s143 = ssub.s32 %s14, 1
        // Predicated region
        $region13: #{tpu_custom_call.1} parent=11 // pred_check
          %p144 = pneg %p61
        $region14: #{tpu_custom_call.1} parent=11 // pred_check_branch
          %146 = sbr.rel (%p144) target = $region16
        $region15: #{tpu_custom_call.1} parent=11 // pred_region
          _
        $region16: #{tpu_custom_call.1} parent=11 // pred_fallthru
          _
        // Predicated region
        $region17: #{tpu_custom_call.1} parent=11 // pred_check
          %p147 = pneg %p82
        $region18: #{tpu_custom_call.1} parent=11 // pred_check_branch
          %149 = sbr.rel (%p147) target = $region20
        $region19: #{tpu_custom_call.1} parent=11 // pred_region
          %s151 = ssub.s32 10240, 10240
          %152 = vsyncadd [#allocation3], %s151
          %s153 = sshll.u32 [#allocation2], 4
          %s154 = int_to_ptr.vmem [resolvable:$true] %s153
          %159 = dma.hbm_to_vmem [thread:$0]  %s2, 10240, %s154, [#allocation3], 128, 128, 8
        $region20: #{tpu_custom_call.1} parent=11 // pred_fallthru
          _
        // Predicated region
        $region21: #{tpu_custom_call.1} parent=11 // pred_check
          %p160 = pneg %p103
        $region22: #{tpu_custom_call.1} parent=11 // pred_check_branch
          %162 = sbr.rel (%p160) target = $region24
        $region23: #{tpu_custom_call.1} parent=11 // pred_region
          _
        $region24: #{tpu_custom_call.1} parent=11 // pred_fallthru
          _
      $region12: #{tpu_custom_call.1} parent=5 // pred_fallthru
        _
      %p163 = scmp.lt.s32.totalorder %s14, 2
      // Predicated region
      $region25: #{tpu_custom_call.1} parent=5 // pred_check
        %p164 = pneg %p163
      $region26: #{tpu_custom_call.1} parent=5 // pred_check_branch
        %166 = sbr.rel (%p164) target = $region28
      $region27: #{tpu_custom_call.1} parent=5 // pred_region
        // Predicated region
        $region29: #{tpu_custom_call.1} parent=27 // pred_check
          %p167 = pneg %p34
        $region30: #{tpu_custom_call.1} parent=27 // pred_check_branch
          %169 = sbr.rel (%p167) target = $region32
        $region31: #{tpu_custom_call.1} parent=27 // pred_region
          %s170 = smul.u32 16, %s14
          %p171 = scmp.lt.s32.totalorder %s170, 31
          %s172 = scalar_select %p171, %s170, 31
          %s173 = smul.addr %s172, 8
          %s174 = scalar_lea.vmem %s0, %s173
          %s175 = smul.u32 16, %s14
        $region32: #{tpu_custom_call.1} parent=27 // pred_fallthru
          _
      $region28: #{tpu_custom_call.1} parent=5 // pred_fallthru
        _
      %p176 = scmp.le.s32.totalorder 1, %s14
      %p177 = scmp.lt.s32.totalorder %s14, 3
      %p178 = pnand %p176, %p177
      %p179 = pneg %p178
      // Predicated region
      $region33: #{tpu_custom_call.1} parent=5 // pred_check
        _
      $region34: #{tpu_custom_call.1} parent=5 // pred_check_branch
        %181 = sbr.rel (%p178) target = $region36
      $region35: #{tpu_custom_call.1} parent=5 // pred_region
        %s182 = ssub.s32 %s14, 1
        // Predicated region
        $region37: #{tpu_custom_call.1} parent=35 // pred_check
          %p183 = pneg %p82
        $region38: #{tpu_custom_call.1} parent=35 // pred_check_branch
          %185 = sbr.rel (%p183) target = $region40
        $region39: #{tpu_custom_call.1} parent=35 // pred_region
          %186 = dma.done [#allocation3], 10240
        $region40: #{tpu_custom_call.1} parent=35 // pred_fallthru
          _
        %s187 = smul.u32 16, %s19
        %p188 = scmp.lt.s32.totalorder %s187, 31
        %s189 = scalar_select %p188, %s187, 31
        %s190 = smul.addr %s189, 8
        %s191 = scalar_lea.vmem %s0, %s190
        %p192 = pneg %p40
        %p193 = pneg %p37
        %p194 = pneg %p61
        %p195 = pneg %p58
        %p196 = pneg %p82
        %p197 = pneg %p79
        %p198 = pneg %p103
        %p199 = pneg %p100
        %p200 = pneg %p129
        %p201 = pneg %p126
        %s202 = sand.u32 %s116, 1
        %s203 = scalar_lea.sflag [#allocation4], %s202
        %s204 = sand.u32 %s116, 1
        %s205 = smul.addr %s204, 128
        %s206 = scalar_lea.vmem [#allocation5], %s205
        %s207 = smul.u32 16, %s19
        %p208 = scmp.lt.s32.totalorder %s207, 31
        %s209 = scalar_select %p208, %s207, 31
        %s210 = smul.addr %s209, 8
        %s211 = scalar_lea.vmem %s0, %s210
        %s212 = smul.u32 16, %s19
        %s213 = smul.u32 16, %s19
        %v214 = vld [vmem:[%s211] sm:$0xff]
        %v215 = vld [vmem:[%s211 + $0x8] sm:$0xff]
        %v216 = vld [vmem:[%s211 + $0x10] sm:$0xff]
        %v217 = vld [vmem:[%s211 + $0x18] sm:$0xff]
        %v218 = vld [vmem:[%s211 + $0x20] sm:$0xff]
        %v219 = vld [vmem:[%s211 + $0x28] sm:$0xff]
        %v220 = vld [vmem:[%s211 + $0x30] sm:$0xff]
        %v221 = vld [vmem:[%s211 + $0x38] sm:$0xff]
        %v222 = vld [vmem:[%s211 + $0x40] sm:$0xff]
        %v223 = vld [vmem:[%s211 + $0x48] sm:$0xff]
        %v224 = vld [vmem:[%s211 + $0x50] sm:$0xff]
        %v225 = vld [vmem:[%s211 + $0x58] sm:$0xff]
        %v226 = vld [vmem:[%s211 + $0x60] sm:$0xff]
        %v227 = vld [vmem:[%s211 + $0x68] sm:$0xff]
        %v228 = vld [vmem:[%s211 + $0x70] sm:$0xff]
        %v229 = vld [vmem:[%s211 + $0x78] sm:$0xff]
        %v230 = vld [vmem:[%s1] sm:$0x1]
        %v231 = vld [vmem:[%s1 + $0x1] sm:$0x1]
        %v232 = vld [vmem:[%s1 + $0x2] sm:$0x1]
        %v233 = vld [vmem:[%s1 + $0x3] sm:$0x1]
        %v234 = vld [vmem:[%s1 + $0x4] sm:$0x1]
        %v235 = vld [vmem:[%s1 + $0x5] sm:$0x1]
        %v236 = vld [vmem:[%s1 + $0x6] sm:$0x1]
        %v237 = vld [vmem:[%s1 + $0x7] sm:$0x1]
        %v238 = vlaneseq
        %v239 = vshrl.u32 %v238, 7
        %v240 = vsub.s32 0, %v239
        %v241 = vrot.slane %v230, %v240
        %243 = vset.pattern.permute.xlu0 0
        %244 = vperm.xlu0 %243, %v214
        %v245 = vpop.permute.xlu0 %244
        %248 = vset.pattern.permute.xlu0 0
        %249 = vperm.xlu0 %248, %v215
        %v250 = vpop.permute.xlu0 %249
        %253 = vset.pattern.permute.xlu0 0
        %254 = vperm.xlu0 %253, %v216
        %v255 = vpop.permute.xlu0 %254
        %258 = vset.pattern.permute.xlu0 0
        %259 = vperm.xlu0 %258, %v217
        %v260 = vpop.permute.xlu0 %259
        %263 = vset.pattern.permute.xlu0 0
        %264 = vperm.xlu0 %263, %v218
        %v265 = vpop.permute.xlu0 %264
        %268 = vset.pattern.permute.xlu0 0
        %269 = vperm.xlu0 %268, %v219
        %v270 = vpop.permute.xlu0 %269
        %273 = vset.pattern.permute.xlu0 0
        %274 = vperm.xlu0 %273, %v220
        %v275 = vpop.permute.xlu0 %274
        %278 = vset.pattern.permute.xlu0 0
        %279 = vperm.xlu0 %278, %v221
        %v280 = vpop.permute.xlu0 %279
        %283 = vset.pattern.permute.xlu0 0
        %284 = vperm.xlu0 %283, %v222
        %v285 = vpop.permute.xlu0 %284
        %288 = vset.pattern.permute.xlu0 0
        %289 = vperm.xlu0 %288, %v223
        %v290 = vpop.permute.xlu0 %289
        %293 = vset.pattern.permute.xlu0 0
        %294 = vperm.xlu0 %293, %v224
        %v295 = vpop.permute.xlu0 %294
        %298 = vset.pattern.permute.xlu0 0
        %299 = vperm.xlu0 %298, %v225
        %v300 = vpop.permute.xlu0 %299
        %303 = vset.pattern.permute.xlu0 0
        %304 = vperm.xlu0 %303, %v226
        %v305 = vpop.permute.xlu0 %304
        %308 = vset.pattern.permute.xlu0 0
        %309 = vperm.xlu0 %308, %v227
        %v310 = vpop.permute.xlu0 %309
        %313 = vset.pattern.permute.xlu0 0
        %314 = vperm.xlu0 %313, %v228
        %v315 = vpop.permute.xlu0 %314
        %318 = vset.pattern.permute.xlu0 0
        %319 = vperm.xlu0 %318, %v229
        %v320 = vpop.permute.xlu0 %319
        %v322 = vmul.f32 %v241, %v245
        %v323 = vmul.f32 %v241, %v250
        %v324 = vmul.f32 %v241, %v255
        %v325 = vmul.f32 %v241, %v260
        %v326 = vmul.f32 %v241, %v265
        %v327 = vmul.f32 %v241, %v270
        %v328 = vmul.f32 %v241, %v275
        %v329 = vmul.f32 %v241, %v280
        %v330 = vmul.f32 %v241, %v285
        %v331 = vmul.f32 %v241, %v290
        %v332 = vmul.f32 %v241, %v295
        %v333 = vmul.f32 %v241, %v300
        %v334 = vmul.f32 %v241, %v305
        %v335 = vmul.f32 %v241, %v310
        %v336 = vmul.f32 %v241, %v315
        %v337 = vmul.f32 %v241, %v320
        %v338 = vlaneseq
        %v339 = vshrl.u32 %v338, 7
        %v340 = vsub.s32 0, %v339
        %v341 = vrot.slane %v231, %v340
        %v342 = vadd.f32 %v322, %v341
        %v343 = vadd.f32 %v323, %v341
        %v344 = vadd.f32 %v324, %v341
        %v345 = vadd.f32 %v325, %v341
        %v346 = vadd.f32 %v326, %v341
        %v347 = vadd.f32 %v327, %v341
        %v348 = vadd.f32 %v328, %v341
        %v349 = vadd.f32 %v329, %v341
        %v350 = vadd.f32 %v330, %v341
        %v351 = vadd.f32 %v331, %v341
        %v352 = vadd.f32 %v332, %v341
        %v353 = vadd.f32 %v333, %v341
        %v354 = vadd.f32 %v334, %v341
        %v355 = vadd.f32 %v335, %v341
        %v356 = vadd.f32 %v336, %v341
        %v357 = vadd.f32 %v337, %v341
        %v358 = vand.u32 2147483647, %v342
        %vm359 = vcmp.le.f32.partialorder %v358, 0.7853982
        %vm360 = vcmp.lt.s32.totalorder %v342, 0
        %v361 = vand.u32 %v342, 2139095040
        %v362 = vshrl.u32 %v361, 23
        %v363 = vsub.s32 %v362, 127
        %v364 = vand.u32 2147483647, %v342
        %v365 = vand.u32 %v364, 8388607
        %v366 = vor.u32 %v365, 8388608
        %v367 = vsub.s32 0, %v366
        %v368 = vadd.s32 %v363, 1
        %vm369 = vcmp.gt.s32.totalorder %v368, 0
        %v370 = vsel %vm369, %v368, 0
        %v371 = vshrl.u32 %v370, 5
        %v372 = vand.u32 %v370, 31
        %v373 = vsub.s32 32, %v372
        %v374 = vshrl.u32 683565275, %v373
        %v375 = vshll.u32 683565275, %v372
        %v376 = vshrl.u32 2475754826, %v373
        %v377 = vor.u32 %v375, %v376
        %v378 = vshll.u32 2475754826, %v372
        %v379 = vshrl.u32 2131351028, %v373
        %v380 = vor.u32 %v378, %v379
        %v381 = vshll.u32 2131351028, %v372
        %v382 = vshrl.u32 2102212464, %v373
        %v383 = vor.u32 %v381, %v382
        %v384 = vshll.u32 2102212464, %v372
        %v385 = vshrl.u32 920167782, %v373
        %v386 = vor.u32 %v384, %v385
        %v387 = vshll.u32 920167782, %v372
        %v388 = vshrl.u32 1326507024, %v373
        %v389 = vor.u32 %v387, %v388
        %vm390 = vcmp.lt.s32.totalorder %v371, 1
        %vm391 = vcmp.lt.s32.totalorder %v371, 2
        %vm392 = vcmp.lt.s32.totalorder %v371, 3
        %vm393 = vcmp.lt.s32.totalorder %v371, 4
        %v394 = vsel %vm390, %v374, %v377
        %v395 = vsel %vm393, %v383, 2102212464
        %v396 = vsel %vm392, %v380, %v395
        %v397 = vsel %vm391, %v394, %v396
        %v398 = vsel %vm390, %v377, %v380
        %v399 = vsel %vm393, %v386, 920167782
        %v400 = vsel %vm392, %v383, %v399
        %v401 = vsel %vm391, %v398, %v400
        %v402 = vsel %vm390, %v380, %v383
        %v403 = vsel %vm393, %v389, 1326507024
        %v404 = vsel %vm392, %v386, %v403
        %v405 = vsel %vm391, %v402, %v404
        %v406 = vshll.u32 %v366, 8
        %v407 = vmul.u32.u64.compose %v406, %v405
        %v408 = vextract.low.u32 %v407
        %v409 = vextract.high.u32 %v407
        %v410 = vmul.u32.u64.compose %v406, %v401
        %v411 = vextract.low.u32 %v410
        %v412 = vextract.high.u32 %v410
        %v413 = vmul.u32 %v406, %v397
        %v414 = vadd.s32 %v409, %v411
        %vm415 = vc.u32 %v409, %v411
        %v416 = vadd.s32 %v412, 1
        %v417 = vsel %vm415, %v416, %v412
        %v418 = vadd.s32 %v413, %v417
        %v419 = vadd.s32 %v418, 536870912
        %v420 = vshrl.u32 %v419, 30
        %v421 = vshll.u32 %v420, 30
        %v422 = vsub.s32 %v418, %v421
        %vm423 = vcmp.lt.s32.totalorder %v422, 0
        %v424 = vsub.s32 0, %v422
        %v425 = vsel %vm423, %v424, %v422
        %v426 = vclz %v425
        %v427 = vsub.s32 %v426, 2
        %vm428 = vcmp.gt.s32.totalorder 0, %v427
        %v429 = vsel %vm428, 0, %v427
        %v430 = vsub.s32 32, %v429
        %v431 = vshll.u32 %v422, %v429
        %v432 = vshrl.u32 %v414, %v430
        %v433 = vor.u32 %v431, %v432
        %v434 = vsub.s32 4294967266, %v429
        %v435 = vadd.s32 %v434, 127
        %v436 = vshll.u32 %v435, 23
        %v437 = vor.u32 4788187, %v436
        %v438 = vand.u32 2147483647, %v437
        %v440 = vcvt.s32.f32 %v433
        %v441 = vmul.f32 %v440, %v438
        %v442 = vxor.u32 %v441, 2147483648
        %v443 = vsel %vm360, %v442, %v441
        %v444 = vsub.s32 4, %v420
        %v445 = vsel %vm360, %v444, %v420
        %v446 = vsel %vm359, %v342, %v443
        %v447 = vsel %vm359, 0, %v445
        %v448 = vcosq.f32.pop %v446
        %v449 = vsinq.f32.pop %v446
        %vm450 = vweird.f32 %v342
        %v451 = vadd.s32 %v447, 3
        %v452 = vand.u32 %v451, 3
        %vm453 = vcmp.lt.s32.totalorder %v452, 2
        %vm454 = vcmp.eq.s32.totalorder %v452, 0
        %v455 = vxor.u32 %v449, 2147483648
        %v456 = vsel %vm454, %v448, %v455
        %vm457 = vcmp.eq.s32.totalorder %v452, 2
        %v458 = vxor.u32 %v448, 2147483648
        %v459 = vsel %vm457, %v458, %v449
        %v460 = vsel %vm453, %v456, %v459
        %v461 = vsel %vm450, nan, %v460
        %v462 = vand.u32 2147483647, %v343
        %vm463 = vcmp.le.f32.partialorder %v462, 0.7853982
        %vm464 = vcmp.lt.s32.totalorder %v343, 0
        %v465 = vand.u32 %v343, 2139095040
        %v466 = vshrl.u32 %v465, 23
        %v467 = vsub.s32 %v466, 127
        %v468 = vand.u32 2147483647, %v343
        %v469 = vand.u32 %v468, 8388607
        %v470 = vor.u32 %v469, 8388608
        %v471 = vsub.s32 0, %v470
        %v472 = vadd.s32 %v467, 1
        %vm473 = vcmp.gt.s32.totalorder %v472, 0
        %v474 = vsel %vm473, %v472, 0
        %v475 = vshrl.u32 %v474, 5
        %v476 = vand.u32 %v474, 31
        %v477 = vsub.s32 32, %v476
        %v478 = vshrl.u32 683565275, %v477
        %v479 = vshll.u32 683565275, %v476
        %v480 = vshrl.u32 2475754826, %v477
        %v481 = vor.u32 %v479, %v480
        %v482 = vshll.u32 2475754826, %v476
        %v483 = vshrl.u32 2131351028, %v477
        %v484 = vor.u32 %v482, %v483
        %v485 = vshll.u32 2131351028, %v476
        %v486 = vshrl.u32 2102212464, %v477
        %v487 = vor.u32 %v485, %v486
        %v488 = vshll.u32 2102212464, %v476
        %v489 = vshrl.u32 920167782, %v477
        %v490 = vor.u32 %v488, %v489
        %v491 = vshll.u32 920167782, %v476
        %v492 = vshrl.u32 1326507024, %v477
        %v493 = vor.u32 %v491, %v492
        %vm494 = vcmp.lt.s32.totalorder %v475, 1
        %vm495 = vcmp.lt.s32.totalorder %v475, 2
        %vm496 = vcmp.lt.s32.totalorder %v475, 3
        %vm497 = vcmp.lt.s32.totalorder %v475, 4
        %v498 = vsel %vm494, %v478, %v481
        %v499 = vsel %vm497, %v487, 2102212464
        %v500 = vsel %vm496, %v484, %v499
        %v501 = vsel %vm495, %v498, %v500
        %v502 = vsel %vm494, %v481, %v484
        %v503 = vsel %vm497, %v490, 920167782
        %v504 = vsel %vm496, %v487, %v503
        %v505 = vsel %vm495, %v502, %v504
        %v506 = vsel %vm494, %v484, %v487
        %v507 = vsel %vm497, %v493, 1326507024
        %v508 = vsel %vm496, %v490, %v507
        %v509 = vsel %vm495, %v506, %v508
        %v510 = vshll.u32 %v470, 8
        %v511 = vmul.u32.u64.compose %v510, %v509
        %v512 = vextract.low.u32 %v511
        %v513 = vextract.high.u32 %v511
        %v514 = vmul.u32.u64.compose %v510, %v505
        %v515 = vextract.low.u32 %v514
        %v516 = vextract.high.u32 %v514
        %v517 = vmul.u32 %v510, %v501
        %v518 = vadd.s32 %v513, %v515
        %vm519 = vc.u32 %v513, %v515
        %v520 = vadd.s32 %v516, 1
        %v521 = vsel %vm519, %v520, %v516
        %v522 = vadd.s32 %v517, %v521
        %v523 = vadd.s32 %v522, 536870912
        %v524 = vshrl.u32 %v523, 30
        %v525 = vshll.u32 %v524, 30
        %v526 = vsub.s32 %v522, %v525
        %vm527 = vcmp.lt.s32.totalorder %v526, 0
        %v528 = vsub.s32 0, %v526
        %v529 = vsel %vm527, %v528, %v526
        %v530 = vclz %v529
        %v531 = vsub.s32 %v530, 2
        %vm532 = vcmp.gt.s32.totalorder 0, %v531
        %v533 = vsel %vm532, 0, %v531
        %v534 = vsub.s32 32, %v533
        %v535 = vshll.u32 %v526, %v533
        %v536 = vshrl.u32 %v518, %v534
        %v537 = vor.u32 %v535, %v536
        %v538 = vsub.s32 4294967266, %v533
        %v539 = vadd.s32 %v538, 127
        %v540 = vshll.u32 %v539, 23
        %v541 = vor.u32 4788187, %v540
        %v542 = vand.u32 2147483647, %v541
        %v544 = vcvt.s32.f32 %v537
        %v545 = vmul.f32 %v544, %v542
        %v546 = vxor.u32 %v545, 2147483648
        %v547 = vsel %vm464, %v546, %v545
        %v548 = vsub.s32 4, %v524
        %v549 = vsel %vm464, %v548, %v524
        %v550 = vsel %vm463, %v343, %v547
        %v551 = vsel %vm463, 0, %v549
        %v552 = vcosq.f32.pop %v550
        %v553 = vsinq.f32.pop %v550
        %vm554 = vweird.f32 %v343
        %v555 = vadd.s32 %v551, 3
        %v556 = vand.u32 %v555, 3
        %vm557 = vcmp.lt.s32.totalorder %v556, 2
        %vm558 = vcmp.eq.s32.totalorder %v556, 0
        %v559 = vxor.u32 %v553, 2147483648
        %v560 = vsel %vm558, %v552, %v559
        %vm561 = vcmp.eq.s32.totalorder %v556, 2
        %v562 = vxor.u32 %v552, 2147483648
        %v563 = vsel %vm561, %v562, %v553
        %v564 = vsel %vm557, %v560, %v563
        %v565 = vsel %vm554, nan, %v564
        %v566 = vand.u32 2147483647, %v344
        %vm567 = vcmp.le.f32.partialorder %v566, 0.7853982
        %vm568 = vcmp.lt.s32.totalorder %v344, 0
        %v569 = vand.u32 %v344, 2139095040
        %v570 = vshrl.u32 %v569, 23
        %v571 = vsub.s32 %v570, 127
        %v572 = vand.u32 2147483647, %v344
        %v573 = vand.u32 %v572, 8388607
        %v574 = vor.u32 %v573, 8388608
        %v575 = vsub.s32 0, %v574
        %v576 = vadd.s32 %v571, 1
        %vm577 = vcmp.gt.s32.totalorder %v576, 0
        %v578 = vsel %vm577, %v576, 0
        %v579 = vshrl.u32 %v578, 5
        %v580 = vand.u32 %v578, 31
        %v581 = vsub.s32 32, %v580
        %v582 = vshrl.u32 683565275, %v581
        %v583 = vshll.u32 683565275, %v580
        %v584 = vshrl.u32 2475754826, %v581
        %v585 = vor.u32 %v583, %v584
        %v586 = vshll.u32 2475754826, %v580
        %v587 = vshrl.u32 2131351028, %v581
        %v588 = vor.u32 %v586, %v587
        %v589 = vshll.u32 2131351028, %v580
        %v590 = vshrl.u32 2102212464, %v581
        %v591 = vor.u32 %v589, %v590
        %v592 = vshll.u32 2102212464, %v580
        %v593 = vshrl.u32 920167782, %v581
        %v594 = vor.u32 %v592, %v593
        %v595 = vshll.u32 920167782, %v580
        %v596 = vshrl.u32 1326507024, %v581
        %v597 = vor.u32 %v595, %v596
        %vm598 = vcmp.lt.s32.totalorder %v579, 1
        %vm599 = vcmp.lt.s32.totalorder %v579, 2
        %vm600 = vcmp.lt.s32.totalorder %v579, 3
        %vm601 = vcmp.lt.s32.totalorder %v579, 4
        %v602 = vsel %vm598, %v582, %v585
        %v603 = vsel %vm601, %v591, 2102212464
        %v604 = vsel %vm600, %v588, %v603
        %v605 = vsel %vm599, %v602, %v604
        %v606 = vsel %vm598, %v585, %v588
        %v607 = vsel %vm601, %v594, 920167782
        %v608 = vsel %vm600, %v591, %v607
        %v609 = vsel %vm599, %v606, %v608
        %v610 = vsel %vm598, %v588, %v591
        %v611 = vsel %vm601, %v597, 1326507024
        %v612 = vsel %vm600, %v594, %v611
        %v613 = vsel %vm599, %v610, %v612
        %v614 = vshll.u32 %v574, 8
        %v615 = vmul.u32.u64.compose %v614, %v613
        %v616 = vextract.low.u32 %v615
        %v617 = vextract.high.u32 %v615
        %v618 = vmul.u32.u64.compose %v614, %v609
        %v619 = vextract.low.u32 %v618
        %v620 = vextract.high.u32 %v618
        %v621 = vmul.u32 %v614, %v605
        %v622 = vadd.s32 %v617, %v619
        %vm623 = vc.u32 %v617, %v619
        %v624 = vadd.s32 %v620, 1
        %v625 = vsel %vm623, %v624, %v620
        %v626 = vadd.s32 %v621, %v625
        %v627 = vadd.s32 %v626, 536870912
        %v628 = vshrl.u32 %v627, 30
        %v629 = vshll.u32 %v628, 30
        %v630 = vsub.s32 %v626, %v629
        %vm631 = vcmp.lt.s32.totalorder %v630, 0
        %v632 = vsub.s32 0, %v630
        %v633 = vsel %vm631, %v632, %v630
        %v634 = vclz %v633
        %v635 = vsub.s32 %v634, 2
        %vm636 = vcmp.gt.s32.totalorder 0, %v635
        %v637 = vsel %vm636, 0, %v635
        %v638 = vsub.s32 32, %v637
        %v639 = vshll.u32 %v630, %v637
        %v640 = vshrl.u32 %v622, %v638
        %v641 = vor.u32 %v639, %v640
        %v642 = vsub.s32 4294967266, %v637
        %v643 = vadd.s32 %v642, 127
        %v644 = vshll.u32 %v643, 23
        %v645 = vor.u32 4788187, %v644
        %v646 = vand.u32 2147483647, %v645
        %v648 = vcvt.s32.f32 %v641
        %v649 = vmul.f32 %v648, %v646
        %v650 = vxor.u32 %v649, 2147483648
        %v651 = vsel %vm568, %v650, %v649
        %v652 = vsub.s32 4, %v628
        %v653 = vsel %vm568, %v652, %v628
        %v654 = vsel %vm567, %v344, %v651
        %v655 = vsel %vm567, 0, %v653
        %v656 = vcosq.f32.pop %v654
        %v657 = vsinq.f32.pop %v654
        %vm658 = vweird.f32 %v344
        %v659 = vadd.s32 %v655, 3
        %v660 = vand.u32 %v659, 3
        %vm661 = vcmp.lt.s32.totalorder %v660, 2
        %vm662 = vcmp.eq.s32.totalorder %v660, 0
        %v663 = vxor.u32 %v657, 2147483648
        %v664 = vsel %vm662, %v656, %v663
        %vm665 = vcmp.eq.s32.totalorder %v660, 2
        %v666 = vxor.u32 %v656, 2147483648
        %v667 = vsel %vm665, %v666, %v657
        %v668 = vsel %vm661, %v664, %v667
        %v669 = vsel %vm658, nan, %v668
        %v670 = vand.u32 2147483647, %v345
        %vm671 = vcmp.le.f32.partialorder %v670, 0.7853982
        %vm672 = vcmp.lt.s32.totalorder %v345, 0
        %v673 = vand.u32 %v345, 2139095040
        %v674 = vshrl.u32 %v673, 23
        %v675 = vsub.s32 %v674, 127
        %v676 = vand.u32 2147483647, %v345
        %v677 = vand.u32 %v676, 8388607
        %v678 = vor.u32 %v677, 8388608
        %v679 = vsub.s32 0, %v678
        %v680 = vadd.s32 %v675, 1
        %vm681 = vcmp.gt.s32.totalorder %v680, 0
        %v682 = vsel %vm681, %v680, 0
        %v683 = vshrl.u32 %v682, 5
        %v684 = vand.u32 %v682, 31
        %v685 = vsub.s32 32, %v684
        %v686 = vshrl.u32 683565275, %v685
        %v687 = vshll.u32 683565275, %v684
        %v688 = vshrl.u32 2475754826, %v685
        %v689 = vor.u32 %v687, %v688
        %v690 = vshll.u32 2475754826, %v684
        %v691 = vshrl.u32 2131351028, %v685
        %v692 = vor.u32 %v690, %v691
        %v693 = vshll.u32 2131351028, %v684
        %v694 = vshrl.u32 2102212464, %v685
        %v695 = vor.u32 %v693, %v694
        %v696 = vshll.u32 2102212464, %v684
        %v697 = vshrl.u32 920167782, %v685
        %v698 = vor.u32 %v696, %v697
        %v699 = vshll.u32 920167782, %v684
        %v700 = vshrl.u32 1326507024, %v685
        %v701 = vor.u32 %v699, %v700
        %vm702 = vcmp.lt.s32.totalorder %v683, 1
        %vm703 = vcmp.lt.s32.totalorder %v683, 2
        %vm704 = vcmp.lt.s32.totalorder %v683, 3
        %vm705 = vcmp.lt.s32.totalorder %v683, 4
        %v706 = vsel %vm702, %v686, %v689
        %v707 = vsel %vm705, %v695, 2102212464
        %v708 = vsel %vm704, %v692, %v707
        %v709 = vsel %vm703, %v706, %v708
        %v710 = vsel %vm702, %v689, %v692
        %v711 = vsel %vm705, %v698, 920167782
        %v712 = vsel %vm704, %v695, %v711
        %v713 = vsel %vm703, %v710, %v712
        %v714 = vsel %vm702, %v692, %v695
        %v715 = vsel %vm705, %v701, 1326507024
        %v716 = vsel %vm704, %v698, %v715
        %v717 = vsel %vm703, %v714, %v716
        %v718 = vshll.u32 %v678, 8
        %v719 = vmul.u32.u64.compose %v718, %v717
        %v720 = vextract.low.u32 %v719
        %v721 = vextract.high.u32 %v719
        %v722 = vmul.u32.u64.compose %v718, %v713
        %v723 = vextract.low.u32 %v722
        %v724 = vextract.high.u32 %v722
        %v725 = vmul.u32 %v718, %v709
        %v726 = vadd.s32 %v721, %v723
        %vm727 = vc.u32 %v721, %v723
        %v728 = vadd.s32 %v724, 1
        %v729 = vsel %vm727, %v728, %v724
        %v730 = vadd.s32 %v725, %v729
        %v731 = vadd.s32 %v730, 536870912
        %v732 = vshrl.u32 %v731, 30
        %v733 = vshll.u32 %v732, 30
        %v734 = vsub.s32 %v730, %v733
        %vm735 = vcmp.lt.s32.totalorder %v734, 0
        %v736 = vsub.s32 0, %v734
        %v737 = vsel %vm735, %v736, %v734
        %v738 = vclz %v737
        %v739 = vsub.s32 %v738, 2
        %vm740 = vcmp.gt.s32.totalorder 0, %v739
        %v741 = vsel %vm740, 0, %v739
        %v742 = vsub.s32 32, %v741
        %v743 = vshll.u32 %v734, %v741
        %v744 = vshrl.u32 %v726, %v742
        %v745 = vor.u32 %v743, %v744
        %v746 = vsub.s32 4294967266, %v741
        %v747 = vadd.s32 %v746, 127
        %v748 = vshll.u32 %v747, 23
        %v749 = vor.u32 4788187, %v748
        %v750 = vand.u32 2147483647, %v749
        %v752 = vcvt.s32.f32 %v745
        %v753 = vmul.f32 %v752, %v750
        %v754 = vxor.u32 %v753, 2147483648
        %v755 = vsel %vm672, %v754, %v753
        %v756 = vsub.s32 4, %v732
        %v757 = vsel %vm672, %v756, %v732
        %v758 = vsel %vm671, %v345, %v755
        %v759 = vsel %vm671, 0, %v757
        %v760 = vcosq.f32.pop %v758
        %v761 = vsinq.f32.pop %v758
        %vm762 = vweird.f32 %v345
        %v763 = vadd.s32 %v759, 3
        %v764 = vand.u32 %v763, 3
        %vm765 = vcmp.lt.s32.totalorder %v764, 2
        %vm766 = vcmp.eq.s32.totalorder %v764, 0
        %v767 = vxor.u32 %v761, 2147483648
        %v768 = vsel %vm766, %v760, %v767
        %vm769 = vcmp.eq.s32.totalorder %v764, 2
        %v770 = vxor.u32 %v760, 2147483648
        %v771 = vsel %vm769, %v770, %v761
        %v772 = vsel %vm765, %v768, %v771
        %v773 = vsel %vm762, nan, %v772
        %v774 = vand.u32 2147483647, %v346
        %vm775 = vcmp.le.f32.partialorder %v774, 0.7853982
        %vm776 = vcmp.lt.s32.totalorder %v346, 0
        %v777 = vand.u32 %v346, 2139095040
        %v778 = vshrl.u32 %v777, 23
        %v779 = vsub.s32 %v778, 127
        %v780 = vand.u32 2147483647, %v346
        %v781 = vand.u32 %v780, 8388607
        %v782 = vor.u32 %v781, 8388608
        %v783 = vsub.s32 0, %v782
        %v784 = vadd.s32 %v779, 1
        %vm785 = vcmp.gt.s32.totalorder %v784, 0
        %v786 = vsel %vm785, %v784, 0
        %v787 = vshrl.u32 %v786, 5
        %v788 = vand.u32 %v786, 31
        %v789 = vsub.s32 32, %v788
        %v790 = vshrl.u32 683565275, %v789
        %v791 = vshll.u32 683565275, %v788
        %v792 = vshrl.u32 2475754826, %v789
        %v793 = vor.u32 %v791, %v792
        %v794 = vshll.u32 2475754826, %v788
        %v795 = vshrl.u32 2131351028, %v789
        %v796 = vor.u32 %v794, %v795
        %v797 = vshll.u32 2131351028, %v788
        %v798 = vshrl.u32 2102212464, %v789
        %v799 = vor.u32 %v797, %v798
        %v800 = vshll.u32 2102212464, %v788
        %v801 = vshrl.u32 920167782, %v789
        %v802 = vor.u32 %v800, %v801
        %v803 = vshll.u32 920167782, %v788
        %v804 = vshrl.u32 1326507024, %v789
        %v805 = vor.u32 %v803, %v804
        %vm806 = vcmp.lt.s32.totalorder %v787, 1
        %vm807 = vcmp.lt.s32.totalorder %v787, 2
        %vm808 = vcmp.lt.s32.totalorder %v787, 3
        %vm809 = vcmp.lt.s32.totalorder %v787, 4
        %v810 = vsel %vm806, %v790, %v793
        %v811 = vsel %vm809, %v799, 2102212464
        %v812 = vsel %vm808, %v796, %v811
        %v813 = vsel %vm807, %v810, %v812
        %v814 = vsel %vm806, %v793, %v796
        %v815 = vsel %vm809, %v802, 920167782
        %v816 = vsel %vm808, %v799, %v815
        %v817 = vsel %vm807, %v814, %v816
        %v818 = vsel %vm806, %v796, %v799
        %v819 = vsel %vm809, %v805, 1326507024
        %v820 = vsel %vm808, %v802, %v819
        %v821 = vsel %vm807, %v818, %v820
        %v822 = vshll.u32 %v782, 8
        %v823 = vmul.u32.u64.compose %v822, %v821
        %v824 = vextract.low.u32 %v823
        %v825 = vextract.high.u32 %v823
        %v826 = vmul.u32.u64.compose %v822, %v817
        %v827 = vextract.low.u32 %v826
        %v828 = vextract.high.u32 %v826
        %v829 = vmul.u32 %v822, %v813
        %v830 = vadd.s32 %v825, %v827
        %vm831 = vc.u32 %v825, %v827
        %v832 = vadd.s32 %v828, 1
        %v833 = vsel %vm831, %v832, %v828
        %v834 = vadd.s32 %v829, %v833
        %v835 = vadd.s32 %v834, 536870912
        %v836 = vshrl.u32 %v835, 30
        %v837 = vshll.u32 %v836, 30
        %v838 = vsub.s32 %v834, %v837
        %vm839 = vcmp.lt.s32.totalorder %v838, 0
        %v840 = vsub.s32 0, %v838
        %v841 = vsel %vm839, %v840, %v838
        %v842 = vclz %v841
        %v843 = vsub.s32 %v842, 2
        %vm844 = vcmp.gt.s32.totalorder 0, %v843
        %v845 = vsel %vm844, 0, %v843
        %v846 = vsub.s32 32, %v845
        %v847 = vshll.u32 %v838, %v845
        %v848 = vshrl.u32 %v830, %v846
        %v849 = vor.u32 %v847, %v848
        %v850 = vsub.s32 4294967266, %v845
        %v851 = vadd.s32 %v850, 127
        %v852 = vshll.u32 %v851, 23
        %v853 = vor.u32 4788187, %v852
        %v854 = vand.u32 2147483647, %v853
        %v856 = vcvt.s32.f32 %v849
        %v857 = vmul.f32 %v856, %v854
        %v858 = vxor.u32 %v857, 2147483648
        %v859 = vsel %vm776, %v858, %v857
        %v860 = vsub.s32 4, %v836
        %v861 = vsel %vm776, %v860, %v836
        %v862 = vsel %vm775, %v346, %v859
        %v863 = vsel %vm775, 0, %v861
        %v864 = vcosq.f32.pop %v862
        %v865 = vsinq.f32.pop %v862
        %vm866 = vweird.f32 %v346
        %v867 = vadd.s32 %v863, 3
        %v868 = vand.u32 %v867, 3
        %vm869 = vcmp.lt.s32.totalorder %v868, 2
        %vm870 = vcmp.eq.s32.totalorder %v868, 0
        %v871 = vxor.u32 %v865, 2147483648
        %v872 = vsel %vm870, %v864, %v871
        %vm873 = vcmp.eq.s32.totalorder %v868, 2
        %v874 = vxor.u32 %v864, 2147483648
        %v875 = vsel %vm873, %v874, %v865
        %v876 = vsel %vm869, %v872, %v875
        %v877 = vsel %vm866, nan, %v876
        %v878 = vand.u32 2147483647, %v347
        %vm879 = vcmp.le.f32.partialorder %v878, 0.7853982
        %vm880 = vcmp.lt.s32.totalorder %v347, 0
        %v881 = vand.u32 %v347, 2139095040
        %v882 = vshrl.u32 %v881, 23
        %v883 = vsub.s32 %v882, 127
        %v884 = vand.u32 2147483647, %v347
        %v885 = vand.u32 %v884, 8388607
        %v886 = vor.u32 %v885, 8388608
        %v887 = vsub.s32 0, %v886
        %v888 = vadd.s32 %v883, 1
        %vm889 = vcmp.gt.s32.totalorder %v888, 0
        %v890 = vsel %vm889, %v888, 0
        %v891 = vshrl.u32 %v890, 5
        %v892 = vand.u32 %v890, 31
        %v893 = vsub.s32 32, %v892
        %v894 = vshrl.u32 683565275, %v893
        %v895 = vshll.u32 683565275, %v892
        %v896 = vshrl.u32 2475754826, %v893
        %v897 = vor.u32 %v895, %v896
        %v898 = vshll.u32 2475754826, %v892
        %v899 = vshrl.u32 2131351028, %v893
        %v900 = vor.u32 %v898, %v899
        %v901 = vshll.u32 2131351028, %v892
        %v902 = vshrl.u32 2102212464, %v893
        %v903 = vor.u32 %v901, %v902
        %v904 = vshll.u32 2102212464, %v892
        %v905 = vshrl.u32 920167782, %v893
        %v906 = vor.u32 %v904, %v905
        %v907 = vshll.u32 920167782, %v892
        %v908 = vshrl.u32 1326507024, %v893
        %v909 = vor.u32 %v907, %v908
        %vm910 = vcmp.lt.s32.totalorder %v891, 1
        %vm911 = vcmp.lt.s32.totalorder %v891, 2
        %vm912 = vcmp.lt.s32.totalorder %v891, 3
        %vm913 = vcmp.lt.s32.totalorder %v891, 4
        %v914 = vsel %vm910, %v894, %v897
        %v915 = vsel %vm913, %v903, 2102212464
        %v916 = vsel %vm912, %v900, %v915
        %v917 = vsel %vm911, %v914, %v916
        %v918 = vsel %vm910, %v897, %v900
        %v919 = vsel %vm913, %v906, 920167782
        %v920 = vsel %vm912, %v903, %v919
        %v921 = vsel %vm911, %v918, %v920
        %v922 = vsel %vm910, %v900, %v903
        %v923 = vsel %vm913, %v909, 1326507024
        %v924 = vsel %vm912, %v906, %v923
        %v925 = vsel %vm911, %v922, %v924
        %v926 = vshll.u32 %v886, 8
        %v927 = vmul.u32.u64.compose %v926, %v925
        %v928 = vextract.low.u32 %v927
        %v929 = vextract.high.u32 %v927
        %v930 = vmul.u32.u64.compose %v926, %v921
        %v931 = vextract.low.u32 %v930
        %v932 = vextract.high.u32 %v930
        %v933 = vmul.u32 %v926, %v917
        %v934 = vadd.s32 %v929, %v931
        %vm935 = vc.u32 %v929, %v931
        %v936 = vadd.s32 %v932, 1
        %v937 = vsel %vm935, %v936, %v932
        %v938 = vadd.s32 %v933, %v937
        %v939 = vadd.s32 %v938, 536870912
        %v940 = vshrl.u32 %v939, 30
        %v941 = vshll.u32 %v940, 30
        %v942 = vsub.s32 %v938, %v941
        %vm943 = vcmp.lt.s32.totalorder %v942, 0
        %v944 = vsub.s32 0, %v942
        %v945 = vsel %vm943, %v944, %v942
        %v946 = vclz %v945
        %v947 = vsub.s32 %v946, 2
        %vm948 = vcmp.gt.s32.totalorder 0, %v947
        %v949 = vsel %vm948, 0, %v947
        %v950 = vsub.s32 32, %v949
        %v951 = vshll.u32 %v942, %v949
        %v952 = vshrl.u32 %v934, %v950
        %v953 = vor.u32 %v951, %v952
        %v954 = vsub.s32 4294967266, %v949
        %v955 = vadd.s32 %v954, 127
        %v956 = vshll.u32 %v955, 23
        %v957 = vor.u32 4788187, %v956
        %v958 = vand.u32 2147483647, %v957
        %v960 = vcvt.s32.f32 %v953
        %v961 = vmul.f32 %v960, %v958
        %v962 = vxor.u32 %v961, 2147483648
        %v963 = vsel %vm880, %v962, %v961
        %v964 = vsub.s32 4, %v940
        %v965 = vsel %vm880, %v964, %v940
        %v966 = vsel %vm879, %v347, %v963
        %v967 = vsel %vm879, 0, %v965
        %v968 = vcosq.f32.pop %v966
        %v969 = vsinq.f32.pop %v966
        %vm970 = vweird.f32 %v347
        %v971 = vadd.s32 %v967, 3
        %v972 = vand.u32 %v971, 3
        %vm973 = vcmp.lt.s32.totalorder %v972, 2
        %vm974 = vcmp.eq.s32.totalorder %v972, 0
        %v975 = vxor.u32 %v969, 2147483648
        %v976 = vsel %vm974, %v968, %v975
        %vm977 = vcmp.eq.s32.totalorder %v972, 2
        %v978 = vxor.u32 %v968, 2147483648
        %v979 = vsel %vm977, %v978, %v969
        %v980 = vsel %vm973, %v976, %v979
        %v981 = vsel %vm970, nan, %v980
        %v982 = vand.u32 2147483647, %v348
        %vm983 = vcmp.le.f32.partialorder %v982, 0.7853982
        %vm984 = vcmp.lt.s32.totalorder %v348, 0
        %v985 = vand.u32 %v348, 2139095040
        %v986 = vshrl.u32 %v985, 23
        %v987 = vsub.s32 %v986, 127
        %v988 = vand.u32 2147483647, %v348
        %v989 = vand.u32 %v988, 8388607
        %v990 = vor.u32 %v989, 8388608
        %v991 = vsub.s32 0, %v990
        %v992 = vadd.s32 %v987, 1
        %vm993 = vcmp.gt.s32.totalorder %v992, 0
        %v994 = vsel %vm993, %v992, 0
        %v995 = vshrl.u32 %v994, 5
        %v996 = vand.u32 %v994, 31
        %v997 = vsub.s32 32, %v996
        %v998 = vshrl.u32 683565275, %v997
        %v999 = vshll.u32 683565275, %v996
        %v1000 = vshrl.u32 2475754826, %v997
        %v1001 = vor.u32 %v999, %v1000
        %v1002 = vshll.u32 2475754826, %v996
        %v1003 = vshrl.u32 2131351028, %v997
        %v1004 = vor.u32 %v1002, %v1003
        %v1005 = vshll.u32 2131351028, %v996
        %v1006 = vshrl.u32 2102212464, %v997
        %v1007 = vor.u32 %v1005, %v1006
        %v1008 = vshll.u32 2102212464, %v996
        %v1009 = vshrl.u32 920167782, %v997
        %v1010 = vor.u32 %v1008, %v1009
        %v1011 = vshll.u32 920167782, %v996
        %v1012 = vshrl.u32 1326507024, %v997
        %v1013 = vor.u32 %v1011, %v1012
        %vm1014 = vcmp.lt.s32.totalorder %v995, 1
        %vm1015 = vcmp.lt.s32.totalorder %v995, 2
        %vm1016 = vcmp.lt.s32.totalorder %v995, 3
        %vm1017 = vcmp.lt.s32.totalorder %v995, 4
        %v1018 = vsel %vm1014, %v998, %v1001
        %v1019 = vsel %vm1017, %v1007, 2102212464
        %v1020 = vsel %vm1016, %v1004, %v1019
        %v1021 = vsel %vm1015, %v1018, %v1020
        %v1022 = vsel %vm1014, %v1001, %v1004
        %v1023 = vsel %vm1017, %v1010, 920167782
        %v1024 = vsel %vm1016, %v1007, %v1023
        %v1025 = vsel %vm1015, %v1022, %v1024
        %v1026 = vsel %vm1014, %v1004, %v1007
        %v1027 = vsel %vm1017, %v1013, 1326507024
        %v1028 = vsel %vm1016, %v1010, %v1027
        %v1029 = vsel %vm1015, %v1026, %v1028
        %v1030 = vshll.u32 %v990, 8
        %v1031 = vmul.u32.u64.compose %v1030, %v1029
        %v1032 = vextract.low.u32 %v1031
        %v1033 = vextract.high.u32 %v1031
        %v1034 = vmul.u32.u64.compose %v1030, %v1025
        %v1035 = vextract.low.u32 %v1034
        %v1036 = vextract.high.u32 %v1034
        %v1037 = vmul.u32 %v1030, %v1021
        %v1038 = vadd.s32 %v1033, %v1035
        %vm1039 = vc.u32 %v1033, %v1035
        %v1040 = vadd.s32 %v1036, 1
        %v1041 = vsel %vm1039, %v1040, %v1036
        %v1042 = vadd.s32 %v1037, %v1041
        %v1043 = vadd.s32 %v1042, 536870912
        %v1044 = vshrl.u32 %v1043, 30
        %v1045 = vshll.u32 %v1044, 30
        %v1046 = vsub.s32 %v1042, %v1045
        %vm1047 = vcmp.lt.s32.totalorder %v1046, 0
        %v1048 = vsub.s32 0, %v1046
        %v1049 = vsel %vm1047, %v1048, %v1046
        %v1050 = vclz %v1049
        %v1051 = vsub.s32 %v1050, 2
        %vm1052 = vcmp.gt.s32.totalorder 0, %v1051
        %v1053 = vsel %vm1052, 0, %v1051
        %v1054 = vsub.s32 32, %v1053
        %v1055 = vshll.u32 %v1046, %v1053
        %v1056 = vshrl.u32 %v1038, %v1054
        %v1057 = vor.u32 %v1055, %v1056
        %v1058 = vsub.s32 4294967266, %v1053
        %v1059 = vadd.s32 %v1058, 127
        %v1060 = vshll.u32 %v1059, 23
        %v1061 = vor.u32 4788187, %v1060
        %v1062 = vand.u32 2147483647, %v1061
        %v1064 = vcvt.s32.f32 %v1057
        %v1065 = vmul.f32 %v1064, %v1062
        %v1066 = vxor.u32 %v1065, 2147483648
        %v1067 = vsel %vm984, %v1066, %v1065
        %v1068 = vsub.s32 4, %v1044
        %v1069 = vsel %vm984, %v1068, %v1044
        %v1070 = vsel %vm983, %v348, %v1067
        %v1071 = vsel %vm983, 0, %v1069
        %v1072 = vcosq.f32.pop %v1070
        %v1073 = vsinq.f32.pop %v1070
        %vm1074 = vweird.f32 %v348
        %v1075 = vadd.s32 %v1071, 3
        %v1076 = vand.u32 %v1075, 3
        %vm1077 = vcmp.lt.s32.totalorder %v1076, 2
        %vm1078 = vcmp.eq.s32.totalorder %v1076, 0
        %v1079 = vxor.u32 %v1073, 2147483648
        %v1080 = vsel %vm1078, %v1072, %v1079
        %vm1081 = vcmp.eq.s32.totalorder %v1076, 2
        %v1082 = vxor.u32 %v1072, 2147483648
        %v1083 = vsel %vm1081, %v1082, %v1073
        %v1084 = vsel %vm1077, %v1080, %v1083
        %v1085 = vsel %vm1074, nan, %v1084
        %v1086 = vand.u32 2147483647, %v349
        %vm1087 = vcmp.le.f32.partialorder %v1086, 0.7853982
        %vm1088 = vcmp.lt.s32.totalorder %v349, 0
        %v1089 = vand.u32 %v349, 2139095040
        %v1090 = vshrl.u32 %v1089, 23
        %v1091 = vsub.s32 %v1090, 127
        %v1092 = vand.u32 2147483647, %v349
        %v1093 = vand.u32 %v1092, 8388607
        %v1094 = vor.u32 %v1093, 8388608
        %v1095 = vsub.s32 0, %v1094
        %v1096 = vadd.s32 %v1091, 1
        %vm1097 = vcmp.gt.s32.totalorder %v1096, 0
        %v1098 = vsel %vm1097, %v1096, 0
        %v1099 = vshrl.u32 %v1098, 5
        %v1100 = vand.u32 %v1098, 31
        %v1101 = vsub.s32 32, %v1100
        %v1102 = vshrl.u32 683565275, %v1101
        %v1103 = vshll.u32 683565275, %v1100
        %v1104 = vshrl.u32 2475754826, %v1101
        %v1105 = vor.u32 %v1103, %v1104
        %v1106 = vshll.u32 2475754826, %v1100
        %v1107 = vshrl.u32 2131351028, %v1101
        %v1108 = vor.u32 %v1106, %v1107
        %v1109 = vshll.u32 2131351028, %v1100
        %v1110 = vshrl.u32 2102212464, %v1101
        %v1111 = vor.u32 %v1109, %v1110
        %v1112 = vshll.u32 2102212464, %v1100
        %v1113 = vshrl.u32 920167782, %v1101
        %v1114 = vor.u32 %v1112, %v1113
        %v1115 = vshll.u32 920167782, %v1100
        %v1116 = vshrl.u32 1326507024, %v1101
        %v1117 = vor.u32 %v1115, %v1116
        %vm1118 = vcmp.lt.s32.totalorder %v1099, 1
        %vm1119 = vcmp.lt.s32.totalorder %v1099, 2
        %vm1120 = vcmp.lt.s32.totalorder %v1099, 3
        %vm1121 = vcmp.lt.s32.totalorder %v1099, 4
        %v1122 = vsel %vm1118, %v1102, %v1105
        %v1123 = vsel %vm1121, %v1111, 2102212464
        %v1124 = vsel %vm1120, %v1108, %v1123
        %v1125 = vsel %vm1119, %v1122, %v1124
        %v1126 = vsel %vm1118, %v1105, %v1108
        %v1127 = vsel %vm1121, %v1114, 920167782
        %v1128 = vsel %vm1120, %v1111, %v1127
        %v1129 = vsel %vm1119, %v1126, %v1128
        %v1130 = vsel %vm1118, %v1108, %v1111
        %v1131 = vsel %vm1121, %v1117, 1326507024
        %v1132 = vsel %vm1120, %v1114, %v1131
        %v1133 = vsel %vm1119, %v1130, %v1132
        %v1134 = vshll.u32 %v1094, 8
        %v1135 = vmul.u32.u64.compose %v1134, %v1133
        %v1136 = vextract.low.u32 %v1135
        %v1137 = vextract.high.u32 %v1135
        %v1138 = vmul.u32.u64.compose %v1134, %v1129
        %v1139 = vextract.low.u32 %v1138
        %v1140 = vextract.high.u32 %v1138
        %v1141 = vmul.u32 %v1134, %v1125
        %v1142 = vadd.s32 %v1137, %v1139
        %vm1143 = vc.u32 %v1137, %v1139
        %v1144 = vadd.s32 %v1140, 1
        %v1145 = vsel %vm1143, %v1144, %v1140
        %v1146 = vadd.s32 %v1141, %v1145
        %v1147 = vadd.s32 %v1146, 536870912
        %v1148 = vshrl.u32 %v1147, 30
        %v1149 = vshll.u32 %v1148, 30
        %v1150 = vsub.s32 %v1146, %v1149
        %vm1151 = vcmp.lt.s32.totalorder %v1150, 0
        %v1152 = vsub.s32 0, %v1150
        %v1153 = vsel %vm1151, %v1152, %v1150
        %v1154 = vclz %v1153
        %v1155 = vsub.s32 %v1154, 2
        %vm1156 = vcmp.gt.s32.totalorder 0, %v1155
        %v1157 = vsel %vm1156, 0, %v1155
        %v1158 = vsub.s32 32, %v1157
        %v1159 = vshll.u32 %v1150, %v1157
        %v1160 = vshrl.u32 %v1142, %v1158
        %v1161 = vor.u32 %v1159, %v1160
        %v1162 = vsub.s32 4294967266, %v1157
        %v1163 = vadd.s32 %v1162, 127
        %v1164 = vshll.u32 %v1163, 23
        %v1165 = vor.u32 4788187, %v1164
        %v1166 = vand.u32 2147483647, %v1165
        %v1168 = vcvt.s32.f32 %v1161
        %v1169 = vmul.f32 %v1168, %v1166
        %v1170 = vxor.u32 %v1169, 2147483648
        %v1171 = vsel %vm1088, %v1170, %v1169
        %v1172 = vsub.s32 4, %v1148
        %v1173 = vsel %vm1088, %v1172, %v1148
        %v1174 = vsel %vm1087, %v349, %v1171
        %v1175 = vsel %vm1087, 0, %v1173
        %v1176 = vcosq.f32.pop %v1174
        %v1177 = vsinq.f32.pop %v1174
        %vm1178 = vweird.f32 %v349
        %v1179 = vadd.s32 %v1175, 3
        %v1180 = vand.u32 %v1179, 3
        %vm1181 = vcmp.lt.s32.totalorder %v1180, 2
        %vm1182 = vcmp.eq.s32.totalorder %v1180, 0
        %v1183 = vxor.u32 %v1177, 2147483648
        %v1184 = vsel %vm1182, %v1176, %v1183
        %vm1185 = vcmp.eq.s32.totalorder %v1180, 2
        %v1186 = vxor.u32 %v1176, 2147483648
        %v1187 = vsel %vm1185, %v1186, %v1177
        %v1188 = vsel %vm1181, %v1184, %v1187
        %v1189 = vsel %vm1178, nan, %v1188
        %v1190 = vand.u32 2147483647, %v350
        %vm1191 = vcmp.le.f32.partialorder %v1190, 0.7853982
        %vm1192 = vcmp.lt.s32.totalorder %v350, 0
        %v1193 = vand.u32 %v350, 2139095040
        %v1194 = vshrl.u32 %v1193, 23
        %v1195 = vsub.s32 %v1194, 127
        %v1196 = vand.u32 2147483647, %v350
        %v1197 = vand.u32 %v1196, 8388607
        %v1198 = vor.u32 %v1197, 8388608
        %v1199 = vsub.s32 0, %v1198
        %v1200 = vadd.s32 %v1195, 1
        %vm1201 = vcmp.gt.s32.totalorder %v1200, 0
        %v1202 = vsel %vm1201, %v1200, 0
        %v1203 = vshrl.u32 %v1202, 5
        %v1204 = vand.u32 %v1202, 31
        %v1205 = vsub.s32 32, %v1204
        %v1206 = vshrl.u32 683565275, %v1205
        %v1207 = vshll.u32 683565275, %v1204
        %v1208 = vshrl.u32 2475754826, %v1205
        %v1209 = vor.u32 %v1207, %v1208
        %v1210 = vshll.u32 2475754826, %v1204
        %v1211 = vshrl.u32 2131351028, %v1205
        %v1212 = vor.u32 %v1210, %v1211
        %v1213 = vshll.u32 2131351028, %v1204
        %v1214 = vshrl.u32 2102212464, %v1205
        %v1215 = vor.u32 %v1213, %v1214
        %v1216 = vshll.u32 2102212464, %v1204
        %v1217 = vshrl.u32 920167782, %v1205
        %v1218 = vor.u32 %v1216, %v1217
        %v1219 = vshll.u32 920167782, %v1204
        %v1220 = vshrl.u32 1326507024, %v1205
        %v1221 = vor.u32 %v1219, %v1220
        %vm1222 = vcmp.lt.s32.totalorder %v1203, 1
        %vm1223 = vcmp.lt.s32.totalorder %v1203, 2
        %vm1224 = vcmp.lt.s32.totalorder %v1203, 3
        %vm1225 = vcmp.lt.s32.totalorder %v1203, 4
        %v1226 = vsel %vm1222, %v1206, %v1209
        %v1227 = vsel %vm1225, %v1215, 2102212464
        %v1228 = vsel %vm1224, %v1212, %v1227
        %v1229 = vsel %vm1223, %v1226, %v1228
        %v1230 = vsel %vm1222, %v1209, %v1212
        %v1231 = vsel %vm1225, %v1218, 920167782
        %v1232 = vsel %vm1224, %v1215, %v1231
        %v1233 = vsel %vm1223, %v1230, %v1232
        %v1234 = vsel %vm1222, %v1212, %v1215
        %v1235 = vsel %vm1225, %v1221, 1326507024
        %v1236 = vsel %vm1224, %v1218, %v1235
        %v1237 = vsel %vm1223, %v1234, %v1236
        %v1238 = vshll.u32 %v1198, 8
        %v1239 = vmul.u32.u64.compose %v1238, %v1237
        %v1240 = vextract.low.u32 %v1239
        %v1241 = vextract.high.u32 %v1239
        %v1242 = vmul.u32.u64.compose %v1238, %v1233
        %v1243 = vextract.low.u32 %v1242
        %v1244 = vextract.high.u32 %v1242
        %v1245 = vmul.u32 %v1238, %v1229
        %v1246 = vadd.s32 %v1241, %v1243
        %vm1247 = vc.u32 %v1241, %v1243
        %v1248 = vadd.s32 %v1244, 1
        %v1249 = vsel %vm1247, %v1248, %v1244
        %v1250 = vadd.s32 %v1245, %v1249
        %v1251 = vadd.s32 %v1250, 536870912
        %v1252 = vshrl.u32 %v1251, 30
        %v1253 = vshll.u32 %v1252, 30
        %v1254 = vsub.s32 %v1250, %v1253
        %vm1255 = vcmp.lt.s32.totalorder %v1254, 0
        %v1256 = vsub.s32 0, %v1254
        %v1257 = vsel %vm1255, %v1256, %v1254
        %v1258 = vclz %v1257
        %v1259 = vsub.s32 %v1258, 2
        %vm1260 = vcmp.gt.s32.totalorder 0, %v1259
        %v1261 = vsel %vm1260, 0, %v1259
        %v1262 = vsub.s32 32, %v1261
        %v1263 = vshll.u32 %v1254, %v1261
        %v1264 = vshrl.u32 %v1246, %v1262
        %v1265 = vor.u32 %v1263, %v1264
        %v1266 = vsub.s32 4294967266, %v1261
        %v1267 = vadd.s32 %v1266, 127
        %v1268 = vshll.u32 %v1267, 23
        %v1269 = vor.u32 4788187, %v1268
        %v1270 = vand.u32 2147483647, %v1269
        %v1272 = vcvt.s32.f32 %v1265
        %v1273 = vmul.f32 %v1272, %v1270
        %v1274 = vxor.u32 %v1273, 2147483648
        %v1275 = vsel %vm1192, %v1274, %v1273
        %v1276 = vsub.s32 4, %v1252
        %v1277 = vsel %vm1192, %v1276, %v1252
        %v1278 = vsel %vm1191, %v350, %v1275
        %v1279 = vsel %vm1191, 0, %v1277
        %v1280 = vcosq.f32.pop %v1278
        %v1281 = vsinq.f32.pop %v1278
        %vm1282 = vweird.f32 %v350
        %v1283 = vadd.s32 %v1279, 3
        %v1284 = vand.u32 %v1283, 3
        %vm1285 = vcmp.lt.s32.totalorder %v1284, 2
        %vm1286 = vcmp.eq.s32.totalorder %v1284, 0
        %v1287 = vxor.u32 %v1281, 2147483648
        %v1288 = vsel %vm1286, %v1280, %v1287
        %vm1289 = vcmp.eq.s32.totalorder %v1284, 2
        %v1290 = vxor.u32 %v1280, 2147483648
        %v1291 = vsel %vm1289, %v1290, %v1281
        %v1292 = vsel %vm1285, %v1288, %v1291
        %v1293 = vsel %vm1282, nan, %v1292
        %v1294 = vand.u32 2147483647, %v351
        %vm1295 = vcmp.le.f32.partialorder %v1294, 0.7853982
        %vm1296 = vcmp.lt.s32.totalorder %v351, 0
        %v1297 = vand.u32 %v351, 2139095040
        %v1298 = vshrl.u32 %v1297, 23
        %v1299 = vsub.s32 %v1298, 127
        %v1300 = vand.u32 2147483647, %v351
        %v1301 = vand.u32 %v1300, 8388607
        %v1302 = vor.u32 %v1301, 8388608
        %v1303 = vsub.s32 0, %v1302
        %v1304 = vadd.s32 %v1299, 1
        %vm1305 = vcmp.gt.s32.totalorder %v1304, 0
        %v1306 = vsel %vm1305, %v1304, 0
        %v1307 = vshrl.u32 %v1306, 5
        %v1308 = vand.u32 %v1306, 31
        %v1309 = vsub.s32 32, %v1308
        %v1310 = vshrl.u32 683565275, %v1309
        %v1311 = vshll.u32 683565275, %v1308
        %v1312 = vshrl.u32 2475754826, %v1309
        %v1313 = vor.u32 %v1311, %v1312
        %v1314 = vshll.u32 2475754826, %v1308
        %v1315 = vshrl.u32 2131351028, %v1309
        %v1316 = vor.u32 %v1314, %v1315
        %v1317 = vshll.u32 2131351028, %v1308
        %v1318 = vshrl.u32 2102212464, %v1309
        %v1319 = vor.u32 %v1317, %v1318
        %v1320 = vshll.u32 2102212464, %v1308
        %v1321 = vshrl.u32 920167782, %v1309
        %v1322 = vor.u32 %v1320, %v1321
        %v1323 = vshll.u32 920167782, %v1308
        %v1324 = vshrl.u32 1326507024, %v1309
        %v1325 = vor.u32 %v1323, %v1324
        %vm1326 = vcmp.lt.s32.totalorder %v1307, 1
        %vm1327 = vcmp.lt.s32.totalorder %v1307, 2
        %vm1328 = vcmp.lt.s32.totalorder %v1307, 3
        %vm1329 = vcmp.lt.s32.totalorder %v1307, 4
        %v1330 = vsel %vm1326, %v1310, %v1313
        %v1331 = vsel %vm1329, %v1319, 2102212464
        %v1332 = vsel %vm1328, %v1316, %v1331
        %v1333 = vsel %vm1327, %v1330, %v1332
        %v1334 = vsel %vm1326, %v1313, %v1316
        %v1335 = vsel %vm1329, %v1322, 920167782
        %v1336 = vsel %vm1328, %v1319, %v1335
        %v1337 = vsel %vm1327, %v1334, %v1336
        %v1338 = vsel %vm1326, %v1316, %v1319
        %v1339 = vsel %vm1329, %v1325, 1326507024
        %v1340 = vsel %vm1328, %v1322, %v1339
        %v1341 = vsel %vm1327, %v1338, %v1340
        %v1342 = vshll.u32 %v1302, 8
        %v1343 = vmul.u32.u64.compose %v1342, %v1341
        %v1344 = vextract.low.u32 %v1343
        %v1345 = vextract.high.u32 %v1343
        %v1346 = vmul.u32.u64.compose %v1342, %v1337
        %v1347 = vextract.low.u32 %v1346
        %v1348 = vextract.high.u32 %v1346
        %v1349 = vmul.u32 %v1342, %v1333
        %v1350 = vadd.s32 %v1345, %v1347
        %vm1351 = vc.u32 %v1345, %v1347
        %v1352 = vadd.s32 %v1348, 1
        %v1353 = vsel %vm1351, %v1352, %v1348
        %v1354 = vadd.s32 %v1349, %v1353
        %v1355 = vadd.s32 %v1354, 536870912
        %v1356 = vshrl.u32 %v1355, 30
        %v1357 = vshll.u32 %v1356, 30
        %v1358 = vsub.s32 %v1354, %v1357
        %vm1359 = vcmp.lt.s32.totalorder %v1358, 0
        %v1360 = vsub.s32 0, %v1358
        %v1361 = vsel %vm1359, %v1360, %v1358
        %v1362 = vclz %v1361
        %v1363 = vsub.s32 %v1362, 2
        %vm1364 = vcmp.gt.s32.totalorder 0, %v1363
        %v1365 = vsel %vm1364, 0, %v1363
        %v1366 = vsub.s32 32, %v1365
        %v1367 = vshll.u32 %v1358, %v1365
        %v1368 = vshrl.u32 %v1350, %v1366
        %v1369 = vor.u32 %v1367, %v1368
        %v1370 = vsub.s32 4294967266, %v1365
        %v1371 = vadd.s32 %v1370, 127
        %v1372 = vshll.u32 %v1371, 23
        %v1373 = vor.u32 4788187, %v1372
        %v1374 = vand.u32 2147483647, %v1373
        %v1376 = vcvt.s32.f32 %v1369
        %v1377 = vmul.f32 %v1376, %v1374
        %v1378 = vxor.u32 %v1377, 2147483648
        %v1379 = vsel %vm1296, %v1378, %v1377
        %v1380 = vsub.s32 4, %v1356
        %v1381 = vsel %vm1296, %v1380, %v1356
        %v1382 = vsel %vm1295, %v351, %v1379
        %v1383 = vsel %vm1295, 0, %v1381
        %v1384 = vcosq.f32.pop %v1382
        %v1385 = vsinq.f32.pop %v1382
        %vm1386 = vweird.f32 %v351
        %v1387 = vadd.s32 %v1383, 3
        %v1388 = vand.u32 %v1387, 3
        %vm1389 = vcmp.lt.s32.totalorder %v1388, 2
        %vm1390 = vcmp.eq.s32.totalorder %v1388, 0
        %v1391 = vxor.u32 %v1385, 2147483648
        %v1392 = vsel %vm1390, %v1384, %v1391
        %vm1393 = vcmp.eq.s32.totalorder %v1388, 2
        %v1394 = vxor.u32 %v1384, 2147483648
        %v1395 = vsel %vm1393, %v1394, %v1385
        %v1396 = vsel %vm1389, %v1392, %v1395
        %v1397 = vsel %vm1386, nan, %v1396
        %v1398 = vand.u32 2147483647, %v352
        %vm1399 = vcmp.le.f32.partialorder %v1398, 0.7853982
        %vm1400 = vcmp.lt.s32.totalorder %v352, 0
        %v1401 = vand.u32 %v352, 2139095040
        %v1402 = vshrl.u32 %v1401, 23
        %v1403 = vsub.s32 %v1402, 127
        %v1404 = vand.u32 2147483647, %v352
        %v1405 = vand.u32 %v1404, 8388607
        %v1406 = vor.u32 %v1405, 8388608
        %v1407 = vsub.s32 0, %v1406
        %v1408 = vadd.s32 %v1403, 1
        %vm1409 = vcmp.gt.s32.totalorder %v1408, 0
        %v1410 = vsel %vm1409, %v1408, 0
        %v1411 = vshrl.u32 %v1410, 5
        %v1412 = vand.u32 %v1410, 31
        %v1413 = vsub.s32 32, %v1412
        %v1414 = vshrl.u32 683565275, %v1413
        %v1415 = vshll.u32 683565275, %v1412
        %v1416 = vshrl.u32 2475754826, %v1413
        %v1417 = vor.u32 %v1415, %v1416
        %v1418 = vshll.u32 2475754826, %v1412
        %v1419 = vshrl.u32 2131351028, %v1413
        %v1420 = vor.u32 %v1418, %v1419
        %v1421 = vshll.u32 2131351028, %v1412
        %v1422 = vshrl.u32 2102212464, %v1413
        %v1423 = vor.u32 %v1421, %v1422
        %v1424 = vshll.u32 2102212464, %v1412
        %v1425 = vshrl.u32 920167782, %v1413
        %v1426 = vor.u32 %v1424, %v1425
        %v1427 = vshll.u32 920167782, %v1412
        %v1428 = vshrl.u32 1326507024, %v1413
        %v1429 = vor.u32 %v1427, %v1428
        %vm1430 = vcmp.lt.s32.totalorder %v1411, 1
        %vm1431 = vcmp.lt.s32.totalorder %v1411, 2
        %vm1432 = vcmp.lt.s32.totalorder %v1411, 3
        %vm1433 = vcmp.lt.s32.totalorder %v1411, 4
        %v1434 = vsel %vm1430, %v1414, %v1417
        %v1435 = vsel %vm1433, %v1423, 2102212464
        %v1436 = vsel %vm1432, %v1420, %v1435
        %v1437 = vsel %vm1431, %v1434, %v1436
        %v1438 = vsel %vm1430, %v1417, %v1420
        %v1439 = vsel %vm1433, %v1426, 920167782
        %v1440 = vsel %vm1432, %v1423, %v1439
        %v1441 = vsel %vm1431, %v1438, %v1440
        %v1442 = vsel %vm1430, %v1420, %v1423
        %v1443 = vsel %vm1433, %v1429, 1326507024
        %v1444 = vsel %vm1432, %v1426, %v1443
        %v1445 = vsel %vm1431, %v1442, %v1444
        %v1446 = vshll.u32 %v1406, 8
        %v1447 = vmul.u32.u64.compose %v1446, %v1445
        %v1448 = vextract.low.u32 %v1447
        %v1449 = vextract.high.u32 %v1447
        %v1450 = vmul.u32.u64.compose %v1446, %v1441
        %v1451 = vextract.low.u32 %v1450
        %v1452 = vextract.high.u32 %v1450
        %v1453 = vmul.u32 %v1446, %v1437
        %v1454 = vadd.s32 %v1449, %v1451
        %vm1455 = vc.u32 %v1449, %v1451
        %v1456 = vadd.s32 %v1452, 1
        %v1457 = vsel %vm1455, %v1456, %v1452
        %v1458 = vadd.s32 %v1453, %v1457
        %v1459 = vadd.s32 %v1458, 536870912
        %v1460 = vshrl.u32 %v1459, 30
        %v1461 = vshll.u32 %v1460, 30
        %v1462 = vsub.s32 %v1458, %v1461
        %vm1463 = vcmp.lt.s32.totalorder %v1462, 0
        %v1464 = vsub.s32 0, %v1462
        %v1465 = vsel %vm1463, %v1464, %v1462
        %v1466 = vclz %v1465
        %v1467 = vsub.s32 %v1466, 2
        %vm1468 = vcmp.gt.s32.totalorder 0, %v1467
        %v1469 = vsel %vm1468, 0, %v1467
        %v1470 = vsub.s32 32, %v1469
        %v1471 = vshll.u32 %v1462, %v1469
        %v1472 = vshrl.u32 %v1454, %v1470
        %v1473 = vor.u32 %v1471, %v1472
        %v1474 = vsub.s32 4294967266, %v1469
        %v1475 = vadd.s32 %v1474, 127
        %v1476 = vshll.u32 %v1475, 23
        %v1477 = vor.u32 4788187, %v1476
        %v1478 = vand.u32 2147483647, %v1477
        %v1480 = vcvt.s32.f32 %v1473
        %v1481 = vmul.f32 %v1480, %v1478
        %v1482 = vxor.u32 %v1481, 2147483648
        %v1483 = vsel %vm1400, %v1482, %v1481
        %v1484 = vsub.s32 4, %v1460
        %v1485 = vsel %vm1400, %v1484, %v1460
        %v1486 = vsel %vm1399, %v352, %v1483
        %v1487 = vsel %vm1399, 0, %v1485
        %v1488 = vcosq.f32.pop %v1486
        %v1489 = vsinq.f32.pop %v1486
        %vm1490 = vweird.f32 %v352
        %v1491 = vadd.s32 %v1487, 3
        %v1492 = vand.u32 %v1491, 3
        %vm1493 = vcmp.lt.s32.totalorder %v1492, 2
        %vm1494 = vcmp.eq.s32.totalorder %v1492, 0
        %v1495 = vxor.u32 %v1489, 2147483648
        %v1496 = vsel %vm1494, %v1488, %v1495
        %vm1497 = vcmp.eq.s32.totalorder %v1492, 2
        %v1498 = vxor.u32 %v1488, 2147483648
        %v1499 = vsel %vm1497, %v1498, %v1489
        %v1500 = vsel %vm1493, %v1496, %v1499
        %v1501 = vsel %vm1490, nan, %v1500
        %v1502 = vand.u32 2147483647, %v353
        %vm1503 = vcmp.le.f32.partialorder %v1502, 0.7853982
        %vm1504 = vcmp.lt.s32.totalorder %v353, 0
        %v1505 = vand.u32 %v353, 2139095040
        %v1506 = vshrl.u32 %v1505, 23
        %v1507 = vsub.s32 %v1506, 127
        %v1508 = vand.u32 2147483647, %v353
        %v1509 = vand.u32 %v1508, 8388607
        %v1510 = vor.u32 %v1509, 8388608
        %v1511 = vsub.s32 0, %v1510
        %v1512 = vadd.s32 %v1507, 1
        %vm1513 = vcmp.gt.s32.totalorder %v1512, 0
        %v1514 = vsel %vm1513, %v1512, 0
        %v1515 = vshrl.u32 %v1514, 5
        %v1516 = vand.u32 %v1514, 31
        %v1517 = vsub.s32 32, %v1516
        %v1518 = vshrl.u32 683565275, %v1517
        %v1519 = vshll.u32 683565275, %v1516
        %v1520 = vshrl.u32 2475754826, %v1517
        %v1521 = vor.u32 %v1519, %v1520
        %v1522 = vshll.u32 2475754826, %v1516
        %v1523 = vshrl.u32 2131351028, %v1517
        %v1524 = vor.u32 %v1522, %v1523
        %v1525 = vshll.u32 2131351028, %v1516
        %v1526 = vshrl.u32 2102212464, %v1517
        %v1527 = vor.u32 %v1525, %v1526
        %v1528 = vshll.u32 2102212464, %v1516
        %v1529 = vshrl.u32 920167782, %v1517
        %v1530 = vor.u32 %v1528, %v1529
        %v1531 = vshll.u32 920167782, %v1516
        %v1532 = vshrl.u32 1326507024, %v1517
        %v1533 = vor.u32 %v1531, %v1532
        %vm1534 = vcmp.lt.s32.totalorder %v1515, 1
        %vm1535 = vcmp.lt.s32.totalorder %v1515, 2
        %vm1536 = vcmp.lt.s32.totalorder %v1515, 3
        %vm1537 = vcmp.lt.s32.totalorder %v1515, 4
        %v1538 = vsel %vm1534, %v1518, %v1521
        %v1539 = vsel %vm1537, %v1527, 2102212464
        %v1540 = vsel %vm1536, %v1524, %v1539
        %v1541 = vsel %vm1535, %v1538, %v1540
        %v1542 = vsel %vm1534, %v1521, %v1524
        %v1543 = vsel %vm1537, %v1530, 920167782
        %v1544 = vsel %vm1536, %v1527, %v1543
        %v1545 = vsel %vm1535, %v1542, %v1544
        %v1546 = vsel %vm1534, %v1524, %v1527
        %v1547 = vsel %vm1537, %v1533, 1326507024
        %v1548 = vsel %vm1536, %v1530, %v1547
        %v1549 = vsel %vm1535, %v1546, %v1548
        %v1550 = vshll.u32 %v1510, 8
        %v1551 = vmul.u32.u64.compose %v1550, %v1549
        %v1552 = vextract.low.u32 %v1551
        %v1553 = vextract.high.u32 %v1551
        %v1554 = vmul.u32.u64.compose %v1550, %v1545
        %v1555 = vextract.low.u32 %v1554
        %v1556 = vextract.high.u32 %v1554
        %v1557 = vmul.u32 %v1550, %v1541
        %v1558 = vadd.s32 %v1553, %v1555
        %vm1559 = vc.u32 %v1553, %v1555
        %v1560 = vadd.s32 %v1556, 1
        %v1561 = vsel %vm1559, %v1560, %v1556
        %v1562 = vadd.s32 %v1557, %v1561
        %v1563 = vadd.s32 %v1562, 536870912
        %v1564 = vshrl.u32 %v1563, 30
        %v1565 = vshll.u32 %v1564, 30
        %v1566 = vsub.s32 %v1562, %v1565
        %vm1567 = vcmp.lt.s32.totalorder %v1566, 0
        %v1568 = vsub.s32 0, %v1566
        %v1569 = vsel %vm1567, %v1568, %v1566
        %v1570 = vclz %v1569
        %v1571 = vsub.s32 %v1570, 2
        %vm1572 = vcmp.gt.s32.totalorder 0, %v1571
        %v1573 = vsel %vm1572, 0, %v1571
        %v1574 = vsub.s32 32, %v1573
        %v1575 = vshll.u32 %v1566, %v1573
        %v1576 = vshrl.u32 %v1558, %v1574
        %v1577 = vor.u32 %v1575, %v1576
        %v1578 = vsub.s32 4294967266, %v1573
        %v1579 = vadd.s32 %v1578, 127
        %v1580 = vshll.u32 %v1579, 23
        %v1581 = vor.u32 4788187, %v1580
        %v1582 = vand.u32 2147483647, %v1581
        %v1584 = vcvt.s32.f32 %v1577
        %v1585 = vmul.f32 %v1584, %v1582
        %v1586 = vxor.u32 %v1585, 2147483648
        %v1587 = vsel %vm1504, %v1586, %v1585
        %v1588 = vsub.s32 4, %v1564
        %v1589 = vsel %vm1504, %v1588, %v1564
        %v1590 = vsel %vm1503, %v353, %v1587
        %v1591 = vsel %vm1503, 0, %v1589
        %v1592 = vcosq.f32.pop %v1590
        %v1593 = vsinq.f32.pop %v1590
        %vm1594 = vweird.f32 %v353
        %v1595 = vadd.s32 %v1591, 3
        %v1596 = vand.u32 %v1595, 3
        %vm1597 = vcmp.lt.s32.totalorder %v1596, 2
        %vm1598 = vcmp.eq.s32.totalorder %v1596, 0
        %v1599 = vxor.u32 %v1593, 2147483648
        %v1600 = vsel %vm1598, %v1592, %v1599
        %vm1601 = vcmp.eq.s32.totalorder %v1596, 2
        %v1602 = vxor.u32 %v1592, 2147483648
        %v1603 = vsel %vm1601, %v1602, %v1593
        %v1604 = vsel %vm1597, %v1600, %v1603
        %v1605 = vsel %vm1594, nan, %v1604
        %v1606 = vand.u32 2147483647, %v354
        %vm1607 = vcmp.le.f32.partialorder %v1606, 0.7853982
        %vm1608 = vcmp.lt.s32.totalorder %v354, 0
        %v1609 = vand.u32 %v354, 2139095040
        %v1610 = vshrl.u32 %v1609, 23
        %v1611 = vsub.s32 %v1610, 127
        %v1612 = vand.u32 2147483647, %v354
        %v1613 = vand.u32 %v1612, 8388607
        %v1614 = vor.u32 %v1613, 8388608
        %v1615 = vsub.s32 0, %v1614
        %v1616 = vadd.s32 %v1611, 1
        %vm1617 = vcmp.gt.s32.totalorder %v1616, 0
        %v1618 = vsel %vm1617, %v1616, 0
        %v1619 = vshrl.u32 %v1618, 5
        %v1620 = vand.u32 %v1618, 31
        %v1621 = vsub.s32 32, %v1620
        %v1622 = vshrl.u32 683565275, %v1621
        %v1623 = vshll.u32 683565275, %v1620
        %v1624 = vshrl.u32 2475754826, %v1621
        %v1625 = vor.u32 %v1623, %v1624
        %v1626 = vshll.u32 2475754826, %v1620
        %v1627 = vshrl.u32 2131351028, %v1621
        %v1628 = vor.u32 %v1626, %v1627
        %v1629 = vshll.u32 2131351028, %v1620
        %v1630 = vshrl.u32 2102212464, %v1621
        %v1631 = vor.u32 %v1629, %v1630
        %v1632 = vshll.u32 2102212464, %v1620
        %v1633 = vshrl.u32 920167782, %v1621
        %v1634 = vor.u32 %v1632, %v1633
        %v1635 = vshll.u32 920167782, %v1620
        %v1636 = vshrl.u32 1326507024, %v1621
        %v1637 = vor.u32 %v1635, %v1636
        %vm1638 = vcmp.lt.s32.totalorder %v1619, 1
        %vm1639 = vcmp.lt.s32.totalorder %v1619, 2
        %vm1640 = vcmp.lt.s32.totalorder %v1619, 3
        %vm1641 = vcmp.lt.s32.totalorder %v1619, 4
        %v1642 = vsel %vm1638, %v1622, %v1625
        %v1643 = vsel %vm1641, %v1631, 2102212464
        %v1644 = vsel %vm1640, %v1628, %v1643
        %v1645 = vsel %vm1639, %v1642, %v1644
        %v1646 = vsel %vm1638, %v1625, %v1628
        %v1647 = vsel %vm1641, %v1634, 920167782
        %v1648 = vsel %vm1640, %v1631, %v1647
        %v1649 = vsel %vm1639, %v1646, %v1648
        %v1650 = vsel %vm1638, %v1628, %v1631
        %v1651 = vsel %vm1641, %v1637, 1326507024
        %v1652 = vsel %vm1640, %v1634, %v1651
        %v1653 = vsel %vm1639, %v1650, %v1652
        %v1654 = vshll.u32 %v1614, 8
        %v1655 = vmul.u32.u64.compose %v1654, %v1653
        %v1656 = vextract.low.u32 %v1655
        %v1657 = vextract.high.u32 %v1655
        %v1658 = vmul.u32.u64.compose %v1654, %v1649
        %v1659 = vextract.low.u32 %v1658
        %v1660 = vextract.high.u32 %v1658
        %v1661 = vmul.u32 %v1654, %v1645
        %v1662 = vadd.s32 %v1657, %v1659
        %vm1663 = vc.u32 %v1657, %v1659
        %v1664 = vadd.s32 %v1660, 1
        %v1665 = vsel %vm1663, %v1664, %v1660
        %v1666 = vadd.s32 %v1661, %v1665
        %v1667 = vadd.s32 %v1666, 536870912
        %v1668 = vshrl.u32 %v1667, 30
        %v1669 = vshll.u32 %v1668, 30
        %v1670 = vsub.s32 %v1666, %v1669
        %vm1671 = vcmp.lt.s32.totalorder %v1670, 0
        %v1672 = vsub.s32 0, %v1670
        %v1673 = vsel %vm1671, %v1672, %v1670
        %v1674 = vclz %v1673
        %v1675 = vsub.s32 %v1674, 2
        %vm1676 = vcmp.gt.s32.totalorder 0, %v1675
        %v1677 = vsel %vm1676, 0, %v1675
        %v1678 = vsub.s32 32, %v1677
        %v1679 = vshll.u32 %v1670, %v1677
        %v1680 = vshrl.u32 %v1662, %v1678
        %v1681 = vor.u32 %v1679, %v1680
        %v1682 = vsub.s32 4294967266, %v1677
        %v1683 = vadd.s32 %v1682, 127
        %v1684 = vshll.u32 %v1683, 23
        %v1685 = vor.u32 4788187, %v1684
        %v1686 = vand.u32 2147483647, %v1685
        %v1688 = vcvt.s32.f32 %v1681
        %v1689 = vmul.f32 %v1688, %v1686
        %v1690 = vxor.u32 %v1689, 2147483648
        %v1691 = vsel %vm1608, %v1690, %v1689
        %v1692 = vsub.s32 4, %v1668
        %v1693 = vsel %vm1608, %v1692, %v1668
        %v1694 = vsel %vm1607, %v354, %v1691
        %v1695 = vsel %vm1607, 0, %v1693
        %v1696 = vcosq.f32.pop %v1694
        %v1697 = vsinq.f32.pop %v1694
        %vm1698 = vweird.f32 %v354
        %v1699 = vadd.s32 %v1695, 3
        %v1700 = vand.u32 %v1699, 3
        %vm1701 = vcmp.lt.s32.totalorder %v1700, 2
        %vm1702 = vcmp.eq.s32.totalorder %v1700, 0
        %v1703 = vxor.u32 %v1697, 2147483648
        %v1704 = vsel %vm1702, %v1696, %v1703
        %vm1705 = vcmp.eq.s32.totalorder %v1700, 2
        %v1706 = vxor.u32 %v1696, 2147483648
        %v1707 = vsel %vm1705, %v1706, %v1697
        %v1708 = vsel %vm1701, %v1704, %v1707
        %v1709 = vsel %vm1698, nan, %v1708
        %v1710 = vand.u32 2147483647, %v355
        %vm1711 = vcmp.le.f32.partialorder %v1710, 0.7853982
        %vm1712 = vcmp.lt.s32.totalorder %v355, 0
        %v1713 = vand.u32 %v355, 2139095040
        %v1714 = vshrl.u32 %v1713, 23
        %v1715 = vsub.s32 %v1714, 127
        %v1716 = vand.u32 2147483647, %v355
        %v1717 = vand.u32 %v1716, 8388607
        %v1718 = vor.u32 %v1717, 8388608
        %v1719 = vsub.s32 0, %v1718
        %v1720 = vadd.s32 %v1715, 1
        %vm1721 = vcmp.gt.s32.totalorder %v1720, 0
        %v1722 = vsel %vm1721, %v1720, 0
        %v1723 = vshrl.u32 %v1722, 5
        %v1724 = vand.u32 %v1722, 31
        %v1725 = vsub.s32 32, %v1724
        %v1726 = vshrl.u32 683565275, %v1725
        %v1727 = vshll.u32 683565275, %v1724
        %v1728 = vshrl.u32 2475754826, %v1725
        %v1729 = vor.u32 %v1727, %v1728
        %v1730 = vshll.u32 2475754826, %v1724
        %v1731 = vshrl.u32 2131351028, %v1725
        %v1732 = vor.u32 %v1730, %v1731
        %v1733 = vshll.u32 2131351028, %v1724
        %v1734 = vshrl.u32 2102212464, %v1725
        %v1735 = vor.u32 %v1733, %v1734
        %v1736 = vshll.u32 2102212464, %v1724
        %v1737 = vshrl.u32 920167782, %v1725
        %v1738 = vor.u32 %v1736, %v1737
        %v1739 = vshll.u32 920167782, %v1724
        %v1740 = vshrl.u32 1326507024, %v1725
        %v1741 = vor.u32 %v1739, %v1740
        %vm1742 = vcmp.lt.s32.totalorder %v1723, 1
        %vm1743 = vcmp.lt.s32.totalorder %v1723, 2
        %vm1744 = vcmp.lt.s32.totalorder %v1723, 3
        %vm1745 = vcmp.lt.s32.totalorder %v1723, 4
        %v1746 = vsel %vm1742, %v1726, %v1729
        %v1747 = vsel %vm1745, %v1735, 2102212464
        %v1748 = vsel %vm1744, %v1732, %v1747
        %v1749 = vsel %vm1743, %v1746, %v1748
        %v1750 = vsel %vm1742, %v1729, %v1732
        %v1751 = vsel %vm1745, %v1738, 920167782
        %v1752 = vsel %vm1744, %v1735, %v1751
        %v1753 = vsel %vm1743, %v1750, %v1752
        %v1754 = vsel %vm1742, %v1732, %v1735
        %v1755 = vsel %vm1745, %v1741, 1326507024
        %v1756 = vsel %vm1744, %v1738, %v1755
        %v1757 = vsel %vm1743, %v1754, %v1756
        %v1758 = vshll.u32 %v1718, 8
        %v1759 = vmul.u32.u64.compose %v1758, %v1757
        %v1760 = vextract.low.u32 %v1759
        %v1761 = vextract.high.u32 %v1759
        %v1762 = vmul.u32.u64.compose %v1758, %v1753
        %v1763 = vextract.low.u32 %v1762
        %v1764 = vextract.high.u32 %v1762
        %v1765 = vmul.u32 %v1758, %v1749
        %v1766 = vadd.s32 %v1761, %v1763
        %vm1767 = vc.u32 %v1761, %v1763
        %v1768 = vadd.s32 %v1764, 1
        %v1769 = vsel %vm1767, %v1768, %v1764
        %v1770 = vadd.s32 %v1765, %v1769
        %v1771 = vadd.s32 %v1770, 536870912
        %v1772 = vshrl.u32 %v1771, 30
        %v1773 = vshll.u32 %v1772, 30
        %v1774 = vsub.s32 %v1770, %v1773
        %vm1775 = vcmp.lt.s32.totalorder %v1774, 0
        %v1776 = vsub.s32 0, %v1774
        %v1777 = vsel %vm1775, %v1776, %v1774
        %v1778 = vclz %v1777
        %v1779 = vsub.s32 %v1778, 2
        %vm1780 = vcmp.gt.s32.totalorder 0, %v1779
        %v1781 = vsel %vm1780, 0, %v1779
        %v1782 = vsub.s32 32, %v1781
        %v1783 = vshll.u32 %v1774, %v1781
        %v1784 = vshrl.u32 %v1766, %v1782
        %v1785 = vor.u32 %v1783, %v1784
        %v1786 = vsub.s32 4294967266, %v1781
        %v1787 = vadd.s32 %v1786, 127
        %v1788 = vshll.u32 %v1787, 23
        %v1789 = vor.u32 4788187, %v1788
        %v1790 = vand.u32 2147483647, %v1789
        %v1792 = vcvt.s32.f32 %v1785
        %v1793 = vmul.f32 %v1792, %v1790
        %v1794 = vxor.u32 %v1793, 2147483648
        %v1795 = vsel %vm1712, %v1794, %v1793
        %v1796 = vsub.s32 4, %v1772
        %v1797 = vsel %vm1712, %v1796, %v1772
        %v1798 = vsel %vm1711, %v355, %v1795
        %v1799 = vsel %vm1711, 0, %v1797
        %v1800 = vcosq.f32.pop %v1798
        %v1801 = vsinq.f32.pop %v1798
        %vm1802 = vweird.f32 %v355
        %v1803 = vadd.s32 %v1799, 3
        %v1804 = vand.u32 %v1803, 3
        %vm1805 = vcmp.lt.s32.totalorder %v1804, 2
        %vm1806 = vcmp.eq.s32.totalorder %v1804, 0
        %v1807 = vxor.u32 %v1801, 2147483648
        %v1808 = vsel %vm1806, %v1800, %v1807
        %vm1809 = vcmp.eq.s32.totalorder %v1804, 2
        %v1810 = vxor.u32 %v1800, 2147483648
        %v1811 = vsel %vm1809, %v1810, %v1801
        %v1812 = vsel %vm1805, %v1808, %v1811
        %v1813 = vsel %vm1802, nan, %v1812
        %v1814 = vand.u32 2147483647, %v356
        %vm1815 = vcmp.le.f32.partialorder %v1814, 0.7853982
        %vm1816 = vcmp.lt.s32.totalorder %v356, 0
        %v1817 = vand.u32 %v356, 2139095040
        %v1818 = vshrl.u32 %v1817, 23
        %v1819 = vsub.s32 %v1818, 127
        %v1820 = vand.u32 2147483647, %v356
        %v1821 = vand.u32 %v1820, 8388607
        %v1822 = vor.u32 %v1821, 8388608
        %v1823 = vsub.s32 0, %v1822
        %v1824 = vadd.s32 %v1819, 1
        %vm1825 = vcmp.gt.s32.totalorder %v1824, 0
        %v1826 = vsel %vm1825, %v1824, 0
        %v1827 = vshrl.u32 %v1826, 5
        %v1828 = vand.u32 %v1826, 31
        %v1829 = vsub.s32 32, %v1828
        %v1830 = vshrl.u32 683565275, %v1829
        %v1831 = vshll.u32 683565275, %v1828
        %v1832 = vshrl.u32 2475754826, %v1829
        %v1833 = vor.u32 %v1831, %v1832
        %v1834 = vshll.u32 2475754826, %v1828
        %v1835 = vshrl.u32 2131351028, %v1829
        %v1836 = vor.u32 %v1834, %v1835
        %v1837 = vshll.u32 2131351028, %v1828
        %v1838 = vshrl.u32 2102212464, %v1829
        %v1839 = vor.u32 %v1837, %v1838
        %v1840 = vshll.u32 2102212464, %v1828
        %v1841 = vshrl.u32 920167782, %v1829
        %v1842 = vor.u32 %v1840, %v1841
        %v1843 = vshll.u32 920167782, %v1828
        %v1844 = vshrl.u32 1326507024, %v1829
        %v1845 = vor.u32 %v1843, %v1844
        %vm1846 = vcmp.lt.s32.totalorder %v1827, 1
        %vm1847 = vcmp.lt.s32.totalorder %v1827, 2
        %vm1848 = vcmp.lt.s32.totalorder %v1827, 3
        %vm1849 = vcmp.lt.s32.totalorder %v1827, 4
        %v1850 = vsel %vm1846, %v1830, %v1833
        %v1851 = vsel %vm1849, %v1839, 2102212464
        %v1852 = vsel %vm1848, %v1836, %v1851
        %v1853 = vsel %vm1847, %v1850, %v1852
        %v1854 = vsel %vm1846, %v1833, %v1836
        %v1855 = vsel %vm1849, %v1842, 920167782
        %v1856 = vsel %vm1848, %v1839, %v1855
        %v1857 = vsel %vm1847, %v1854, %v1856
        %v1858 = vsel %vm1846, %v1836, %v1839
        %v1859 = vsel %vm1849, %v1845, 1326507024
        %v1860 = vsel %vm1848, %v1842, %v1859
        %v1861 = vsel %vm1847, %v1858, %v1860
        %v1862 = vshll.u32 %v1822, 8
        %v1863 = vmul.u32.u64.compose %v1862, %v1861
        %v1864 = vextract.low.u32 %v1863
        %v1865 = vextract.high.u32 %v1863
        %v1866 = vmul.u32.u64.compose %v1862, %v1857
        %v1867 = vextract.low.u32 %v1866
        %v1868 = vextract.high.u32 %v1866
        %v1869 = vmul.u32 %v1862, %v1853
        %v1870 = vadd.s32 %v1865, %v1867
        %vm1871 = vc.u32 %v1865, %v1867
        %v1872 = vadd.s32 %v1868, 1
        %v1873 = vsel %vm1871, %v1872, %v1868
        %v1874 = vadd.s32 %v1869, %v1873
        %v1875 = vadd.s32 %v1874, 536870912
        %v1876 = vshrl.u32 %v1875, 30
        %v1877 = vshll.u32 %v1876, 30
        %v1878 = vsub.s32 %v1874, %v1877
        %vm1879 = vcmp.lt.s32.totalorder %v1878, 0
        %v1880 = vsub.s32 0, %v1878
        %v1881 = vsel %vm1879, %v1880, %v1878
        %v1882 = vclz %v1881
        %v1883 = vsub.s32 %v1882, 2
        %vm1884 = vcmp.gt.s32.totalorder 0, %v1883
        %v1885 = vsel %vm1884, 0, %v1883
        %v1886 = vsub.s32 32, %v1885
        %v1887 = vshll.u32 %v1878, %v1885
        %v1888 = vshrl.u32 %v1870, %v1886
        %v1889 = vor.u32 %v1887, %v1888
        %v1890 = vsub.s32 4294967266, %v1885
        %v1891 = vadd.s32 %v1890, 127
        %v1892 = vshll.u32 %v1891, 23
        %v1893 = vor.u32 4788187, %v1892
        %v1894 = vand.u32 2147483647, %v1893
        %v1896 = vcvt.s32.f32 %v1889
        %v1897 = vmul.f32 %v1896, %v1894
        %v1898 = vxor.u32 %v1897, 2147483648
        %v1899 = vsel %vm1816, %v1898, %v1897
        %v1900 = vsub.s32 4, %v1876
        %v1901 = vsel %vm1816, %v1900, %v1876
        %v1902 = vsel %vm1815, %v356, %v1899
        %v1903 = vsel %vm1815, 0, %v1901
        %v1904 = vcosq.f32.pop %v1902
        %v1905 = vsinq.f32.pop %v1902
        %vm1906 = vweird.f32 %v356
        %v1907 = vadd.s32 %v1903, 3
        %v1908 = vand.u32 %v1907, 3
        %vm1909 = vcmp.lt.s32.totalorder %v1908, 2
        %vm1910 = vcmp.eq.s32.totalorder %v1908, 0
        %v1911 = vxor.u32 %v1905, 2147483648
        %v1912 = vsel %vm1910, %v1904, %v1911
        %vm1913 = vcmp.eq.s32.totalorder %v1908, 2
        %v1914 = vxor.u32 %v1904, 2147483648
        %v1915 = vsel %vm1913, %v1914, %v1905
        %v1916 = vsel %vm1909, %v1912, %v1915
        %v1917 = vsel %vm1906, nan, %v1916
        %v1918 = vand.u32 2147483647, %v357
        %vm1919 = vcmp.le.f32.partialorder %v1918, 0.7853982
        %vm1920 = vcmp.lt.s32.totalorder %v357, 0
        %v1921 = vand.u32 %v357, 2139095040
        %v1922 = vshrl.u32 %v1921, 23
        %v1923 = vsub.s32 %v1922, 127
        %v1924 = vand.u32 2147483647, %v357
        %v1925 = vand.u32 %v1924, 8388607
        %v1926 = vor.u32 %v1925, 8388608
        %v1927 = vsub.s32 0, %v1926
        %v1928 = vadd.s32 %v1923, 1
        %vm1929 = vcmp.gt.s32.totalorder %v1928, 0
        %v1930 = vsel %vm1929, %v1928, 0
        %v1931 = vshrl.u32 %v1930, 5
        %v1932 = vand.u32 %v1930, 31
        %v1933 = vsub.s32 32, %v1932
        %v1934 = vshrl.u32 683565275, %v1933
        %v1935 = vshll.u32 683565275, %v1932
        %v1936 = vshrl.u32 2475754826, %v1933
        %v1937 = vor.u32 %v1935, %v1936
        %v1938 = vshll.u32 2475754826, %v1932
        %v1939 = vshrl.u32 2131351028, %v1933
        %v1940 = vor.u32 %v1938, %v1939
        %v1941 = vshll.u32 2131351028, %v1932
        %v1942 = vshrl.u32 2102212464, %v1933
        %v1943 = vor.u32 %v1941, %v1942
        %v1944 = vshll.u32 2102212464, %v1932
        %v1945 = vshrl.u32 920167782, %v1933
        %v1946 = vor.u32 %v1944, %v1945
        %v1947 = vshll.u32 920167782, %v1932
        %v1948 = vshrl.u32 1326507024, %v1933
        %v1949 = vor.u32 %v1947, %v1948
        %vm1950 = vcmp.lt.s32.totalorder %v1931, 1
        %vm1951 = vcmp.lt.s32.totalorder %v1931, 2
        %vm1952 = vcmp.lt.s32.totalorder %v1931, 3
        %vm1953 = vcmp.lt.s32.totalorder %v1931, 4
        %v1954 = vsel %vm1950, %v1934, %v1937
        %v1955 = vsel %vm1953, %v1943, 2102212464
        %v1956 = vsel %vm1952, %v1940, %v1955
        %v1957 = vsel %vm1951, %v1954, %v1956
        %v1958 = vsel %vm1950, %v1937, %v1940
        %v1959 = vsel %vm1953, %v1946, 920167782
        %v1960 = vsel %vm1952, %v1943, %v1959
        %v1961 = vsel %vm1951, %v1958, %v1960
        %v1962 = vsel %vm1950, %v1940, %v1943
        %v1963 = vsel %vm1953, %v1949, 1326507024
        %v1964 = vsel %vm1952, %v1946, %v1963
        %v1965 = vsel %vm1951, %v1962, %v1964
        %v1966 = vshll.u32 %v1926, 8
        %v1967 = vmul.u32.u64.compose %v1966, %v1965
        %v1968 = vextract.low.u32 %v1967
        %v1969 = vextract.high.u32 %v1967
        %v1970 = vmul.u32.u64.compose %v1966, %v1961
        %v1971 = vextract.low.u32 %v1970
        %v1972 = vextract.high.u32 %v1970
        %v1973 = vmul.u32 %v1966, %v1957
        %v1974 = vadd.s32 %v1969, %v1971
        %vm1975 = vc.u32 %v1969, %v1971
        %v1976 = vadd.s32 %v1972, 1
        %v1977 = vsel %vm1975, %v1976, %v1972
        %v1978 = vadd.s32 %v1973, %v1977
        %v1979 = vadd.s32 %v1978, 536870912
        %v1980 = vshrl.u32 %v1979, 30
        %v1981 = vshll.u32 %v1980, 30
        %v1982 = vsub.s32 %v1978, %v1981
        %vm1983 = vcmp.lt.s32.totalorder %v1982, 0
        %v1984 = vsub.s32 0, %v1982
        %v1985 = vsel %vm1983, %v1984, %v1982
        %v1986 = vclz %v1985
        %v1987 = vsub.s32 %v1986, 2
        %vm1988 = vcmp.gt.s32.totalorder 0, %v1987
        %v1989 = vsel %vm1988, 0, %v1987
        %v1990 = vsub.s32 32, %v1989
        %v1991 = vshll.u32 %v1982, %v1989
        %v1992 = vshrl.u32 %v1974, %v1990
        %v1993 = vor.u32 %v1991, %v1992
        %v1994 = vsub.s32 4294967266, %v1989
        %v1995 = vadd.s32 %v1994, 127
        %v1996 = vshll.u32 %v1995, 23
        %v1997 = vor.u32 4788187, %v1996
        %v1998 = vand.u32 2147483647, %v1997
        %v2000 = vcvt.s32.f32 %v1993
        %v2001 = vmul.f32 %v2000, %v1998
        %v2002 = vxor.u32 %v2001, 2147483648
        %v2003 = vsel %vm1920, %v2002, %v2001
        %v2004 = vsub.s32 4, %v1980
        %v2005 = vsel %vm1920, %v2004, %v1980
        %v2006 = vsel %vm1919, %v357, %v2003
        %v2007 = vsel %vm1919, 0, %v2005
        %v2008 = vcosq.f32.pop %v2006
        %v2009 = vsinq.f32.pop %v2006
        %vm2010 = vweird.f32 %v357
        %v2011 = vadd.s32 %v2007, 3
        %v2012 = vand.u32 %v2011, 3
        %vm2013 = vcmp.lt.s32.totalorder %v2012, 2
        %vm2014 = vcmp.eq.s32.totalorder %v2012, 0
        %v2015 = vxor.u32 %v2009, 2147483648
        %v2016 = vsel %vm2014, %v2008, %v2015
        %vm2017 = vcmp.eq.s32.totalorder %v2012, 2
        %v2018 = vxor.u32 %v2008, 2147483648
        %v2019 = vsel %vm2017, %v2018, %v2009
        %v2020 = vsel %vm2013, %v2016, %v2019
        %v2021 = vsel %vm2010, nan, %v2020
        %v2022 = vld [vmem:[#allocation2] sm:$0xff]
        %v2023 = vld [vmem:[#allocation2 + $0x8] sm:$0xff]
        %v2024 = vld [vmem:[#allocation2 + $0x10] sm:$0xff]
        %v2025 = vld [vmem:[#allocation2 + $0x18] sm:$0xff]
        %v2026 = vld [vmem:[#allocation2 + $0x20] sm:$0xff]
        %v2027 = vld [vmem:[#allocation2 + $0x28] sm:$0xff]
        %v2028 = vld [vmem:[#allocation2 + $0x30] sm:$0xff]
        %v2029 = vld [vmem:[#allocation2 + $0x38] sm:$0xff]
        %v2030 = vld [vmem:[#allocation2 + $0x40] sm:$0xff]
        %v2031 = vld [vmem:[#allocation2 + $0x48] sm:$0xff]
        %v2032 = vld [vmem:[#allocation2 + $0x50] sm:$0xff]
        %v2033 = vld [vmem:[#allocation2 + $0x58] sm:$0xff]
        %v2034 = vld [vmem:[#allocation2 + $0x60] sm:$0xff]
        %v2035 = vld [vmem:[#allocation2 + $0x68] sm:$0xff]
        %v2036 = vld [vmem:[#allocation2 + $0x70] sm:$0xff]
        %v2037 = vld [vmem:[#allocation2 + $0x78] sm:$0xff]
        %v2038 = vlaneseq
        %v2039 = vshrl.u32 %v2038, 7
        %v2040 = vsub.s32 0, %v2039
        %v2041 = vrot.slane %v232, %v2040
        %2042 = vmatprep.subr.mxu0 0.0
        %2043 = vmatpush1.msra.mxu0 %v2022
        %2044 = vmatprep.subr.mxu0 0.0
        %2045 = vmatpush1.msra.mxu0 %v2023
        %2046 = vmatprep.subr.mxu0 0.0
        %2047 = vmatpush1.msra.mxu0 %v2024
        %2048 = vmatprep.subr.mxu0 0.0
        %2049 = vmatpush1.msra.mxu0 %v2025
        %2050 = vmatprep.subr.mxu0 0.0
        %2051 = vmatpush1.msra.mxu0 %v2026
        %2052 = vmatprep.subr.mxu0 0.0
        %2053 = vmatpush1.msra.mxu0 %v2027
        %2054 = vmatprep.subr.mxu0 0.0
        %2055 = vmatpush1.msra.mxu0 %v2028
        %2056 = vmatprep.subr.mxu0 0.0
        %2057 = vmatpush1.msra.mxu0 %v2029
        %2058 = vmatprep.subr.mxu0 0.0
        %2059 = vmatpush1.msra.mxu0 %v2030
        %2060 = vmatprep.subr.mxu0 0.0
        %2061 = vmatpush1.msra.mxu0 %v2031
        %2062 = vmatprep.subr.mxu0 0.0
        %2063 = vmatpush1.msra.mxu0 %v2032
        %2064 = vmatprep.subr.mxu0 0.0
        %2065 = vmatpush1.msra.mxu0 %v2033
        %2066 = vmatprep.subr.mxu0 0.0
        %2067 = vmatpush1.msra.mxu0 %v2034
        %2068 = vmatprep.subr.mxu0 0.0
        %2069 = vmatpush1.msra.mxu0 %v2035
        %2070 = vmatprep.subr.mxu0 0.0
        %2071 = vmatpush1.msra.mxu0 %v2036
        %2072 = vmatprep.subr.mxu0 0.0
        %2073 = vmatpush1.msra.mxu0 %v2037
        %2074 = vmatprep.subr.mxu0 0.0
        %2075 = vmatpush1.msra.mxu0 0.0
        %2076 = vmatprep.subr.mxu0 0.0
        %2077 = vmatpush1.msra.mxu0 0.0
        %2078 = vmatprep.subr.mxu0 0.0
        %2079 = vmatpush1.msra.mxu0 0.0
        %2080 = vmatprep.subr.mxu0 0.0
        %2081 = vmatpush1.msra.mxu0 0.0
        %2082 = vmatprep.subr.mxu0 0.0
        %2083 = vmatpush1.msra.mxu0 0.0
        %2084 = vmatprep.subr.mxu0 0.0
        %2085 = vmatpush1.msra.mxu0 0.0
        %2086 = vmatprep.subr.mxu0 0.0
        %2087 = vmatpush1.msra.mxu0 0.0
        %2088 = vmatprep.subr.mxu0 0.0
        %2089 = vmatpush1.msra.mxu0 0.0
        %2090 = vmatprep.subr.mxu0 0.0
        %2091 = vmatpush1.msra.mxu0 0.0
        %2092 = vmatprep.subr.mxu0 0.0
        %2093 = vmatpush1.msra.mxu0 0.0
        %2094 = vmatprep.subr.mxu0 0.0
        %2095 = vmatpush1.msra.mxu0 0.0
        %2096 = vmatprep.subr.mxu0 0.0
        %2097 = vmatpush1.msra.mxu0 0.0
        %2098 = vmatprep.subr.mxu0 0.0
        %2099 = vmatpush1.msra.mxu0 0.0
        %2100 = vmatprep.subr.mxu0 0.0
        %2101 = vmatpush1.msra.mxu0 0.0
        %2102 = vmatprep.subr.mxu0 0.0
        %2103 = vmatpush1.msra.mxu0 0.0
        %2104 = vmatprep.subr.mxu0 0.0
        %2105 = vmatpush1.msra.mxu0 0.0
        %2106 = vmatprep.mubr.f32.mxu0 0.0
        %2107 = vmatmul.mubr.f32.gmra.mrb[0].mxu0 %v461
        %v2108 = vpop.f32.mrb[0].mxu0
        %v2109 = vadd.f32 %v2041, %v2108
        %v2110 = vpop.f32.mrb[0].mxu0
        %2111 = vmatprep.mubr.f32.mxu0 0.0
        %2112 = vmatmul.mubr.f32.gmra.mrb[0].mxu0 %v565
        %v2113 = vpop.f32.mrb[0].mxu0
        %v2114 = vadd.f32 %v2041, %v2113
        %v2115 = vpop.f32.mrb[0].mxu0
        %2116 = vmatprep.mubr.f32.mxu0 0.0
        %2117 = vmatmul.mubr.f32.gmra.mrb[0].mxu0 %v669
        %v2118 = vpop.f32.mrb[0].mxu0
        %v2119 = vadd.f32 %v2041, %v2118
        %v2120 = vpop.f32.mrb[0].mxu0
        %2121 = vmatprep.mubr.f32.mxu0 0.0
        %2122 = vmatmul.mubr.f32.gmra.mrb[0].mxu0 %v773
        %v2123 = vpop.f32.mrb[0].mxu0
        %v2124 = vadd.f32 %v2041, %v2123
        %v2125 = vpop.f32.mrb[0].mxu0
        %2126 = vmatprep.mubr.f32.mxu0 0.0
        %2127 = vmatmul.mubr.f32.gmra.mrb[0].mxu0 %v877
        %v2128 = vpop.f32.mrb[0].mxu0
        %v2129 = vadd.f32 %v2041, %v2128
        %v2130 = vpop.f32.mrb[0].mxu0
        %2131 = vmatprep.mubr.f32.mxu0 0.0
        %2132 = vmatmul.mubr.f32.gmra.mrb[0].mxu0 %v981
        %v2133 = vpop.f32.mrb[0].mxu0
        %v2134 = vadd.f32 %v2041, %v2133
        %v2135 = vpop.f32.mrb[0].mxu0
        %2136 = vmatprep.mubr.f32.mxu0 0.0
        %2137 = vmatmul.mubr.f32.gmra.mrb[0].mxu0 %v1085
        %v2138 = vpop.f32.mrb[0].mxu0
        %v2139 = vadd.f32 %v2041, %v2138
        %v2140 = vpop.f32.mrb[0].mxu0
        %2141 = vmatprep.mubr.f32.mxu0 0.0
        %2142 = vmatmul.mubr.f32.gmra.mrb[0].mxu0 %v1189
        %v2143 = vpop.f32.mrb[0].mxu0
        %v2144 = vadd.f32 %v2041, %v2143
        %v2145 = vpop.f32.mrb[0].mxu0
        %2146 = vmatprep.mubr.f32.mxu0 0.0
        %2147 = vmatmul.mubr.f32.gmra.mrb[0].mxu0 %v1293
        %v2148 = vpop.f32.mrb[0].mxu0
        %v2149 = vadd.f32 %v2041, %v2148
        %v2150 = vpop.f32.mrb[0].mxu0
        %2151 = vmatprep.mubr.f32.mxu0 0.0
        %2152 = vmatmul.mubr.f32.gmra.mrb[0].mxu0 %v1397
        %v2153 = vpop.f32.mrb[0].mxu0
        %v2154 = vadd.f32 %v2041, %v2153
        %v2155 = vpop.f32.mrb[0].mxu0
        %2156 = vmatprep.mubr.f32.mxu0 0.0
        %2157 = vmatmul.mubr.f32.gmra.mrb[0].mxu0 %v1501
        %v2158 = vpop.f32.mrb[0].mxu0
        %v2159 = vadd.f32 %v2041, %v2158
        %v2160 = vpop.f32.mrb[0].mxu0
        %2161 = vmatprep.mubr.f32.mxu0 0.0
        %2162 = vmatmul.mubr.f32.gmra.mrb[0].mxu0 %v1605
        %v2163 = vpop.f32.mrb[0].mxu0
        %v2164 = vadd.f32 %v2041, %v2163
        %v2165 = vpop.f32.mrb[0].mxu0
        %2166 = vmatprep.mubr.f32.mxu0 0.0
        %2167 = vmatmul.mubr.f32.gmra.mrb[0].mxu0 %v1709
        %v2168 = vpop.f32.mrb[0].mxu0
        %v2169 = vadd.f32 %v2041, %v2168
        %v2170 = vpop.f32.mrb[0].mxu0
        %2171 = vmatprep.mubr.f32.mxu0 0.0
        %2172 = vmatmul.mubr.f32.gmra.mrb[0].mxu0 %v1813
        %v2173 = vpop.f32.mrb[0].mxu0
        %v2174 = vadd.f32 %v2041, %v2173
        %v2175 = vpop.f32.mrb[0].mxu0
        %2176 = vmatprep.mubr.f32.mxu0 0.0
        %2177 = vmatmul.mubr.f32.gmra.mrb[0].mxu0 %v1917
        %v2178 = vpop.f32.mrb[0].mxu0
        %v2179 = vadd.f32 %v2041, %v2178
        %v2180 = vpop.f32.mrb[0].mxu0
        %2181 = vmatprep.mubr.f32.mxu0 0.0
        %2182 = vmatmul.mubr.f32.gmra.mrb[0].mxu0 %v2021
        %v2183 = vpop.f32.mrb[0].mxu0
        %v2184 = vadd.f32 %v2041, %v2183
        %v2185 = vpop.f32.mrb[0].mxu0
        %2186 = vdwg.mxu0
        %v2187 = vmul.f32 %v2109, 0.5
        %v2188 = vmul.f32 %v2114, 0.5
        %v2189 = vmul.f32 %v2119, 0.5
        %v2190 = vmul.f32 %v2124, 0.5
        %v2191 = vmul.f32 %v2129, 0.5
        %v2192 = vmul.f32 %v2134, 0.5
        %v2193 = vmul.f32 %v2139, 0.5
        %v2194 = vmul.f32 %v2144, 0.5
        %v2195 = vmul.f32 %v2149, 0.5
        %v2196 = vmul.f32 %v2154, 0.5
        %v2197 = vmul.f32 %v2159, 0.5
        %v2198 = vmul.f32 %v2164, 0.5
        %v2199 = vmul.f32 %v2169, 0.5
        %v2200 = vmul.f32 %v2174, 0.5
        %v2201 = vmul.f32 %v2179, 0.5
        %v2202 = vmul.f32 %v2184, 0.5
        %v2203 = vmul.f32 %v2109, 0.70710677
        %v2204 = vmul.f32 %v2114, 0.70710677
        %v2205 = vmul.f32 %v2119, 0.70710677
        %v2206 = vmul.f32 %v2124, 0.70710677
        %v2207 = vmul.f32 %v2129, 0.70710677
        %v2208 = vmul.f32 %v2134, 0.70710677
        %v2209 = vmul.f32 %v2139, 0.70710677
        %v2210 = vmul.f32 %v2144, 0.70710677
        %v2211 = vmul.f32 %v2149, 0.70710677
        %v2212 = vmul.f32 %v2154, 0.70710677
        %v2213 = vmul.f32 %v2159, 0.70710677
        %v2214 = vmul.f32 %v2164, 0.70710677
        %v2215 = vmul.f32 %v2169, 0.70710677
        %v2216 = vmul.f32 %v2174, 0.70710677
        %v2217 = vmul.f32 %v2179, 0.70710677
        %v2218 = vmul.f32 %v2184, 0.70710677
        %v2219 = verf.f32.pop %v2203
        %v2220 = verf.f32.pop %v2204
        %v2221 = verf.f32.pop %v2205
        %v2222 = verf.f32.pop %v2206
        %v2223 = verf.f32.pop %v2207
        %v2224 = verf.f32.pop %v2208
        %v2225 = verf.f32.pop %v2209
        %v2226 = verf.f32.pop %v2210
        %v2227 = verf.f32.pop %v2211
        %v2228 = verf.f32.pop %v2212
        %v2229 = verf.f32.pop %v2213
        %v2230 = verf.f32.pop %v2214
        %v2231 = verf.f32.pop %v2215
        %v2232 = verf.f32.pop %v2216
        %v2233 = verf.f32.pop %v2217
        %v2234 = verf.f32.pop %v2218
        %v2235 = vadd.f32 %v2219, 1.0
        %v2236 = vadd.f32 %v2220, 1.0
        %v2237 = vadd.f32 %v2221, 1.0
        %v2238 = vadd.f32 %v2222, 1.0
        %v2239 = vadd.f32 %v2223, 1.0
        %v2240 = vadd.f32 %v2224, 1.0
        %v2241 = vadd.f32 %v2225, 1.0
        %v2242 = vadd.f32 %v2226, 1.0
        %v2243 = vadd.f32 %v2227, 1.0
        %v2244 = vadd.f32 %v2228, 1.0
        %v2245 = vadd.f32 %v2229, 1.0
        %v2246 = vadd.f32 %v2230, 1.0
        %v2247 = vadd.f32 %v2231, 1.0
        %v2248 = vadd.f32 %v2232, 1.0
        %v2249 = vadd.f32 %v2233, 1.0
        %v2250 = vadd.f32 %v2234, 1.0
        %v2251 = vmul.f32 %v2187, %v2235
        %v2252 = vmul.f32 %v2188, %v2236
        %v2253 = vmul.f32 %v2189, %v2237
        %v2254 = vmul.f32 %v2190, %v2238
        %v2255 = vmul.f32 %v2191, %v2239
        %v2256 = vmul.f32 %v2192, %v2240
        %v2257 = vmul.f32 %v2193, %v2241
        %v2258 = vmul.f32 %v2194, %v2242
        %v2259 = vmul.f32 %v2195, %v2243
        %v2260 = vmul.f32 %v2196, %v2244
        %v2261 = vmul.f32 %v2197, %v2245
        %v2262 = vmul.f32 %v2198, %v2246
        %v2263 = vmul.f32 %v2199, %v2247
        %v2264 = vmul.f32 %v2200, %v2248
        %v2265 = vmul.f32 %v2201, %v2249
        %v2266 = vmul.f32 %v2202, %v2250
        %s2267 = scalar_lea.vmem [#allocation2], 128
        %v2268 = vld [vmem:[%s2267] sm:$0xff]
        %v2269 = vld [vmem:[%s2267 + $0x8] sm:$0xff]
        %v2270 = vld [vmem:[%s2267 + $0x10] sm:$0xff]
        %v2271 = vld [vmem:[%s2267 + $0x18] sm:$0xff]
        %v2272 = vld [vmem:[%s2267 + $0x20] sm:$0xff]
        %v2273 = vld [vmem:[%s2267 + $0x28] sm:$0xff]
        %v2274 = vld [vmem:[%s2267 + $0x30] sm:$0xff]
        %v2275 = vld [vmem:[%s2267 + $0x38] sm:$0xff]
        %v2276 = vld [vmem:[%s2267 + $0x40] sm:$0xff]
        %v2277 = vld [vmem:[%s2267 + $0x48] sm:$0xff]
        %v2278 = vld [vmem:[%s2267 + $0x50] sm:$0xff]
        %v2279 = vld [vmem:[%s2267 + $0x58] sm:$0xff]
        %v2280 = vld [vmem:[%s2267 + $0x60] sm:$0xff]
        %v2281 = vld [vmem:[%s2267 + $0x68] sm:$0xff]
        %v2282 = vld [vmem:[%s2267 + $0x70] sm:$0xff]
        %v2283 = vld [vmem:[%s2267 + $0x78] sm:$0xff]
        %v2284 = vlaneseq
        %v2285 = vshrl.u32 %v2284, 7
        %v2286 = vsub.s32 0, %v2285
        %v2287 = vrot.slane %v233, %v2286
        %2288 = vmatprep.subr.mxu0 0.0
        %2289 = vmatpush1.msra.mxu0 %v2268
        %2290 = vmatprep.subr.mxu0 0.0
        %2291 = vmatpush1.msra.mxu0 %v2269
        %2292 = vmatprep.subr.mxu0 0.0
        %2293 = vmatpush1.msra.mxu0 %v2270
        %2294 = vmatprep.subr.mxu0 0.0
        %2295 = vmatpush1.msra.mxu0 %v2271
        %2296 = vmatprep.subr.mxu0 0.0
        %2297 = vmatpush1.msra.mxu0 %v2272
        %2298 = vmatprep.subr.mxu0 0.0
        %2299 = vmatpush1.msra.mxu0 %v2273
        %2300 = vmatprep.subr.mxu0 0.0
        %2301 = vmatpush1.msra.mxu0 %v2274
        %2302 = vmatprep.subr.mxu0 0.0
        %2303 = vmatpush1.msra.mxu0 %v2275
        %2304 = vmatprep.subr.mxu0 0.0
        %2305 = vmatpush1.msra.mxu0 %v2276
        %2306 = vmatprep.subr.mxu0 0.0
        %2307 = vmatpush1.msra.mxu0 %v2277
        %2308 = vmatprep.subr.mxu0 0.0
        %2309 = vmatpush1.msra.mxu0 %v2278
        %2310 = vmatprep.subr.mxu0 0.0
        %2311 = vmatpush1.msra.mxu0 %v2279
        %2312 = vmatprep.subr.mxu0 0.0
        %2313 = vmatpush1.msra.mxu0 %v2280
        %2314 = vmatprep.subr.mxu0 0.0
        %2315 = vmatpush1.msra.mxu0 %v2281
        %2316 = vmatprep.subr.mxu0 0.0
        %2317 = vmatpush1.msra.mxu0 %v2282
        %2318 = vmatprep.subr.mxu0 0.0
        %2319 = vmatpush1.msra.mxu0 %v2283
        %2320 = vmatprep.subr.mxu0 0.0
        %2321 = vmatpush1.msra.mxu0 0.0
        %2322 = vmatprep.subr.mxu0 0.0
        %2323 = vmatpush1.msra.mxu0 0.0
        %2324 = vmatprep.subr.mxu0 0.0
        %2325 = vmatpush1.msra.mxu0 0.0
        %2326 = vmatprep.subr.mxu0 0.0
        %2327 = vmatpush1.msra.mxu0 0.0
        %2328 = vmatprep.subr.mxu0 0.0
        %2329 = vmatpush1.msra.mxu0 0.0
        %2330 = vmatprep.subr.mxu0 0.0
        %2331 = vmatpush1.msra.mxu0 0.0
        %2332 = vmatprep.subr.mxu0 0.0
        %2333 = vmatpush1.msra.mxu0 0.0
        %2334 = vmatprep.subr.mxu0 0.0
        %2335 = vmatpush1.msra.mxu0 0.0
        %2336 = vmatprep.subr.mxu0 0.0
        %2337 = vmatpush1.msra.mxu0 0.0
        %2338 = vmatprep.subr.mxu0 0.0
        %2339 = vmatpush1.msra.mxu0 0.0
        %2340 = vmatprep.subr.mxu0 0.0
        %2341 = vmatpush1.msra.mxu0 0.0
        %2342 = vmatprep.subr.mxu0 0.0
        %2343 = vmatpush1.msra.mxu0 0.0
        %2344 = vmatprep.subr.mxu0 0.0
        %2345 = vmatpush1.msra.mxu0 0.0
        %2346 = vmatprep.subr.mxu0 0.0
        %2347 = vmatpush1.msra.mxu0 0.0
        %2348 = vmatprep.subr.mxu0 0.0
        %2349 = vmatpush1.msra.mxu0 0.0
        %2350 = vmatprep.subr.mxu0 0.0
        %2351 = vmatpush1.msra.mxu0 0.0
        %2352 = vmatprep.mubr.f32.mxu0 0.0
        %2353 = vmatmul.mubr.f32.gmra.mrb[0].mxu0 %v2251
        %v2354 = vpop.f32.mrb[0].mxu0
        %v2355 = vadd.f32 %v2287, %v2354
        %v2356 = vpop.f32.mrb[0].mxu0
        %2357 = vmatprep.mubr.f32.mxu0 0.0
        %2358 = vmatmul.mubr.f32.gmra.mrb[0].mxu0 %v2252
        %v2359 = vpop.f32.mrb[0].mxu0
        %v2360 = vadd.f32 %v2287, %v2359
        %v2361 = vpop.f32.mrb[0].mxu0
        %2362 = vmatprep.mubr.f32.mxu0 0.0
        %2363 = vmatmul.mubr.f32.gmra.mrb[0].mxu0 %v2253
        %v2364 = vpop.f32.mrb[0].mxu0
        %v2365 = vadd.f32 %v2287, %v2364
        %v2366 = vpop.f32.mrb[0].mxu0
        %2367 = vmatprep.mubr.f32.mxu0 0.0
        %2368 = vmatmul.mubr.f32.gmra.mrb[0].mxu0 %v2254
        %v2369 = vpop.f32.mrb[0].mxu0
        %v2370 = vadd.f32 %v2287, %v2369
        %v2371 = vpop.f32.mrb[0].mxu0
        %2372 = vmatprep.mubr.f32.mxu0 0.0
        %2373 = vmatmul.mubr.f32.gmra.mrb[0].mxu0 %v2255
        %v2374 = vpop.f32.mrb[0].mxu0
        %v2375 = vadd.f32 %v2287, %v2374
        %v2376 = vpop.f32.mrb[0].mxu0
        %2377 = vmatprep.mubr.f32.mxu0 0.0
        %2378 = vmatmul.mubr.f32.gmra.mrb[0].mxu0 %v2256
        %v2379 = vpop.f32.mrb[0].mxu0
        %v2380 = vadd.f32 %v2287, %v2379
        %v2381 = vpop.f32.mrb[0].mxu0
        %2382 = vmatprep.mubr.f32.mxu0 0.0
        %2383 = vmatmul.mubr.f32.gmra.mrb[0].mxu0 %v2257
        %v2384 = vpop.f32.mrb[0].mxu0
        %v2385 = vadd.f32 %v2287, %v2384
        %v2386 = vpop.f32.mrb[0].mxu0
        %2387 = vmatprep.mubr.f32.mxu0 0.0
        %2388 = vmatmul.mubr.f32.gmra.mrb[0].mxu0 %v2258
        %v2389 = vpop.f32.mrb[0].mxu0
        %v2390 = vadd.f32 %v2287, %v2389
        %v2391 = vpop.f32.mrb[0].mxu0
        %2392 = vmatprep.mubr.f32.mxu0 0.0
        %2393 = vmatmul.mubr.f32.gmra.mrb[0].mxu0 %v2259
        %v2394 = vpop.f32.mrb[0].mxu0
        %v2395 = vadd.f32 %v2287, %v2394
        %v2396 = vpop.f32.mrb[0].mxu0
        %2397 = vmatprep.mubr.f32.mxu0 0.0
        %2398 = vmatmul.mubr.f32.gmra.mrb[0].mxu0 %v2260
        %v2399 = vpop.f32.mrb[0].mxu0
        %v2400 = vadd.f32 %v2287, %v2399
        %v2401 = vpop.f32.mrb[0].mxu0
        %2402 = vmatprep.mubr.f32.mxu0 0.0
        %2403 = vmatmul.mubr.f32.gmra.mrb[0].mxu0 %v2261
        %v2404 = vpop.f32.mrb[0].mxu0
        %v2405 = vadd.f32 %v2287, %v2404
        %v2406 = vpop.f32.mrb[0].mxu0
        %2407 = vmatprep.mubr.f32.mxu0 0.0
        %2408 = vmatmul.mubr.f32.gmra.mrb[0].mxu0 %v2262
        %v2409 = vpop.f32.mrb[0].mxu0
        %v2410 = vadd.f32 %v2287, %v2409
        %v2411 = vpop.f32.mrb[0].mxu0
        %2412 = vmatprep.mubr.f32.mxu0 0.0
        %2413 = vmatmul.mubr.f32.gmra.mrb[0].mxu0 %v2263
        %v2414 = vpop.f32.mrb[0].mxu0
        %v2415 = vadd.f32 %v2287, %v2414
        %v2416 = vpop.f32.mrb[0].mxu0
        %2417 = vmatprep.mubr.f32.mxu0 0.0
        %2418 = vmatmul.mubr.f32.gmra.mrb[0].mxu0 %v2264
        %v2419 = vpop.f32.mrb[0].mxu0
        %v2420 = vadd.f32 %v2287, %v2419
        %v2421 = vpop.f32.mrb[0].mxu0
        %2422 = vmatprep.mubr.f32.mxu0 0.0
        %2423 = vmatmul.mubr.f32.gmra.mrb[0].mxu0 %v2265
        %v2424 = vpop.f32.mrb[0].mxu0
        %v2425 = vadd.f32 %v2287, %v2424
        %v2426 = vpop.f32.mrb[0].mxu0
        %2427 = vmatprep.mubr.f32.mxu0 0.0
        %2428 = vmatmul.mubr.f32.gmra.mrb[0].mxu0 %v2266
        %v2429 = vpop.f32.mrb[0].mxu0
        %v2430 = vadd.f32 %v2287, %v2429
        %v2431 = vpop.f32.mrb[0].mxu0
        %2432 = vdwg.mxu0
        %v2433 = vld [vmem:[%s3] sm:$0xf]
        %v2434 = vlaneseq
        %v2435 = vshrl.u32 %v2434, 7
        %v2436 = vsub.s32 0, %v2435
        %v2437 = vrot.slane %v234, %v2436
        %2438 = vrot.lane.b32.xlu0 %v214, 127
        %v2439 = vpop.permute.xlu0 %2438
        %2440 = vrot.lane.b32.xlu0 %v215, 127
        %v2441 = vpop.permute.xlu0 %2440
        %2442 = vrot.lane.b32.xlu0 %v216, 127
        %v2443 = vpop.permute.xlu0 %2442
        %2444 = vrot.lane.b32.xlu0 %v217, 127
        %v2445 = vpop.permute.xlu0 %2444
        %2446 = vrot.lane.b32.xlu0 %v218, 127
        %v2447 = vpop.permute.xlu0 %2446
        %2448 = vrot.lane.b32.xlu0 %v219, 127
        %v2449 = vpop.permute.xlu0 %2448
        %2450 = vrot.lane.b32.xlu0 %v220, 127
        %v2451 = vpop.permute.xlu0 %2450
        %2452 = vrot.lane.b32.xlu0 %v221, 127
        %v2453 = vpop.permute.xlu0 %2452
        %2454 = vrot.lane.b32.xlu0 %v222, 127
        %v2455 = vpop.permute.xlu0 %2454
        %2456 = vrot.lane.b32.xlu0 %v223, 127
        %v2457 = vpop.permute.xlu0 %2456
        %2458 = vrot.lane.b32.xlu0 %v224, 127
        %v2459 = vpop.permute.xlu0 %2458
        %2460 = vrot.lane.b32.xlu0 %v225, 127
        %v2461 = vpop.permute.xlu0 %2460
        %2462 = vrot.lane.b32.xlu0 %v226, 127
        %v2463 = vpop.permute.xlu0 %2462
        %2464 = vrot.lane.b32.xlu0 %v227, 127
        %v2465 = vpop.permute.xlu0 %2464
        %2466 = vrot.lane.b32.xlu0 %v228, 127
        %v2467 = vpop.permute.xlu0 %2466
        %2468 = vrot.lane.b32.xlu0 %v229, 127
        %v2469 = vpop.permute.xlu0 %2468
        %vm2470 = vcmask 31744
        %v2471 = vsel %vm2470, %v2439, 0
        %v2473 = vsel %vm2470, %v2441, 0
        %v2475 = vsel %vm2470, %v2443, 0
        %v2477 = vsel %vm2470, %v2445, 0
        %v2479 = vsel %vm2470, %v2447, 0
        %v2481 = vsel %vm2470, %v2449, 0
        %v2483 = vsel %vm2470, %v2451, 0
        %v2485 = vsel %vm2470, %v2453, 0
        %v2487 = vsel %vm2470, %v2455, 0
        %v2489 = vsel %vm2470, %v2457, 0
        %v2491 = vsel %vm2470, %v2459, 0
        %v2493 = vsel %vm2470, %v2461, 0
        %v2495 = vsel %vm2470, %v2463, 0
        %v2497 = vsel %vm2470, %v2465, 0
        %v2499 = vsel %vm2470, %v2467, 0
        %v2501 = vsel %vm2470, %v2469, 0
        %vm2503 = vcmask 1043456
        %v2505 = vsel %vm2503, %v2433, 0
        %2507 = vmatprep.subr.mxu0 0.0
        %2508 = vmatpush1.msra.mxu0 %v2505
        %2509 = vmatprep.subr.mxu0 0.0
        %2510 = vmatpush1.msra.mxu0 0.0
        %2511 = vmatprep.subr.mxu0 0.0
        %2512 = vmatpush1.msra.mxu0 0.0
        %2513 = vmatprep.subr.mxu0 0.0
        %2514 = vmatpush1.msra.mxu0 0.0
        %2515 = vmatprep.subr.mxu0 0.0
        %2516 = vmatpush1.msra.mxu0 0.0
        %2517 = vmatprep.subr.mxu0 0.0
        %2518 = vmatpush1.msra.mxu0 0.0
        %2519 = vmatprep.subr.mxu0 0.0
        %2520 = vmatpush1.msra.mxu0 0.0
        %2521 = vmatprep.subr.mxu0 0.0
        %2522 = vmatpush1.msra.mxu0 0.0
        %2523 = vmatprep.subr.mxu0 0.0
        %2524 = vmatpush1.msra.mxu0 0.0
        %2525 = vmatprep.subr.mxu0 0.0
        %2526 = vmatpush1.msra.mxu0 0.0
        %2527 = vmatprep.subr.mxu0 0.0
        %2528 = vmatpush1.msra.mxu0 0.0
        %2529 = vmatprep.subr.mxu0 0.0
        %2530 = vmatpush1.msra.mxu0 0.0
        %2531 = vmatprep.subr.mxu0 0.0
        %2532 = vmatpush1.msra.mxu0 0.0
        %2533 = vmatprep.subr.mxu0 0.0
        %2534 = vmatpush1.msra.mxu0 0.0
        %2535 = vmatprep.subr.mxu0 0.0
        %2536 = vmatpush1.msra.mxu0 0.0
        %2537 = vmatprep.subr.mxu0 0.0
        %2538 = vmatpush1.msra.mxu0 0.0
        %2539 = vmatprep.subr.mxu0 0.0
        %2540 = vmatpush1.msra.mxu0 0.0
        %2541 = vmatprep.subr.mxu0 0.0
        %2542 = vmatpush1.msra.mxu0 0.0
        %2543 = vmatprep.subr.mxu0 0.0
        %2544 = vmatpush1.msra.mxu0 0.0
        %2545 = vmatprep.subr.mxu0 0.0
        %2546 = vmatpush1.msra.mxu0 0.0
        %2547 = vmatprep.subr.mxu0 0.0
        %2548 = vmatpush1.msra.mxu0 0.0
        %2549 = vmatprep.subr.mxu0 0.0
        %2550 = vmatpush1.msra.mxu0 0.0
        %2551 = vmatprep.subr.mxu0 0.0
        %2552 = vmatpush1.msra.mxu0 0.0
        %2553 = vmatprep.subr.mxu0 0.0
        %2554 = vmatpush1.msra.mxu0 0.0
        %2555 = vmatprep.subr.mxu0 0.0
        %2556 = vmatpush1.msra.mxu0 0.0
        %2557 = vmatprep.subr.mxu0 0.0
        %2558 = vmatpush1.msra.mxu0 0.0
        %2559 = vmatprep.subr.mxu0 0.0
        %2560 = vmatpush1.msra.mxu0 0.0
        %2561 = vmatprep.subr.mxu0 0.0
        %2562 = vmatpush1.msra.mxu0 0.0
        %2563 = vmatprep.subr.mxu0 0.0
        %2564 = vmatpush1.msra.mxu0 0.0
        %2565 = vmatprep.subr.mxu0 0.0
        %2566 = vmatpush1.msra.mxu0 0.0
        %2567 = vmatprep.subr.mxu0 0.0
        %2568 = vmatpush1.msra.mxu0 0.0
        %2569 = vmatprep.subr.mxu0 0.0
        %2570 = vmatpush1.msra.mxu0 0.0
        %2571 = vmatprep.mubr.f32.mxu0 0.0
        %2572 = vmatmul.mubr.f32.gmra.mrb[0].mxu0 %v2471
        %v2573 = vpop.f32.mrb[0].mxu0
        %v2574 = vadd.f32 %v2437, %v2573
        %v2575 = vpop.f32.mrb[0].mxu0
        %2576 = vmatprep.mubr.f32.mxu0 0.0
        %2577 = vmatmul.mubr.f32.gmra.mrb[0].mxu0 %v2473
        %v2578 = vpop.f32.mrb[0].mxu0
        %v2579 = vadd.f32 %v2437, %v2578
        %v2580 = vpop.f32.mrb[0].mxu0
        %2581 = vmatprep.mubr.f32.mxu0 0.0
        %2582 = vmatmul.mubr.f32.gmra.mrb[0].mxu0 %v2475
        %v2583 = vpop.f32.mrb[0].mxu0
        %v2584 = vadd.f32 %v2437, %v2583
        %v2585 = vpop.f32.mrb[0].mxu0
        %2586 = vmatprep.mubr.f32.mxu0 0.0
        %2587 = vmatmul.mubr.f32.gmra.mrb[0].mxu0 %v2477
        %v2588 = vpop.f32.mrb[0].mxu0
        %v2589 = vadd.f32 %v2437, %v2588
        %v2590 = vpop.f32.mrb[0].mxu0
        %2591 = vmatprep.mubr.f32.mxu0 0.0
        %2592 = vmatmul.mubr.f32.gmra.mrb[0].mxu0 %v2479
        %v2593 = vpop.f32.mrb[0].mxu0
        %v2594 = vadd.f32 %v2437, %v2593
        %v2595 = vpop.f32.mrb[0].mxu0
        %2596 = vmatprep.mubr.f32.mxu0 0.0
        %2597 = vmatmul.mubr.f32.gmra.mrb[0].mxu0 %v2481
        %v2598 = vpop.f32.mrb[0].mxu0
        %v2599 = vadd.f32 %v2437, %v2598
        %v2600 = vpop.f32.mrb[0].mxu0
        %2601 = vmatprep.mubr.f32.mxu0 0.0
        %2602 = vmatmul.mubr.f32.gmra.mrb[0].mxu0 %v2483
        %v2603 = vpop.f32.mrb[0].mxu0
        %v2604 = vadd.f32 %v2437, %v2603
        %v2605 = vpop.f32.mrb[0].mxu0
        %2606 = vmatprep.mubr.f32.mxu0 0.0
        %2607 = vmatmul.mubr.f32.gmra.mrb[0].mxu0 %v2485
        %v2608 = vpop.f32.mrb[0].mxu0
        %v2609 = vadd.f32 %v2437, %v2608
        %v2610 = vpop.f32.mrb[0].mxu0
        %2611 = vmatprep.mubr.f32.mxu0 0.0
        %2612 = vmatmul.mubr.f32.gmra.mrb[0].mxu0 %v2487
        %v2613 = vpop.f32.mrb[0].mxu0
        %v2614 = vadd.f32 %v2437, %v2613
        %v2615 = vpop.f32.mrb[0].mxu0
        %2616 = vmatprep.mubr.f32.mxu0 0.0
        %2617 = vmatmul.mubr.f32.gmra.mrb[0].mxu0 %v2489
        %v2618 = vpop.f32.mrb[0].mxu0
        %v2619 = vadd.f32 %v2437, %v2618
        %v2620 = vpop.f32.mrb[0].mxu0
        %2621 = vmatprep.mubr.f32.mxu0 0.0
        %2622 = vmatmul.mubr.f32.gmra.mrb[0].mxu0 %v2491
        %v2623 = vpop.f32.mrb[0].mxu0
        %v2624 = vadd.f32 %v2437, %v2623
        %v2625 = vpop.f32.mrb[0].mxu0
        %2626 = vmatprep.mubr.f32.mxu0 0.0
        %2627 = vmatmul.mubr.f32.gmra.mrb[0].mxu0 %v2493
        %v2628 = vpop.f32.mrb[0].mxu0
        %v2629 = vadd.f32 %v2437, %v2628
        %v2630 = vpop.f32.mrb[0].mxu0
        %2631 = vmatprep.mubr.f32.mxu0 0.0
        %2632 = vmatmul.mubr.f32.gmra.mrb[0].mxu0 %v2495
        %v2633 = vpop.f32.mrb[0].mxu0
        %v2634 = vadd.f32 %v2437, %v2633
        %v2635 = vpop.f32.mrb[0].mxu0
        %2636 = vmatprep.mubr.f32.mxu0 0.0
        %2637 = vmatmul.mubr.f32.gmra.mrb[0].mxu0 %v2497
        %v2638 = vpop.f32.mrb[0].mxu0
        %v2639 = vadd.f32 %v2437, %v2638
        %v2640 = vpop.f32.mrb[0].mxu0
        %2641 = vmatprep.mubr.f32.mxu0 0.0
        %2642 = vmatmul.mubr.f32.gmra.mrb[0].mxu0 %v2499
        %v2643 = vpop.f32.mrb[0].mxu0
        %v2644 = vadd.f32 %v2437, %v2643
        %v2645 = vpop.f32.mrb[0].mxu0
        %2646 = vmatprep.mubr.f32.mxu0 0.0
        %2647 = vmatmul.mubr.f32.gmra.mrb[0].mxu0 %v2501
        %v2648 = vpop.f32.mrb[0].mxu0
        %v2649 = vadd.f32 %v2437, %v2648
        %v2650 = vpop.f32.mrb[0].mxu0
        %2651 = vdwg.mxu0
        %v2652 = vadd.f32 %v2574, %v2355
        %v2653 = vadd.f32 %v2579, %v2360
        %v2654 = vadd.f32 %v2584, %v2365
        %v2655 = vadd.f32 %v2589, %v2370
        %v2656 = vadd.f32 %v2594, %v2375
        %v2657 = vadd.f32 %v2599, %v2380
        %v2658 = vadd.f32 %v2604, %v2385
        %v2659 = vadd.f32 %v2609, %v2390
        %v2660 = vadd.f32 %v2614, %v2395
        %v2661 = vadd.f32 %v2619, %v2400
        %v2662 = vadd.f32 %v2624, %v2405
        %v2663 = vadd.f32 %v2629, %v2410
        %v2664 = vadd.f32 %v2634, %v2415
        %v2665 = vadd.f32 %v2639, %v2420
        %v2666 = vadd.f32 %v2644, %v2425
        %v2667 = vadd.f32 %v2649, %v2430
        %v2668 = vmul.f32 %v2652, 0.5
        %v2669 = vmul.f32 %v2653, 0.5
        %v2670 = vmul.f32 %v2654, 0.5
        %v2671 = vmul.f32 %v2655, 0.5
        %v2672 = vmul.f32 %v2656, 0.5
        %v2673 = vmul.f32 %v2657, 0.5
        %v2674 = vmul.f32 %v2658, 0.5
        %v2675 = vmul.f32 %v2659, 0.5
        %v2676 = vmul.f32 %v2660, 0.5
        %v2677 = vmul.f32 %v2661, 0.5
        %v2678 = vmul.f32 %v2662, 0.5
        %v2679 = vmul.f32 %v2663, 0.5
        %v2680 = vmul.f32 %v2664, 0.5
        %v2681 = vmul.f32 %v2665, 0.5
        %v2682 = vmul.f32 %v2666, 0.5
        %v2683 = vmul.f32 %v2667, 0.5
        %v2684 = vmul.f32 %v2652, 0.70710677
        %v2685 = vmul.f32 %v2653, 0.70710677
        %v2686 = vmul.f32 %v2654, 0.70710677
        %v2687 = vmul.f32 %v2655, 0.70710677
        %v2688 = vmul.f32 %v2656, 0.70710677
        %v2689 = vmul.f32 %v2657, 0.70710677
        %v2690 = vmul.f32 %v2658, 0.70710677
        %v2691 = vmul.f32 %v2659, 0.70710677
        %v2692 = vmul.f32 %v2660, 0.70710677
        %v2693 = vmul.f32 %v2661, 0.70710677
        %v2694 = vmul.f32 %v2662, 0.70710677
        %v2695 = vmul.f32 %v2663, 0.70710677
        %v2696 = vmul.f32 %v2664, 0.70710677
        %v2697 = vmul.f32 %v2665, 0.70710677
        %v2698 = vmul.f32 %v2666, 0.70710677
        %v2699 = vmul.f32 %v2667, 0.70710677
        %v2700 = verf.f32.pop %v2684
        %v2701 = verf.f32.pop %v2685
        %v2702 = verf.f32.pop %v2686
        %v2703 = verf.f32.pop %v2687
        %v2704 = verf.f32.pop %v2688
        %v2705 = verf.f32.pop %v2689
        %v2706 = verf.f32.pop %v2690
        %v2707 = verf.f32.pop %v2691
        %v2708 = verf.f32.pop %v2692
        %v2709 = verf.f32.pop %v2693
        %v2710 = verf.f32.pop %v2694
        %v2711 = verf.f32.pop %v2695
        %v2712 = verf.f32.pop %v2696
        %v2713 = verf.f32.pop %v2697
        %v2714 = verf.f32.pop %v2698
        %v2715 = verf.f32.pop %v2699
        %v2716 = vadd.f32 %v2700, 1.0
        %v2717 = vadd.f32 %v2701, 1.0
        %v2718 = vadd.f32 %v2702, 1.0
        %v2719 = vadd.f32 %v2703, 1.0
        %v2720 = vadd.f32 %v2704, 1.0
        %v2721 = vadd.f32 %v2705, 1.0
        %v2722 = vadd.f32 %v2706, 1.0
        %v2723 = vadd.f32 %v2707, 1.0
        %v2724 = vadd.f32 %v2708, 1.0
        %v2725 = vadd.f32 %v2709, 1.0
        %v2726 = vadd.f32 %v2710, 1.0
        %v2727 = vadd.f32 %v2711, 1.0
        %v2728 = vadd.f32 %v2712, 1.0
        %v2729 = vadd.f32 %v2713, 1.0
        %v2730 = vadd.f32 %v2714, 1.0
        %v2731 = vadd.f32 %v2715, 1.0
        %v2732 = vmul.f32 %v2668, %v2716
        %v2733 = vmul.f32 %v2669, %v2717
        %v2734 = vmul.f32 %v2670, %v2718
        %v2735 = vmul.f32 %v2671, %v2719
        %v2736 = vmul.f32 %v2672, %v2720
        %v2737 = vmul.f32 %v2673, %v2721
        %v2738 = vmul.f32 %v2674, %v2722
        %v2739 = vmul.f32 %v2675, %v2723
        %v2740 = vmul.f32 %v2676, %v2724
        %v2741 = vmul.f32 %v2677, %v2725
        %v2742 = vmul.f32 %v2678, %v2726
        %v2743 = vmul.f32 %v2679, %v2727
        %v2744 = vmul.f32 %v2680, %v2728
        %v2745 = vmul.f32 %v2681, %v2729
        %v2746 = vmul.f32 %v2682, %v2730
        %v2747 = vmul.f32 %v2683, %v2731
        %s2748 = scalar_lea.vmem [#allocation2], 256
        %v2749 = vld [vmem:[%s2748] sm:$0xff]
        %v2750 = vld [vmem:[%s2748 + $0x8] sm:$0xff]
        %v2751 = vld [vmem:[%s2748 + $0x10] sm:$0xff]
        %v2752 = vld [vmem:[%s2748 + $0x18] sm:$0xff]
        %v2753 = vld [vmem:[%s2748 + $0x20] sm:$0xff]
        %v2754 = vld [vmem:[%s2748 + $0x28] sm:$0xff]
        %v2755 = vld [vmem:[%s2748 + $0x30] sm:$0xff]
        %v2756 = vld [vmem:[%s2748 + $0x38] sm:$0xff]
        %v2757 = vld [vmem:[%s2748 + $0x40] sm:$0xff]
        %v2758 = vld [vmem:[%s2748 + $0x48] sm:$0xff]
        %v2759 = vld [vmem:[%s2748 + $0x50] sm:$0xff]
        %v2760 = vld [vmem:[%s2748 + $0x58] sm:$0xff]
        %v2761 = vld [vmem:[%s2748 + $0x60] sm:$0xff]
        %v2762 = vld [vmem:[%s2748 + $0x68] sm:$0xff]
        %v2763 = vld [vmem:[%s2748 + $0x70] sm:$0xff]
        %v2764 = vld [vmem:[%s2748 + $0x78] sm:$0xff]
        %v2765 = vlaneseq
        %v2766 = vshrl.u32 %v2765, 7
        %v2767 = vsub.s32 0, %v2766
        %v2768 = vrot.slane %v235, %v2767
        %2769 = vmatprep.subr.mxu0 0.0
        %2770 = vmatpush1.msra.mxu0 %v2749
        %2771 = vmatprep.subr.mxu0 0.0
        %2772 = vmatpush1.msra.mxu0 %v2750
        %2773 = vmatprep.subr.mxu0 0.0
        %2774 = vmatpush1.msra.mxu0 %v2751
        %2775 = vmatprep.subr.mxu0 0.0
        %2776 = vmatpush1.msra.mxu0 %v2752
        %2777 = vmatprep.subr.mxu0 0.0
        %2778 = vmatpush1.msra.mxu0 %v2753
        %2779 = vmatprep.subr.mxu0 0.0
        %2780 = vmatpush1.msra.mxu0 %v2754
        %2781 = vmatprep.subr.mxu0 0.0
        %2782 = vmatpush1.msra.mxu0 %v2755
        %2783 = vmatprep.subr.mxu0 0.0
        %2784 = vmatpush1.msra.mxu0 %v2756
        %2785 = vmatprep.subr.mxu0 0.0
        %2786 = vmatpush1.msra.mxu0 %v2757
        %2787 = vmatprep.subr.mxu0 0.0
        %2788 = vmatpush1.msra.mxu0 %v2758
        %2789 = vmatprep.subr.mxu0 0.0
        %2790 = vmatpush1.msra.mxu0 %v2759
        %2791 = vmatprep.subr.mxu0 0.0
        %2792 = vmatpush1.msra.mxu0 %v2760
        %2793 = vmatprep.subr.mxu0 0.0
        %2794 = vmatpush1.msra.mxu0 %v2761
        %2795 = vmatprep.subr.mxu0 0.0
        %2796 = vmatpush1.msra.mxu0 %v2762
        %2797 = vmatprep.subr.mxu0 0.0
        %2798 = vmatpush1.msra.mxu0 %v2763
        %2799 = vmatprep.subr.mxu0 0.0
        %2800 = vmatpush1.msra.mxu0 %v2764
        %2801 = vmatprep.subr.mxu0 0.0
        %2802 = vmatpush1.msra.mxu0 0.0
        %2803 = vmatprep.subr.mxu0 0.0
        %2804 = vmatpush1.msra.mxu0 0.0
        %2805 = vmatprep.subr.mxu0 0.0
        %2806 = vmatpush1.msra.mxu0 0.0
        %2807 = vmatprep.subr.mxu0 0.0
        %2808 = vmatpush1.msra.mxu0 0.0
        %2809 = vmatprep.subr.mxu0 0.0
        %2810 = vmatpush1.msra.mxu0 0.0
        %2811 = vmatprep.subr.mxu0 0.0
        %2812 = vmatpush1.msra.mxu0 0.0
        %2813 = vmatprep.subr.mxu0 0.0
        %2814 = vmatpush1.msra.mxu0 0.0
        %2815 = vmatprep.subr.mxu0 0.0
        %2816 = vmatpush1.msra.mxu0 0.0
        %2817 = vmatprep.subr.mxu0 0.0
        %2818 = vmatpush1.msra.mxu0 0.0
        %2819 = vmatprep.subr.mxu0 0.0
        %2820 = vmatpush1.msra.mxu0 0.0
        %2821 = vmatprep.subr.mxu0 0.0
        %2822 = vmatpush1.msra.mxu0 0.0
        %2823 = vmatprep.subr.mxu0 0.0
        %2824 = vmatpush1.msra.mxu0 0.0
        %2825 = vmatprep.subr.mxu0 0.0
        %2826 = vmatpush1.msra.mxu0 0.0
        %2827 = vmatprep.subr.mxu0 0.0
        %2828 = vmatpush1.msra.mxu0 0.0
        %2829 = vmatprep.subr.mxu0 0.0
        %2830 = vmatpush1.msra.mxu0 0.0
        %2831 = vmatprep.subr.mxu0 0.0
        %2832 = vmatpush1.msra.mxu0 0.0
        %2833 = vmatprep.mubr.f32.mxu0 0.0
        %2834 = vmatmul.mubr.f32.gmra.mrb[0].mxu0 %v2732
        %v2835 = vpop.f32.mrb[0].mxu0
        %v2836 = vadd.f32 %v2768, %v2835
        %v2837 = vpop.f32.mrb[0].mxu0
        %2838 = vmatprep.mubr.f32.mxu0 0.0
        %2839 = vmatmul.mubr.f32.gmra.mrb[0].mxu0 %v2733
        %v2840 = vpop.f32.mrb[0].mxu0
        %v2841 = vadd.f32 %v2768, %v2840
        %v2842 = vpop.f32.mrb[0].mxu0
        %2843 = vmatprep.mubr.f32.mxu0 0.0
        %2844 = vmatmul.mubr.f32.gmra.mrb[0].mxu0 %v2734
        %v2845 = vpop.f32.mrb[0].mxu0
        %v2846 = vadd.f32 %v2768, %v2845
        %v2847 = vpop.f32.mrb[0].mxu0
        %2848 = vmatprep.mubr.f32.mxu0 0.0
        %2849 = vmatmul.mubr.f32.gmra.mrb[0].mxu0 %v2735
        %v2850 = vpop.f32.mrb[0].mxu0
        %v2851 = vadd.f32 %v2768, %v2850
        %v2852 = vpop.f32.mrb[0].mxu0
        %2853 = vmatprep.mubr.f32.mxu0 0.0
        %2854 = vmatmul.mubr.f32.gmra.mrb[0].mxu0 %v2736
        %v2855 = vpop.f32.mrb[0].mxu0
        %v2856 = vadd.f32 %v2768, %v2855
        %v2857 = vpop.f32.mrb[0].mxu0
        %2858 = vmatprep.mubr.f32.mxu0 0.0
        %2859 = vmatmul.mubr.f32.gmra.mrb[0].mxu0 %v2737
        %v2860 = vpop.f32.mrb[0].mxu0
        %v2861 = vadd.f32 %v2768, %v2860
        %v2862 = vpop.f32.mrb[0].mxu0
        %2863 = vmatprep.mubr.f32.mxu0 0.0
        %2864 = vmatmul.mubr.f32.gmra.mrb[0].mxu0 %v2738
        %v2865 = vpop.f32.mrb[0].mxu0
        %v2866 = vadd.f32 %v2768, %v2865
        %v2867 = vpop.f32.mrb[0].mxu0
        %2868 = vmatprep.mubr.f32.mxu0 0.0
        %2869 = vmatmul.mubr.f32.gmra.mrb[0].mxu0 %v2739
        %v2870 = vpop.f32.mrb[0].mxu0
        %v2871 = vadd.f32 %v2768, %v2870
        %v2872 = vpop.f32.mrb[0].mxu0
        %2873 = vmatprep.mubr.f32.mxu0 0.0
        %2874 = vmatmul.mubr.f32.gmra.mrb[0].mxu0 %v2740
        %v2875 = vpop.f32.mrb[0].mxu0
        %v2876 = vadd.f32 %v2768, %v2875
        %v2877 = vpop.f32.mrb[0].mxu0
        %2878 = vmatprep.mubr.f32.mxu0 0.0
        %2879 = vmatmul.mubr.f32.gmra.mrb[0].mxu0 %v2741
        %v2880 = vpop.f32.mrb[0].mxu0
        %v2881 = vadd.f32 %v2768, %v2880
        %v2882 = vpop.f32.mrb[0].mxu0
        %2883 = vmatprep.mubr.f32.mxu0 0.0
        %2884 = vmatmul.mubr.f32.gmra.mrb[0].mxu0 %v2742
        %v2885 = vpop.f32.mrb[0].mxu0
        %v2886 = vadd.f32 %v2768, %v2885
        %v2887 = vpop.f32.mrb[0].mxu0
        %2888 = vmatprep.mubr.f32.mxu0 0.0
        %2889 = vmatmul.mubr.f32.gmra.mrb[0].mxu0 %v2743
        %v2890 = vpop.f32.mrb[0].mxu0
        %v2891 = vadd.f32 %v2768, %v2890
        %v2892 = vpop.f32.mrb[0].mxu0
        %2893 = vmatprep.mubr.f32.mxu0 0.0
        %2894 = vmatmul.mubr.f32.gmra.mrb[0].mxu0 %v2744
        %v2895 = vpop.f32.mrb[0].mxu0
        %v2896 = vadd.f32 %v2768, %v2895
        %v2897 = vpop.f32.mrb[0].mxu0
        %2898 = vmatprep.mubr.f32.mxu0 0.0
        %2899 = vmatmul.mubr.f32.gmra.mrb[0].mxu0 %v2745
        %v2900 = vpop.f32.mrb[0].mxu0
        %v2901 = vadd.f32 %v2768, %v2900
        %v2902 = vpop.f32.mrb[0].mxu0
        %2903 = vmatprep.mubr.f32.mxu0 0.0
        %2904 = vmatmul.mubr.f32.gmra.mrb[0].mxu0 %v2746
        %v2905 = vpop.f32.mrb[0].mxu0
        %v2906 = vadd.f32 %v2768, %v2905
        %v2907 = vpop.f32.mrb[0].mxu0
        %2908 = vmatprep.mubr.f32.mxu0 0.0
        %2909 = vmatmul.mubr.f32.gmra.mrb[0].mxu0 %v2747
        %v2910 = vpop.f32.mrb[0].mxu0
        %v2911 = vadd.f32 %v2768, %v2910
        %v2912 = vpop.f32.mrb[0].mxu0
        %2913 = vdwg.mxu0
        %v2914 = vmul.f32 %v2836, 0.5
        %v2915 = vmul.f32 %v2841, 0.5
        %v2916 = vmul.f32 %v2846, 0.5
        %v2917 = vmul.f32 %v2851, 0.5
        %v2918 = vmul.f32 %v2856, 0.5
        %v2919 = vmul.f32 %v2861, 0.5
        %v2920 = vmul.f32 %v2866, 0.5
        %v2921 = vmul.f32 %v2871, 0.5
        %v2922 = vmul.f32 %v2876, 0.5
        %v2923 = vmul.f32 %v2881, 0.5
        %v2924 = vmul.f32 %v2886, 0.5
        %v2925 = vmul.f32 %v2891, 0.5
        %v2926 = vmul.f32 %v2896, 0.5
        %v2927 = vmul.f32 %v2901, 0.5
        %v2928 = vmul.f32 %v2906, 0.5
        %v2929 = vmul.f32 %v2911, 0.5
        %v2930 = vmul.f32 %v2836, 0.70710677
        %v2931 = vmul.f32 %v2841, 0.70710677
        %v2932 = vmul.f32 %v2846, 0.70710677
        %v2933 = vmul.f32 %v2851, 0.70710677
        %v2934 = vmul.f32 %v2856, 0.70710677
        %v2935 = vmul.f32 %v2861, 0.70710677
        %v2936 = vmul.f32 %v2866, 0.70710677
        %v2937 = vmul.f32 %v2871, 0.70710677
        %v2938 = vmul.f32 %v2876, 0.70710677
        %v2939 = vmul.f32 %v2881, 0.70710677
        %v2940 = vmul.f32 %v2886, 0.70710677
        %v2941 = vmul.f32 %v2891, 0.70710677
        %v2942 = vmul.f32 %v2896, 0.70710677
        %v2943 = vmul.f32 %v2901, 0.70710677
        %v2944 = vmul.f32 %v2906, 0.70710677
        %v2945 = vmul.f32 %v2911, 0.70710677
        %v2946 = verf.f32.pop %v2930
        %v2947 = verf.f32.pop %v2931
        %v2948 = verf.f32.pop %v2932
        %v2949 = verf.f32.pop %v2933
        %v2950 = verf.f32.pop %v2934
        %v2951 = verf.f32.pop %v2935
        %v2952 = verf.f32.pop %v2936
        %v2953 = verf.f32.pop %v2937
        %v2954 = verf.f32.pop %v2938
        %v2955 = verf.f32.pop %v2939
        %v2956 = verf.f32.pop %v2940
        %v2957 = verf.f32.pop %v2941
        %v2958 = verf.f32.pop %v2942
        %v2959 = verf.f32.pop %v2943
        %v2960 = verf.f32.pop %v2944
        %v2961 = verf.f32.pop %v2945
        %v2962 = vadd.f32 %v2946, 1.0
        %v2963 = vadd.f32 %v2947, 1.0
        %v2964 = vadd.f32 %v2948, 1.0
        %v2965 = vadd.f32 %v2949, 1.0
        %v2966 = vadd.f32 %v2950, 1.0
        %v2967 = vadd.f32 %v2951, 1.0
        %v2968 = vadd.f32 %v2952, 1.0
        %v2969 = vadd.f32 %v2953, 1.0
        %v2970 = vadd.f32 %v2954, 1.0
        %v2971 = vadd.f32 %v2955, 1.0
        %v2972 = vadd.f32 %v2956, 1.0
        %v2973 = vadd.f32 %v2957, 1.0
        %v2974 = vadd.f32 %v2958, 1.0
        %v2975 = vadd.f32 %v2959, 1.0
        %v2976 = vadd.f32 %v2960, 1.0
        %v2977 = vadd.f32 %v2961, 1.0
        %v2978 = vmul.f32 %v2914, %v2962
        %v2979 = vmul.f32 %v2915, %v2963
        %v2980 = vmul.f32 %v2916, %v2964
        %v2981 = vmul.f32 %v2917, %v2965
        %v2982 = vmul.f32 %v2918, %v2966
        %v2983 = vmul.f32 %v2919, %v2967
        %v2984 = vmul.f32 %v2920, %v2968
        %v2985 = vmul.f32 %v2921, %v2969
        %v2986 = vmul.f32 %v2922, %v2970
        %v2987 = vmul.f32 %v2923, %v2971
        %v2988 = vmul.f32 %v2924, %v2972
        %v2989 = vmul.f32 %v2925, %v2973
        %v2990 = vmul.f32 %v2926, %v2974
        %v2991 = vmul.f32 %v2927, %v2975
        %v2992 = vmul.f32 %v2928, %v2976
        %v2993 = vmul.f32 %v2929, %v2977
        %s2994 = scalar_lea.vmem [#allocation2], 384
        %v2995 = vld [vmem:[%s2994] sm:$0xff]
        %v2996 = vld [vmem:[%s2994 + $0x8] sm:$0xff]
        %v2997 = vld [vmem:[%s2994 + $0x10] sm:$0xff]
        %v2998 = vld [vmem:[%s2994 + $0x18] sm:$0xff]
        %v2999 = vld [vmem:[%s2994 + $0x20] sm:$0xff]
        %v3000 = vld [vmem:[%s2994 + $0x28] sm:$0xff]
        %v3001 = vld [vmem:[%s2994 + $0x30] sm:$0xff]
        %v3002 = vld [vmem:[%s2994 + $0x38] sm:$0xff]
        %v3003 = vld [vmem:[%s2994 + $0x40] sm:$0xff]
        %v3004 = vld [vmem:[%s2994 + $0x48] sm:$0xff]
        %v3005 = vld [vmem:[%s2994 + $0x50] sm:$0xff]
        %v3006 = vld [vmem:[%s2994 + $0x58] sm:$0xff]
        %v3007 = vld [vmem:[%s2994 + $0x60] sm:$0xff]
        %v3008 = vld [vmem:[%s2994 + $0x68] sm:$0xff]
        %v3009 = vld [vmem:[%s2994 + $0x70] sm:$0xff]
        %v3010 = vld [vmem:[%s2994 + $0x78] sm:$0xff]
        %v3011 = vlaneseq
        %v3012 = vshrl.u32 %v3011, 7
        %v3013 = vsub.s32 0, %v3012
        %v3014 = vrot.slane %v236, %v3013
        %3015 = vmatprep.subr.mxu0 0.0
        %3016 = vmatpush1.msra.mxu0 %v2995
        %3017 = vmatprep.subr.mxu0 0.0
        %3018 = vmatpush1.msra.mxu0 %v2996
        %3019 = vmatprep.subr.mxu0 0.0
        %3020 = vmatpush1.msra.mxu0 %v2997
        %3021 = vmatprep.subr.mxu0 0.0
        %3022 = vmatpush1.msra.mxu0 %v2998
        %3023 = vmatprep.subr.mxu0 0.0
        %3024 = vmatpush1.msra.mxu0 %v2999
        %3025 = vmatprep.subr.mxu0 0.0
        %3026 = vmatpush1.msra.mxu0 %v3000
        %3027 = vmatprep.subr.mxu0 0.0
        %3028 = vmatpush1.msra.mxu0 %v3001
        %3029 = vmatprep.subr.mxu0 0.0
        %3030 = vmatpush1.msra.mxu0 %v3002
        %3031 = vmatprep.subr.mxu0 0.0
        %3032 = vmatpush1.msra.mxu0 %v3003
        %3033 = vmatprep.subr.mxu0 0.0
        %3034 = vmatpush1.msra.mxu0 %v3004
        %3035 = vmatprep.subr.mxu0 0.0
        %3036 = vmatpush1.msra.mxu0 %v3005
        %3037 = vmatprep.subr.mxu0 0.0
        %3038 = vmatpush1.msra.mxu0 %v3006
        %3039 = vmatprep.subr.mxu0 0.0
        %3040 = vmatpush1.msra.mxu0 %v3007
        %3041 = vmatprep.subr.mxu0 0.0
        %3042 = vmatpush1.msra.mxu0 %v3008
        %3043 = vmatprep.subr.mxu0 0.0
        %3044 = vmatpush1.msra.mxu0 %v3009
        %3045 = vmatprep.subr.mxu0 0.0
        %3046 = vmatpush1.msra.mxu0 %v3010
        %3047 = vmatprep.subr.mxu0 0.0
        %3048 = vmatpush1.msra.mxu0 0.0
        %3049 = vmatprep.subr.mxu0 0.0
        %3050 = vmatpush1.msra.mxu0 0.0
        %3051 = vmatprep.subr.mxu0 0.0
        %3052 = vmatpush1.msra.mxu0 0.0
        %3053 = vmatprep.subr.mxu0 0.0
        %3054 = vmatpush1.msra.mxu0 0.0
        %3055 = vmatprep.subr.mxu0 0.0
        %3056 = vmatpush1.msra.mxu0 0.0
        %3057 = vmatprep.subr.mxu0 0.0
        %3058 = vmatpush1.msra.mxu0 0.0
        %3059 = vmatprep.subr.mxu0 0.0
        %3060 = vmatpush1.msra.mxu0 0.0
        %3061 = vmatprep.subr.mxu0 0.0
        %3062 = vmatpush1.msra.mxu0 0.0
        %3063 = vmatprep.subr.mxu0 0.0
        %3064 = vmatpush1.msra.mxu0 0.0
        %3065 = vmatprep.subr.mxu0 0.0
        %3066 = vmatpush1.msra.mxu0 0.0
        %3067 = vmatprep.subr.mxu0 0.0
        %3068 = vmatpush1.msra.mxu0 0.0
        %3069 = vmatprep.subr.mxu0 0.0
        %3070 = vmatpush1.msra.mxu0 0.0
        %3071 = vmatprep.subr.mxu0 0.0
        %3072 = vmatpush1.msra.mxu0 0.0
        %3073 = vmatprep.subr.mxu0 0.0
        %3074 = vmatpush1.msra.mxu0 0.0
        %3075 = vmatprep.subr.mxu0 0.0
        %3076 = vmatpush1.msra.mxu0 0.0
        %3077 = vmatprep.subr.mxu0 0.0
        %3078 = vmatpush1.msra.mxu0 0.0
        %3079 = vmatprep.mubr.f32.mxu0 0.0
        %3080 = vmatmul.mubr.f32.gmra.mrb[0].mxu0 %v2978
        %v3081 = vpop.f32.mrb[0].mxu0
        %v3082 = vadd.f32 %v3014, %v3081
        %v3083 = vpop.f32.mrb[0].mxu0
        %3084 = vmatprep.mubr.f32.mxu0 0.0
        %3085 = vmatmul.mubr.f32.gmra.mrb[0].mxu0 %v2979
        %v3086 = vpop.f32.mrb[0].mxu0
        %v3087 = vadd.f32 %v3014, %v3086
        %v3088 = vpop.f32.mrb[0].mxu0
        %3089 = vmatprep.mubr.f32.mxu0 0.0
        %3090 = vmatmul.mubr.f32.gmra.mrb[0].mxu0 %v2980
        %v3091 = vpop.f32.mrb[0].mxu0
        %v3092 = vadd.f32 %v3014, %v3091
        %v3093 = vpop.f32.mrb[0].mxu0
        %3094 = vmatprep.mubr.f32.mxu0 0.0
        %3095 = vmatmul.mubr.f32.gmra.mrb[0].mxu0 %v2981
        %v3096 = vpop.f32.mrb[0].mxu0
        %v3097 = vadd.f32 %v3014, %v3096
        %v3098 = vpop.f32.mrb[0].mxu0
        %3099 = vmatprep.mubr.f32.mxu0 0.0
        %3100 = vmatmul.mubr.f32.gmra.mrb[0].mxu0 %v2982
        %v3101 = vpop.f32.mrb[0].mxu0
        %v3102 = vadd.f32 %v3014, %v3101
        %v3103 = vpop.f32.mrb[0].mxu0
        %3104 = vmatprep.mubr.f32.mxu0 0.0
        %3105 = vmatmul.mubr.f32.gmra.mrb[0].mxu0 %v2983
        %v3106 = vpop.f32.mrb[0].mxu0
        %v3107 = vadd.f32 %v3014, %v3106
        %v3108 = vpop.f32.mrb[0].mxu0
        %3109 = vmatprep.mubr.f32.mxu0 0.0
        %3110 = vmatmul.mubr.f32.gmra.mrb[0].mxu0 %v2984
        %v3111 = vpop.f32.mrb[0].mxu0
        %v3112 = vadd.f32 %v3014, %v3111
        %v3113 = vpop.f32.mrb[0].mxu0
        %3114 = vmatprep.mubr.f32.mxu0 0.0
        %3115 = vmatmul.mubr.f32.gmra.mrb[0].mxu0 %v2985
        %v3116 = vpop.f32.mrb[0].mxu0
        %v3117 = vadd.f32 %v3014, %v3116
        %v3118 = vpop.f32.mrb[0].mxu0
        %3119 = vmatprep.mubr.f32.mxu0 0.0
        %3120 = vmatmul.mubr.f32.gmra.mrb[0].mxu0 %v2986
        %v3121 = vpop.f32.mrb[0].mxu0
        %v3122 = vadd.f32 %v3014, %v3121
        %v3123 = vpop.f32.mrb[0].mxu0
        %3124 = vmatprep.mubr.f32.mxu0 0.0
        %3125 = vmatmul.mubr.f32.gmra.mrb[0].mxu0 %v2987
        %v3126 = vpop.f32.mrb[0].mxu0
        %v3127 = vadd.f32 %v3014, %v3126
        %v3128 = vpop.f32.mrb[0].mxu0
        %3129 = vmatprep.mubr.f32.mxu0 0.0
        %3130 = vmatmul.mubr.f32.gmra.mrb[0].mxu0 %v2988
        %v3131 = vpop.f32.mrb[0].mxu0
        %v3132 = vadd.f32 %v3014, %v3131
        %v3133 = vpop.f32.mrb[0].mxu0
        %3134 = vmatprep.mubr.f32.mxu0 0.0
        %3135 = vmatmul.mubr.f32.gmra.mrb[0].mxu0 %v2989
        %v3136 = vpop.f32.mrb[0].mxu0
        %v3137 = vadd.f32 %v3014, %v3136
        %v3138 = vpop.f32.mrb[0].mxu0
        %3139 = vmatprep.mubr.f32.mxu0 0.0
        %3140 = vmatmul.mubr.f32.gmra.mrb[0].mxu0 %v2990
        %v3141 = vpop.f32.mrb[0].mxu0
        %v3142 = vadd.f32 %v3014, %v3141
        %v3143 = vpop.f32.mrb[0].mxu0
        %3144 = vmatprep.mubr.f32.mxu0 0.0
        %3145 = vmatmul.mubr.f32.gmra.mrb[0].mxu0 %v2991
        %v3146 = vpop.f32.mrb[0].mxu0
        %v3147 = vadd.f32 %v3014, %v3146
        %v3148 = vpop.f32.mrb[0].mxu0
        %3149 = vmatprep.mubr.f32.mxu0 0.0
        %3150 = vmatmul.mubr.f32.gmra.mrb[0].mxu0 %v2992
        %v3151 = vpop.f32.mrb[0].mxu0
        %v3152 = vadd.f32 %v3014, %v3151
        %v3153 = vpop.f32.mrb[0].mxu0
        %3154 = vmatprep.mubr.f32.mxu0 0.0
        %3155 = vmatmul.mubr.f32.gmra.mrb[0].mxu0 %v2993
        %v3156 = vpop.f32.mrb[0].mxu0
        %v3157 = vadd.f32 %v3014, %v3156
        %v3158 = vpop.f32.mrb[0].mxu0
        %3159 = vdwg.mxu0
        %v3160 = vmul.f32 %v3082, 0.5
        %v3161 = vmul.f32 %v3087, 0.5
        %v3162 = vmul.f32 %v3092, 0.5
        %v3163 = vmul.f32 %v3097, 0.5
        %v3164 = vmul.f32 %v3102, 0.5
        %v3165 = vmul.f32 %v3107, 0.5
        %v3166 = vmul.f32 %v3112, 0.5
        %v3167 = vmul.f32 %v3117, 0.5
        %v3168 = vmul.f32 %v3122, 0.5
        %v3169 = vmul.f32 %v3127, 0.5
        %v3170 = vmul.f32 %v3132, 0.5
        %v3171 = vmul.f32 %v3137, 0.5
        %v3172 = vmul.f32 %v3142, 0.5
        %v3173 = vmul.f32 %v3147, 0.5
        %v3174 = vmul.f32 %v3152, 0.5
        %v3175 = vmul.f32 %v3157, 0.5
        %v3176 = vmul.f32 %v3082, 0.70710677
        %v3177 = vmul.f32 %v3087, 0.70710677
        %v3178 = vmul.f32 %v3092, 0.70710677
        %v3179 = vmul.f32 %v3097, 0.70710677
        %v3180 = vmul.f32 %v3102, 0.70710677
        %v3181 = vmul.f32 %v3107, 0.70710677
        %v3182 = vmul.f32 %v3112, 0.70710677
        %v3183 = vmul.f32 %v3117, 0.70710677
        %v3184 = vmul.f32 %v3122, 0.70710677
        %v3185 = vmul.f32 %v3127, 0.70710677
        %v3186 = vmul.f32 %v3132, 0.70710677
        %v3187 = vmul.f32 %v3137, 0.70710677
        %v3188 = vmul.f32 %v3142, 0.70710677
        %v3189 = vmul.f32 %v3147, 0.70710677
        %v3190 = vmul.f32 %v3152, 0.70710677
        %v3191 = vmul.f32 %v3157, 0.70710677
        %v3192 = verf.f32.pop %v3176
        %v3193 = verf.f32.pop %v3177
        %v3194 = verf.f32.pop %v3178
        %v3195 = verf.f32.pop %v3179
        %v3196 = verf.f32.pop %v3180
        %v3197 = verf.f32.pop %v3181
        %v3198 = verf.f32.pop %v3182
        %v3199 = verf.f32.pop %v3183
        %v3200 = verf.f32.pop %v3184
        %v3201 = verf.f32.pop %v3185
        %v3202 = verf.f32.pop %v3186
        %v3203 = verf.f32.pop %v3187
        %v3204 = verf.f32.pop %v3188
        %v3205 = verf.f32.pop %v3189
        %v3206 = verf.f32.pop %v3190
        %v3207 = verf.f32.pop %v3191
        %v3208 = vadd.f32 %v3192, 1.0
        %v3209 = vadd.f32 %v3193, 1.0
        %v3210 = vadd.f32 %v3194, 1.0
        %v3211 = vadd.f32 %v3195, 1.0
        %v3212 = vadd.f32 %v3196, 1.0
        %v3213 = vadd.f32 %v3197, 1.0
        %v3214 = vadd.f32 %v3198, 1.0
        %v3215 = vadd.f32 %v3199, 1.0
        %v3216 = vadd.f32 %v3200, 1.0
        %v3217 = vadd.f32 %v3201, 1.0
        %v3218 = vadd.f32 %v3202, 1.0
        %v3219 = vadd.f32 %v3203, 1.0
        %v3220 = vadd.f32 %v3204, 1.0
        %v3221 = vadd.f32 %v3205, 1.0
        %v3222 = vadd.f32 %v3206, 1.0
        %v3223 = vadd.f32 %v3207, 1.0
        %v3224 = vmul.f32 %v3160, %v3208
        %v3225 = vmul.f32 %v3161, %v3209
        %v3226 = vmul.f32 %v3162, %v3210
        %v3227 = vmul.f32 %v3163, %v3211
        %v3228 = vmul.f32 %v3164, %v3212
        %v3229 = vmul.f32 %v3165, %v3213
        %v3230 = vmul.f32 %v3166, %v3214
        %v3231 = vmul.f32 %v3167, %v3215
        %v3232 = vmul.f32 %v3168, %v3216
        %v3233 = vmul.f32 %v3169, %v3217
        %v3234 = vmul.f32 %v3170, %v3218
        %v3235 = vmul.f32 %v3171, %v3219
        %v3236 = vmul.f32 %v3172, %v3220
        %v3237 = vmul.f32 %v3173, %v3221
        %v3238 = vmul.f32 %v3174, %v3222
        %v3239 = vmul.f32 %v3175, %v3223
        %s3240 = scalar_lea.vmem [#allocation2], 512
        %v3241 = vld [vmem:[%s3240] sm:$0xff]
        %v3242 = vld [vmem:[%s3240 + $0x8] sm:$0xff]
        %v3243 = vld [vmem:[%s3240 + $0x10] sm:$0xff]
        %v3244 = vld [vmem:[%s3240 + $0x18] sm:$0xff]
        %v3245 = vld [vmem:[%s3240 + $0x20] sm:$0xff]
        %v3246 = vld [vmem:[%s3240 + $0x28] sm:$0xff]
        %v3247 = vld [vmem:[%s3240 + $0x30] sm:$0xff]
        %v3248 = vld [vmem:[%s3240 + $0x38] sm:$0xff]
        %v3249 = vld [vmem:[%s3240 + $0x40] sm:$0xff]
        %v3250 = vld [vmem:[%s3240 + $0x48] sm:$0xff]
        %v3251 = vld [vmem:[%s3240 + $0x50] sm:$0xff]
        %v3252 = vld [vmem:[%s3240 + $0x58] sm:$0xff]
        %v3253 = vld [vmem:[%s3240 + $0x60] sm:$0xff]
        %v3254 = vld [vmem:[%s3240 + $0x68] sm:$0xff]
        %v3255 = vld [vmem:[%s3240 + $0x70] sm:$0xff]
        %v3256 = vld [vmem:[%s3240 + $0x78] sm:$0xff]
        %v3257 = vlaneseq
        %v3258 = vshrl.u32 %v3257, 7
        %v3259 = vsub.s32 0, %v3258
        %v3260 = vrot.slane %v237, %v3259
        %3261 = vmatprep.subr.mxu0 0.0
        %3262 = vmatpush1.msra.mxu0 %v3241
        %3263 = vmatprep.subr.mxu0 0.0
        %3264 = vmatpush1.msra.mxu0 %v3242
        %3265 = vmatprep.subr.mxu0 0.0
        %3266 = vmatpush1.msra.mxu0 %v3243
        %3267 = vmatprep.subr.mxu0 0.0
        %3268 = vmatpush1.msra.mxu0 %v3244
        %3269 = vmatprep.subr.mxu0 0.0
        %3270 = vmatpush1.msra.mxu0 %v3245
        %3271 = vmatprep.subr.mxu0 0.0
        %3272 = vmatpush1.msra.mxu0 %v3246
        %3273 = vmatprep.subr.mxu0 0.0
        %3274 = vmatpush1.msra.mxu0 %v3247
        %3275 = vmatprep.subr.mxu0 0.0
        %3276 = vmatpush1.msra.mxu0 %v3248
        %3277 = vmatprep.subr.mxu0 0.0
        %3278 = vmatpush1.msra.mxu0 %v3249
        %3279 = vmatprep.subr.mxu0 0.0
        %3280 = vmatpush1.msra.mxu0 %v3250
        %3281 = vmatprep.subr.mxu0 0.0
        %3282 = vmatpush1.msra.mxu0 %v3251
        %3283 = vmatprep.subr.mxu0 0.0
        %3284 = vmatpush1.msra.mxu0 %v3252
        %3285 = vmatprep.subr.mxu0 0.0
        %3286 = vmatpush1.msra.mxu0 %v3253
        %3287 = vmatprep.subr.mxu0 0.0
        %3288 = vmatpush1.msra.mxu0 %v3254
        %3289 = vmatprep.subr.mxu0 0.0
        %3290 = vmatpush1.msra.mxu0 %v3255
        %3291 = vmatprep.subr.mxu0 0.0
        %3292 = vmatpush1.msra.mxu0 %v3256
        %3293 = vmatprep.subr.mxu0 0.0
        %3294 = vmatpush1.msra.mxu0 0.0
        %3295 = vmatprep.subr.mxu0 0.0
        %3296 = vmatpush1.msra.mxu0 0.0
        %3297 = vmatprep.subr.mxu0 0.0
        %3298 = vmatpush1.msra.mxu0 0.0
        %3299 = vmatprep.subr.mxu0 0.0
        %3300 = vmatpush1.msra.mxu0 0.0
        %3301 = vmatprep.subr.mxu0 0.0
        %3302 = vmatpush1.msra.mxu0 0.0
        %3303 = vmatprep.subr.mxu0 0.0
        %3304 = vmatpush1.msra.mxu0 0.0
        %3305 = vmatprep.subr.mxu0 0.0
        %3306 = vmatpush1.msra.mxu0 0.0
        %3307 = vmatprep.subr.mxu0 0.0
        %3308 = vmatpush1.msra.mxu0 0.0
        %3309 = vmatprep.subr.mxu0 0.0
        %3310 = vmatpush1.msra.mxu0 0.0
        %3311 = vmatprep.subr.mxu0 0.0
        %3312 = vmatpush1.msra.mxu0 0.0
        %3313 = vmatprep.subr.mxu0 0.0
        %3314 = vmatpush1.msra.mxu0 0.0
        %3315 = vmatprep.subr.mxu0 0.0
        %3316 = vmatpush1.msra.mxu0 0.0
        %3317 = vmatprep.subr.mxu0 0.0
        %3318 = vmatpush1.msra.mxu0 0.0
        %3319 = vmatprep.subr.mxu0 0.0
        %3320 = vmatpush1.msra.mxu0 0.0
        %3321 = vmatprep.subr.mxu0 0.0
        %3322 = vmatpush1.msra.mxu0 0.0
        %3323 = vmatprep.subr.mxu0 0.0
        %3324 = vmatpush1.msra.mxu0 0.0
        %3325 = vmatprep.mubr.f32.mxu0 0.0
        %3326 = vmatmul.mubr.f32.gmra.mrb[0].mxu0 %v3224
        %v3327 = vpop.f32.mrb[0].mxu0
        %v3328 = vadd.f32 %v3260, %v3327
        %v3329 = vpop.f32.mrb[0].mxu0
        %3330 = vmatprep.mubr.f32.mxu0 0.0
        %3331 = vmatmul.mubr.f32.gmra.mrb[0].mxu0 %v3225
        %v3332 = vpop.f32.mrb[0].mxu0
        %v3333 = vadd.f32 %v3260, %v3332
        %v3334 = vpop.f32.mrb[0].mxu0
        %3335 = vmatprep.mubr.f32.mxu0 0.0
        %3336 = vmatmul.mubr.f32.gmra.mrb[0].mxu0 %v3226
        %v3337 = vpop.f32.mrb[0].mxu0
        %v3338 = vadd.f32 %v3260, %v3337
        %v3339 = vpop.f32.mrb[0].mxu0
        %3340 = vmatprep.mubr.f32.mxu0 0.0
        %3341 = vmatmul.mubr.f32.gmra.mrb[0].mxu0 %v3227
        %v3342 = vpop.f32.mrb[0].mxu0
        %v3343 = vadd.f32 %v3260, %v3342
        %v3344 = vpop.f32.mrb[0].mxu0
        %3345 = vmatprep.mubr.f32.mxu0 0.0
        %3346 = vmatmul.mubr.f32.gmra.mrb[0].mxu0 %v3228
        %v3347 = vpop.f32.mrb[0].mxu0
        %v3348 = vadd.f32 %v3260, %v3347
        %v3349 = vpop.f32.mrb[0].mxu0
        %3350 = vmatprep.mubr.f32.mxu0 0.0
        %3351 = vmatmul.mubr.f32.gmra.mrb[0].mxu0 %v3229
        %v3352 = vpop.f32.mrb[0].mxu0
        %v3353 = vadd.f32 %v3260, %v3352
        %v3354 = vpop.f32.mrb[0].mxu0
        %3355 = vmatprep.mubr.f32.mxu0 0.0
        %3356 = vmatmul.mubr.f32.gmra.mrb[0].mxu0 %v3230
        %v3357 = vpop.f32.mrb[0].mxu0
        %v3358 = vadd.f32 %v3260, %v3357
        %v3359 = vpop.f32.mrb[0].mxu0
        %3360 = vmatprep.mubr.f32.mxu0 0.0
        %3361 = vmatmul.mubr.f32.gmra.mrb[0].mxu0 %v3231
        %v3362 = vpop.f32.mrb[0].mxu0
        %v3363 = vadd.f32 %v3260, %v3362
        %v3364 = vpop.f32.mrb[0].mxu0
        %3365 = vmatprep.mubr.f32.mxu0 0.0
        %3366 = vmatmul.mubr.f32.gmra.mrb[0].mxu0 %v3232
        %v3367 = vpop.f32.mrb[0].mxu0
        %v3368 = vadd.f32 %v3260, %v3367
        %v3369 = vpop.f32.mrb[0].mxu0
        %3370 = vmatprep.mubr.f32.mxu0 0.0
        %3371 = vmatmul.mubr.f32.gmra.mrb[0].mxu0 %v3233
        %v3372 = vpop.f32.mrb[0].mxu0
        %v3373 = vadd.f32 %v3260, %v3372
        %v3374 = vpop.f32.mrb[0].mxu0
        %3375 = vmatprep.mubr.f32.mxu0 0.0
        %3376 = vmatmul.mubr.f32.gmra.mrb[0].mxu0 %v3234
        %v3377 = vpop.f32.mrb[0].mxu0
        %v3378 = vadd.f32 %v3260, %v3377
        %v3379 = vpop.f32.mrb[0].mxu0
        %3380 = vmatprep.mubr.f32.mxu0 0.0
        %3381 = vmatmul.mubr.f32.gmra.mrb[0].mxu0 %v3235
        %v3382 = vpop.f32.mrb[0].mxu0
        %v3383 = vadd.f32 %v3260, %v3382
        %v3384 = vpop.f32.mrb[0].mxu0
        %3385 = vmatprep.mubr.f32.mxu0 0.0
        %3386 = vmatmul.mubr.f32.gmra.mrb[0].mxu0 %v3236
        %v3387 = vpop.f32.mrb[0].mxu0
        %v3388 = vadd.f32 %v3260, %v3387
        %v3389 = vpop.f32.mrb[0].mxu0
        %3390 = vmatprep.mubr.f32.mxu0 0.0
        %3391 = vmatmul.mubr.f32.gmra.mrb[0].mxu0 %v3237
        %v3392 = vpop.f32.mrb[0].mxu0
        %v3393 = vadd.f32 %v3260, %v3392
        %v3394 = vpop.f32.mrb[0].mxu0
        %3395 = vmatprep.mubr.f32.mxu0 0.0
        %3396 = vmatmul.mubr.f32.gmra.mrb[0].mxu0 %v3238
        %v3397 = vpop.f32.mrb[0].mxu0
        %v3398 = vadd.f32 %v3260, %v3397
        %v3399 = vpop.f32.mrb[0].mxu0
        %3400 = vmatprep.mubr.f32.mxu0 0.0
        %3401 = vmatmul.mubr.f32.gmra.mrb[0].mxu0 %v3239
        %v3402 = vpop.f32.mrb[0].mxu0
        %v3403 = vadd.f32 %v3260, %v3402
        %v3404 = vpop.f32.mrb[0].mxu0
        %3405 = vdwg.mxu0
        %3406 = vst [vmem:[%s206] sm:$0xff] %v3328
        %3407 = vst [vmem:[%s206 + $0x8] sm:$0xff] %v3333
        %3408 = vst [vmem:[%s206 + $0x10] sm:$0xff] %v3338
        %3409 = vst [vmem:[%s206 + $0x18] sm:$0xff] %v3343
        %3410 = vst [vmem:[%s206 + $0x20] sm:$0xff] %v3348
        %3411 = vst [vmem:[%s206 + $0x28] sm:$0xff] %v3353
        %3412 = vst [vmem:[%s206 + $0x30] sm:$0xff] %v3358
        %3413 = vst [vmem:[%s206 + $0x38] sm:$0xff] %v3363
        %3414 = vst [vmem:[%s206 + $0x40] sm:$0xff] %v3368
        %3415 = vst [vmem:[%s206 + $0x48] sm:$0xff] %v3373
        %3416 = vst [vmem:[%s206 + $0x50] sm:$0xff] %v3378
        %3417 = vst [vmem:[%s206 + $0x58] sm:$0xff] %v3383
        %3418 = vst [vmem:[%s206 + $0x60] sm:$0xff] %v3388
        %3419 = vst [vmem:[%s206 + $0x68] sm:$0xff] %v3393
        %3420 = vst [vmem:[%s206 + $0x70] sm:$0xff] %v3398
        %3421 = vst [vmem:[%s206 + $0x78] sm:$0xff] %v3403
        %s3422 = sand.u32 %s116, 1
        %s3423 = scalar_lea.sflag [#allocation4], %s3422
        %s3424 = sand.u32 %s116, 1
        %s3425 = smul.addr %s3424, 128
        %s3426 = scalar_lea.vmem [#allocation5], %s3425
        // Predicated region
        $region41: #{tpu_custom_call.1} parent=35 // pred_check
          %p3427 = pneg %p126
        $region42: #{tpu_custom_call.1} parent=35 // pred_check_branch
          %3429 = sbr.rel (%p3427) target = $region44
        $region43: #{tpu_custom_call.1} parent=35 // pred_region
          %s3430 = smul.u32 16, %s19
          %s3432 = ssub.s32 2048, 2048
          %3433 = vsyncadd %s3423, %s3432
          %s3434 = smul.addr %s3430, 128
          %s3435 = scalar_lea.hbm %s4, %s3434
          %s3436 = sshll.u32 %s3426, 4
          %s3437 = int_to_ptr.vmem [resolvable:$true] %s3436
          %3442 = dma.vmem_to_hbm [thread:$0]  %s3437, 2048, %s3435, %s3423, 128, 128, 8
        $region44: #{tpu_custom_call.1} parent=35 // pred_fallthru
          _
      $region36: #{tpu_custom_call.1} parent=5 // pred_fallthru
        _
      %p3443 = scmp.le.s32.totalorder 2, %s14
      // Predicated region
      $region45: #{tpu_custom_call.1} parent=5 // pred_check
        %p3444 = pneg %p3443
      $region46: #{tpu_custom_call.1} parent=5 // pred_check_branch
        %3446 = sbr.rel (%p3444) target = $region48
      $region47: #{tpu_custom_call.1} parent=5 // pred_region
        %s3447 = ssub.s32 %s14, 2
        // Predicated region
        $region49: #{tpu_custom_call.1} parent=47 // pred_check
          %p3448 = pneg %p132
        $region50: #{tpu_custom_call.1} parent=47 // pred_check_branch
          %3450 = sbr.rel (%p3448) target = $region52
        $region51: #{tpu_custom_call.1} parent=47 // pred_region
          %s3451 = sand.u32 %s117, 1
          %s3452 = scalar_lea.sflag [#allocation4], %s3451
          %s3453 = sand.u32 %s117, 1
          %s3454 = smul.addr %s3453, 128
          %s3455 = scalar_lea.vmem [#allocation5], %s3454
          %3456 = dma.done %s3452, 2048
        $region52: #{tpu_custom_call.1} parent=47 // pred_fallthru
          _
      $region48: #{tpu_custom_call.1} parent=5 // pred_fallthru
        _
    $region6: #{tpu_custom_call.1} parent=1 // loop_footer
      %s18 = sadd.s32 1, %s14
    $region7: #{tpu_custom_call.1} parent=1 // loop_footer_branch
      %13 = sbr.rel target = $region3
    $region8: #{tpu_custom_call.1} parent=1 // loop_exit
      _
    %3457 = vsyncpa [#allocation3], 1
    %s3458 = scalar_lea.sflag [#allocation3], 1
    %3459 = vsyncpa %s3458, 1
    %3460 = vsyncpa [#allocation4], 1
    %s3461 = scalar_lea.sflag [#allocation4], 1
    %3462 = vsyncpa %s3461, 1

</llo_original>
